<compile_context>
chip_gen: v6e
topology: v6e:2x2x1
jax: 0.10.0
libtpu: 0.0.40
codegen_flags: <defaults>
</compile_context>

<pallas_src>
import functools

import numpy as np

import jax
import jax.numpy as jnp
from jax.experimental import pallas as pl
from jax.experimental.pallas import tpu as pltpu

LANE = 128     # TPU lane width (feature dims padded to this)
TILE_N = 256   # node rows per grid step (fills the 256-wide MXU on v6e/v7x; 2 passes on v5e)
TILE_K = 256   # neighbor column-block size


def _round_up(x, m):
    return (x + m - 1) // m * m


def _pad2(a, rows, cols):
    return jnp.zeros((rows, cols), a.dtype).at[: a.shape[0], : a.shape[1]].set(a)


# ----------------------------------------------------------------------------
# Host-side graph preprocessing (runs once per graph)
# ----------------------------------------------------------------------------
def build_block_sparse_adjacency(edge_index, n_pad, tile_n, tile_k):
    """Per-row-tile nonzero neighbor column-block lists + compacted bf16 count blocks.

    Returns (blk_ids (row_tiles, max_blk) i32, nblk (row_tiles,) i32,
             a_blocks (row_tiles, max_blk, tile_n, tile_k) bf16, deg_inv (n_pad, 1) f32).
    Note: counts are bf16-exact only up to 256 parallel edges per (dst, src) pair.
    TODO(synk): at Pubmed scale build these directly from CSR without the dense intermediate.
    """
    src = np.asarray(edge_index[0])
    dst = np.asarray(edge_index[1])
    a = np.zeros((n_pad, n_pad), np.float32)
    np.add.at(a, (dst, src), 1.0)            # unnormalized in-edge counts

    row_tiles = n_pad // tile_n
    n_kblocks = n_pad // tile_k
    nz = a.reshape(row_tiles, tile_n, n_kblocks, tile_k).any(axis=(1, 3))
    nblk = nz.sum(axis=1).astype(np.int32)
    max_blk = max(int(nblk.max()), 1)

    blk_ids = np.zeros((row_tiles, max_blk), np.int32)
    a_blocks = np.zeros((row_tiles, max_blk, tile_n, tile_k), np.float32)
    for t in range(row_tiles):
        ids = np.nonzero(nz[t])[0]
        for j, c in enumerate(ids):
            blk_ids[t, j] = c
            a_blocks[t, j] = a[t * tile_n:(t + 1) * tile_n, c * tile_k:(c + 1) * tile_k]
        if len(ids):
            # Pad with the last valid block index: the padded steps then re-use the already
            # resident neighbor block (Pallas elides the copy when the index is unchanged).
            blk_ids[t, len(ids):] = ids[-1]

    deg = a.sum(axis=1, keepdims=True)
    deg_inv = np.where(deg > 0, 1.0 / np.maximum(deg, 1.0), 0.0).astype(np.float32)

    return (jnp.asarray(blk_ids), jnp.asarray(nblk),
            jnp.asarray(a_blocks).astype(jnp.bfloat16), jnp.asarray(deg_inv))


# ----------------------------------------------------------------------------
# Pallas kernel: one SAGEConv(mean) layer, block-sparse aggregation + fused epilogue
# ----------------------------------------------------------------------------
def sage_block_sparse_kernel(blk_ref, nblk_ref, a_ref, xn_ref, dinv_ref, xs_ref,
                             wl_ref, wr_ref, b_ref, out_ref, acc_ref, *, final_op):
    """grid = (row_tiles ["parallel"], max_blk ["arbitrary"]).

      a_ref   : (TILE_N, TILE_K) bf16  nonzero A count block k of row tile t
      xn_ref  : (TILE_K, F_pad)  bf16  neighbor features of column block blk_ids[t, k]
      dinv_ref: (TILE_N, 1)      f32   1 / in-degree of the row tile
      xs_ref  : (TILE_N, F_pad)  bf16  self features of the row tile
      acc_ref : (TILE_N, F_pad)  f32   aggregation accumulator (VMEM scratch)
    """
    t = pl.program_id(0)
    k = pl.program_id(1)

    @pl.when(k == 0)
    def _():
        acc_ref[...] = jnp.zeros_like(acc_ref)

    # Accumulate only over this row tile's real (nonzero) neighbor blocks.
    @pl.when(k < nblk_ref[t])
    def _():
        acc_ref[...] += jnp.dot(a_ref[...], xn_ref[...],
                                preferred_element_type=jnp.float32)

    @pl.when(k == pl.num_programs(1) - 1)
    def _():
        # Exact f32 mean normalization, then two bf16 MXU projections accumulated in f32
        # (split dots instead of a fused concat-K dot: same pass count, no concat temp).
        agg = (acc_ref[...] * dinv_ref[...]).astype(jnp.bfloat16)
        z = jnp.dot(agg, wl_ref[...], preferred_element_type=jnp.float32)
        z = z + jnp.dot(xs_ref[...], wr_ref[...], preferred_element_type=jnp.float32)
        z = z + b_ref[...]   # layer 2: padded class columns carry a -1e30 bias (pre-baked mask)
        if final_op == "relu":
            out_ref[...] = jnp.maximum(z, 0.0).astype(out_ref.dtype)
        else:  # "log_softmax"
            m = jnp.max(z, axis=-1, keepdims=True)
            shifted = z - m
            lse = jnp.log(jnp.sum(jnp.exp(shifted), axis=-1, keepdims=True))
            out_ref[...] = (shifted - lse).astype(out_ref.dtype)


# ----------------------------------------------------------------------------
# Wrapper: block-sparse, K-tiled pallas_call for one SAGEConv layer
# ----------------------------------------------------------------------------
def sage_conv(blk_ids, nblk, a_blocks, x_all, deg_inv, wl, wr, b, *,
              tile_n, tile_k, out_dtype, final_op):
    row_tiles, max_blk = blk_ids.shape
    n_pad, f_pad = x_all.shape
    out_dim = wl.shape[1]

    return pl.pallas_call(
        functools.partial(sage_block_sparse_kernel, final_op=final_op),
        out_shape=jax.ShapeDtypeStruct((n_pad, out_dim), out_dtype),
        grid_spec=pltpu.PrefetchScalarGridSpec(
            num_scalar_prefetch=2,                    # blk_ids, nblk -> SMEM
            grid=(row_tiles, max_blk),
            in_specs=[
                # compacted nonzero A count blocks (leading dims squeezed away)
                pl.BlockSpec((None, None, tile_n, tile_k),
                             lambda t, k, blk, nb: (t, k, 0, 0)),
                # neighbor features: data-dependent column block from the prefetched list
                pl.BlockSpec((tile_k, f_pad), lambda t, k, blk, nb: (blk[t, k], 0)),
                # 1/deg for this row tile
                pl.BlockSpec((tile_n, 1), lambda t, k, blk, nb: (t, 0)),
                # self features of this row tile (separate operand: X is not fully resident)
                pl.BlockSpec((tile_n, f_pad), lambda t, k, blk, nb: (t, 0)),
                # weights / bias (constant across the whole grid)
                pl.BlockSpec((f_pad, out_dim), lambda t, k, blk, nb: (0, 0)),
                pl.BlockSpec((f_pad, out_dim), lambda t, k, blk, nb: (0, 0)),
                pl.BlockSpec((1, out_dim), lambda t, k, blk, nb: (0, 0)),
            ],
            out_specs=pl.BlockSpec((tile_n, out_dim), lambda t, k, blk, nb: (t, 0)),
            scratch_shapes=[pltpu.VMEM((tile_n, f_pad), jnp.float32)],
        ),
        compiler_params=pltpu.CompilerParams(
            dimension_semantics=("parallel", "arbitrary"),  # row tiles shard across v7x TCs
            vmem_limit_bytes=32 * 1024 * 1024,              # K-tiled footprint ~3 MiB; safe v5e..v7x
        ),
    )(blk_ids, nblk, a_blocks, x_all, deg_inv, x_all, wl, wr, b)


# ----------------------------------------------------------------------------
# Full forward pass (weight padding in plain JAX; all heavy math in the two kernels)
# ----------------------------------------------------------------------------
@functools.partial(jax.jit, static_argnames=("tile_n", "tile_k"))
def graphsage_forward(x, blk_ids, nblk, a_blocks, deg_inv, params, *, tile_n, tile_k):
    n_pad = deg_inv.shape[0]
    f_in = x.shape[1]
    hidden = params["wl1"].shape[1]
    num_classes = params["wl2"].shape[1]

    f_pad = _round_up(f_in, LANE)
    h_pad = _round_up(hidden, LANE)
    c_pad = _round_up(num_classes, LANE)

    x_pad = _pad2(x, n_pad, f_pad).astype(jnp.bfloat16)

    wl1 = _pad2(params["wl1"], f_pad, h_pad).astype(jnp.bfloat16)
    wr1 = _pad2(params["wr1"], f_pad, h_pad).astype(jnp.bfloat16)
    b1 = _pad2(params["b1"], 1, h_pad).astype(jnp.float32)

    wl2 = _pad2(params["wl2"], h_pad, c_pad).astype(jnp.bfloat16)
    wr2 = _pad2(params["wr2"], h_pad, c_pad).astype(jnp.bfloat16)
    # Pre-bake the padded-class mask into the bias: padded logit columns are exactly 0 before
    # the bias (zero-padded weight columns), so -1e30 reproduces the -inf mask with no
    # per-step iota/where in the kernel epilogue.
    b2 = jnp.full((1, c_pad), -1e30, jnp.float32).at[0, :num_classes].set(
        params["b2"].reshape(-1).astype(jnp.float32))

    h = sage_conv(blk_ids, nblk, a_blocks, x_pad, deg_inv, wl1, wr1, b1,
                  tile_n=tile_n, tile_k=tile_k, out_dtype=jnp.bfloat16, final_op="relu")
    # F.dropout(training=False) == identity
    out = sage_conv(blk_ids, nblk, a_blocks, h, deg_inv, wl2, wr2, b2,
                    tile_n=tile_n, tile_k=tile_k, out_dtype=jnp.float32, final_op="log_softmax")
    return out   # (n_pad, c_pad); caller slices [:n, :num_classes]


# ----------------------------------------------------------------------------
# Main
# ----------------------------------------------------------------------------
if __name__ == "__main__":
    key = jax.random.PRNGKey(0)
    keys = jax.random.split(key, 11)

    # Small synthetic "Planetoid-like" graph (stand-in for Pubmed: 3 classes).
    N = 500         # nodes -> n_pad = 512 -> 2 row tiles, 2 neighbor column blocks
    F_IN = 32       # num_node_features
    HIDDEN = 128    # SAGEConv hidden width (as in the module)
    C = 3           # num_classes

    x = jax.random.normal(keys[0], (N, F_IN), jnp.float32)

    # Structured edges: row tile 0 (dst < 256) only draws sources from column block 0, so
    # nblk = [1, 2] and the masked / padded-k block-sparse path is exercised; tile 1 uses both.
    E1 = E2 = 1500
    src1 = jax.random.randint(keys[1], (E1,), 0, 256)
    dst1 = jax.random.randint(keys[2], (E1,), 0, 256)
    src2 = jax.random.randint(keys[3], (E2,), 0, N)
    dst2 = jax.random.randint(keys[4], (E2,), 256, N)
    edge_index = jnp.stack([jnp.concatenate([src1, src2]),
                            jnp.concatenate([dst1, dst2])], axis=0)

    def glorot(k, fan_in, fan_out):
        s = jnp.sqrt(6.0 / (fan_in + fan_out))
        return jax.random.uniform(k, (fan_in, fan_out), jnp.float32, -s, s)

    params = {
        # conv1: SAGEConv(F_IN -> HIDDEN)
        "wl1": glorot(keys[5], F_IN, HIDDEN),
        "wr1": glorot(keys[6], F_IN, HIDDEN),
        "b1": jax.random.normal(keys[7], (1, HIDDEN), jnp.float32) * 0.01,
        # conv2: SAGEConv(HIDDEN -> C)
        "wl2": glorot(keys[8], HIDDEN, C),
        "wr2": glorot(keys[9], HIDDEN, C),
        "b2": jax.random.normal(keys[10], (1, C), jnp.float32) * 0.01,
    }

    # Host-side (one-off) block-sparse graph preprocessing.
    n_pad = _round_up(N, max(TILE_N, TILE_K))   # TILE_N == TILE_K -> divisible by both
    blk_ids, nblk, a_blocks, deg_inv = build_block_sparse_adjacency(
        np.asarray(edge_index), n_pad, TILE_N, TILE_K)

    out_pad = graphsage_forward(x, blk_ids, nblk, a_blocks, deg_inv, params,
                                tile_n=TILE_N, tile_k=TILE_K)
    out_pad = jax.block_until_ready(out_pad)
    out = out_pad[:N, :C]

    # Pure-JAX f32 reference (PyG SAGEConv mean aggregation, eval mode).
    def reference(x, edge_index, params):
        src, dst = edge_index[0], edge_index[1]
        a = jnp.zeros((N, N), jnp.float32).at[dst, src].add(1.0)
        deg = a.sum(1, keepdims=True)
        a = jnp.where(deg > 0, a / jnp.maximum(deg, 1.0), 0.0)
        h = (a @ x) @ params["wl1"] + x @ params["wr1"] + params["b1"]
        h = jnp.maximum(h, 0.0)
        z = (a @ h) @ params["wl2"] + h @ params["wr2"] + params["b2"]
        return jax.nn.log_softmax(z, axis=1)

    ref = reference(x, edge_index, params)

    assert out.shape == (N, C)
    # log_softmax rows should sum (in prob space) to ~1
    assert jnp.allclose(jnp.sum(jnp.exp(out), axis=1), 1.0, atol=2e-3)
    # bf16-compute / f32-accumulate kernels vs the f32 reference
    err = float(jnp.max(jnp.abs(out - ref)))
    assert err < 0.2, err

    print("KERNEL_OK")
</pallas_src>

<mosaic_0001>
module attributes {stable_mosaic.version = 11 : i64} {
  func.func @sage_block_sparse_kernel(%arg0: i32, %arg1: i32, %arg2: memref<2x2xi32, #tpu.memory_space<smem>>, %arg3: memref<2xi32, #tpu.memory_space<smem>>, %arg4: memref<1x1x256x256xbf16, #tpu.memory_space<vmem>>, %arg5: memref<256x128xbf16, #tpu.memory_space<vmem>>, %arg6: memref<256x1xf32, #tpu.memory_space<vmem>>, %arg7: memref<256x128xbf16, #tpu.memory_space<vmem>>, %arg8: memref<128x128xbf16, #tpu.memory_space<vmem>>, %arg9: memref<128x128xbf16, #tpu.memory_space<vmem>>, %arg10: memref<1x128xf32, #tpu.memory_space<vmem>>, %arg11: memref<256x128xf32, #tpu.memory_space<vmem>>, %arg12: memref<256x128xf32, #tpu.memory_space<vmem>>) attributes {dimension_semantics = [#tpu.dimension_semantics<parallel>, #tpu.dimension_semantics<arbitrary>], iteration_bounds = array<i64: 2, 2>, scalar_prefetch = 2 : i64, scratch_operands = 1 : i64, tpu.core_type = #tpu.core_type<tc>, window_params = [{transform_indices = @transform_0, window_bounds = array<i64: 1, 1, 256, 256>}, {transform_indices = @transform_1, window_bounds = array<i64: 256, 128>}, {transform_indices = @transform_2, window_bounds = array<i64: 256, 1>}, {transform_indices = @transform_3, window_bounds = array<i64: 256, 128>}, {pipeline_mode = #tpu.pipeline_mode<synchronous>, transform_indices = @transform_4, window_bounds = array<i64: 128, 128>}, {pipeline_mode = #tpu.pipeline_mode<synchronous>, transform_indices = @transform_5, window_bounds = array<i64: 128, 128>}, {pipeline_mode = #tpu.pipeline_mode<synchronous>, transform_indices = @transform_6, window_bounds = array<i64: 1, 128>}, {transform_indices = @transform_7, window_bounds = array<i64: 256, 128>}]} {
    %c0_i32 = arith.constant 0 : i32
    %0 = arith.cmpi eq, %arg1, %c0_i32 : i32
    %1 = arith.extui %0 : i1 to i32
    %c0_i32_0 = arith.constant 0 : i32
    %2 = arith.cmpi ne, %1, %c0_i32_0 : i32
    scf.if %2 {
      %cst = arith.constant 0.000000e+00 : f32
      %11 = vector.broadcast %cst : f32 to vector<256x128xf32>
      %c0 = arith.constant 0 : index
      %c0_3 = arith.constant 0 : index
      %12 = vector.load %arg12[%c0, %c0_3] : memref<256x128xf32, #tpu.memory_space<vmem>>, vector<256x128xf32>
      tpu.vector_store %arg12[%c0, %c0_3], %11 {strides = array<i32>} : memref<256x128xf32, #tpu.memory_space<vmem>>, vector<256x128xf32>,
    } else {
    }
    %3 = arith.index_cast %arg0 : i32 to index
    %4 = memref.load %arg3[%3] : memref<2xi32, #tpu.memory_space<smem>>
    %5 = arith.cmpi slt, %arg1, %4 : i32
    %6 = arith.extui %5 : i1 to i32
    %c0_i32_1 = arith.constant 0 : i32
    %7 = arith.cmpi ne, %6, %c0_i32_1 : i32
    scf.if %7 {
      %c0 = arith.constant 0 : index
      %c0_3 = arith.constant 0 : index
      %11 = vector.load %arg12[%c0, %c0_3] : memref<256x128xf32, #tpu.memory_space<vmem>>, vector<256x128xf32>
      %c0_4 = arith.constant 0 : index
      %c0_5 = arith.constant 0 : index
      %c0_6 = arith.constant 0 : index
      %c0_7 = arith.constant 0 : index
      %12 = vector.load %arg4[%c0_4, %c0_5, %c0_6, %c0_7] : memref<1x1x256x256xbf16, #tpu.memory_space<vmem>>, vector<1x1x256x256xbf16>
      %13 = vector.shape_cast %12 : vector<1x1x256x256xbf16> to vector<256x256xbf16>
      %c0_8 = arith.constant 0 : index
      %c0_9 = arith.constant 0 : index
      %14 = vector.load %arg5[%c0_8, %c0_9] : memref<256x128xbf16, #tpu.memory_space<vmem>>, vector<256x128xbf16>
      %cst = arith.constant dense<0.000000e+00> : vector<256x128xf32>
      %15 = tpu.matmul %13, %14, %cst {dimension_numbers = #tpu.dot_dimension_numbers<[1], [0], [0], [1], [0, 0, 1, 1], [], []>} : vector<256x256xbf16>, vector<256x128xbf16>, vector<256x128xf32> -> vector<256x128xf32>
      %16 = arith.addf %11, %15 : vector<256x128xf32>
      %c0_10 = arith.constant 0 : index
      %c0_11 = arith.constant 0 : index
      %17 = vector.load %arg12[%c0_10, %c0_11] : memref<256x128xf32, #tpu.memory_space<vmem>>, vector<256x128xf32>
      tpu.vector_store %arg12[%c0_10, %c0_11], %16 {strides = array<i32>} : memref<256x128xf32, #tpu.memory_space<vmem>>, vector<256x128xf32>,
    } else {
    }
    %c1_i32 = arith.constant 1 : i32
    %8 = arith.cmpi eq, %arg1, %c1_i32 : i32
    %9 = arith.extui %8 : i1 to i32
    %c0_i32_2 = arith.constant 0 : i32
    %10 = arith.cmpi ne, %9, %c0_i32_2 : i32
    scf.if %10 {
      %c0 = arith.constant 0 : index
      %c0_3 = arith.constant 0 : index
      %11 = vector.load %arg12[%c0, %c0_3] : memref<256x128xf32, #tpu.memory_space<vmem>>, vector<256x128xf32>
      %c0_4 = arith.constant 0 : index
      %c0_5 = arith.constant 0 : index
      %12 = vector.load %arg6[%c0_4, %c0_5] : memref<256x1xf32, #tpu.memory_space<vmem>>, vector<256x1xf32>
      %13 = vector.broadcast %12 : vector<256x1xf32> to vector<256x128xf32>
      %14 = arith.mulf %11, %13 : vector<256x128xf32>
      %15 = arith.truncf %14 : vector<256x128xf32> to vector<256x128xbf16>
      %c0_6 = arith.constant 0 : index
      %c0_7 = arith.constant 0 : index
      %16 = vector.load %arg8[%c0_6, %c0_7] : memref<128x128xbf16, #tpu.memory_space<vmem>>, vector<128x128xbf16>
      %cst = arith.constant dense<0.000000e+00> : vector<256x128xf32>
      %17 = tpu.matmul %15, %16, %cst {dimension_numbers = #tpu.dot_dimension_numbers<[1], [0], [0], [1], [0, 0, 1, 1], [], []>} : vector<256x128xbf16>, vector<128x128xbf16>, vector<256x128xf32> -> vector<256x128xf32>
      %c0_8 = arith.constant 0 : index
      %c0_9 = arith.constant 0 : index
      %18 = vector.load %arg7[%c0_8, %c0_9] : memref<256x128xbf16, #tpu.memory_space<vmem>>, vector<256x128xbf16>
      %c0_10 = arith.constant 0 : index
      %c0_11 = arith.constant 0 : index
      %19 = vector.load %arg9[%c0_10, %c0_11] : memref<128x128xbf16, #tpu.memory_space<vmem>>, vector<128x128xbf16>
      %cst_12 = arith.constant dense<0.000000e+00> : vector<256x128xf32>
      %20 = tpu.matmul %18, %19, %cst_12 {dimension_numbers = #tpu.dot_dimension_numbers<[1], [0], [0], [1], [0, 0, 1, 1], [], []>} : vector<256x128xbf16>, vector<128x128xbf16>, vector<256x128xf32> -> vector<256x128xf32>
      %21 = arith.addf %17, %20 : vector<256x128xf32>
      %c0_13 = arith.constant 0 : index
      %c0_14 = arith.constant 0 : index
      %22 = vector.load %arg10[%c0_13, %c0_14] : memref<1x128xf32, #tpu.memory_space<vmem>>, vector<1x128xf32>
      %23 = vector.broadcast %22 : vector<1x128xf32> to vector<256x128xf32>
      %24 = arith.addf %21, %23 : vector<256x128xf32>
      %cst_15 = arith.constant dense<0xFF800000> : vector<256xf32>
      %25 = vector.multi_reduction <maximumf>, %24, %cst_15 [1] : vector<256x128xf32> to vector<256xf32>
      %26 = vector.shape_cast %25 : vector<256xf32> to vector<256x1xf32>
      %27 = vector.broadcast %26 : vector<256x1xf32> to vector<256x128xf32>
      %28 = arith.subf %24, %27 : vector<256x128xf32>
      %29 = math.exp %28 : vector<256x128xf32>
      %cst_16 = arith.constant dense<0.000000e+00> : vector<256xf32>
      %30 = vector.multi_reduction <add>, %29, %cst_16 [1] : vector<256x128xf32> to vector<256xf32>
      %31 = vector.shape_cast %30 : vector<256xf32> to vector<256x1xf32>
      %32 = math.log %31 : vector<256x1xf32>
      %33 = vector.broadcast %32 : vector<256x1xf32> to vector<256x128xf32>
      %34 = arith.subf %28, %33 : vector<256x128xf32>
      %c0_17 = arith.constant 0 : index
      %c0_18 = arith.constant 0 : index
      %35 = vector.load %arg11[%c0_17, %c0_18] : memref<256x128xf32, #tpu.memory_space<vmem>>, vector<256x128xf32>
      tpu.vector_store %arg11[%c0_17, %c0_18], %34 {strides = array<i32>} : memref<256x128xf32, #tpu.memory_space<vmem>>, vector<256x128xf32>,
    } else {
    }
    return
  }
  func.func @transform_0(%arg0: i32, %arg1: i32, %arg2: memref<2x2xi32, #tpu.memory_space<smem>>, %arg3: memref<2xi32, #tpu.memory_space<smem>>) -> (i32, i32, i32, i32) {
    %c0_i32 = arith.constant 0 : i32
    %c0_i32_0 = arith.constant 0 : i32
    %c0_i32_1 = arith.constant 0 : i32
    return %arg0, %arg1, %c0_i32, %c0_i32_0 : i32, i32, i32, i32
  }
  func.func @transform_1(%arg0: i32, %arg1: i32, %arg2: memref<2x2xi32, #tpu.memory_space<smem>>, %arg3: memref<2xi32, #tpu.memory_space<smem>>) -> (i32, i32) {
    %0 = arith.index_cast %arg0 : i32 to index
    %1 = arith.index_cast %arg1 : i32 to index
    %2 = memref.load %arg2[%0, %1] : memref<2x2xi32, #tpu.memory_space<smem>>
    %c0_i32 = arith.constant 0 : i32
    %c0_i32_0 = arith.constant 0 : i32
    return %2, %c0_i32 : i32, i32
  }
  func.func @transform_2(%arg0: i32, %arg1: i32, %arg2: memref<2x2xi32, #tpu.memory_space<smem>>, %arg3: memref<2xi32, #tpu.memory_space<smem>>) -> (i32, i32) {
    %c0_i32 = arith.constant 0 : i32
    %c0_i32_0 = arith.constant 0 : i32
    return %arg0, %c0_i32 : i32, i32
  }
  func.func @transform_3(%arg0: i32, %arg1: i32, %arg2: memref<2x2xi32, #tpu.memory_space<smem>>, %arg3: memref<2xi32, #tpu.memory_space<smem>>) -> (i32, i32) {
    %c0_i32 = arith.constant 0 : i32
    %c0_i32_0 = arith.constant 0 : i32
    return %arg0, %c0_i32 : i32, i32
  }
  func.func @transform_4(%arg0: i32, %arg1: i32, %arg2: memref<2x2xi32, #tpu.memory_space<smem>>, %arg3: memref<2xi32, #tpu.memory_space<smem>>) -> (i32, i32) {
    %c0_i32 = arith.constant 0 : i32
    %c0_i32_0 = arith.constant 0 : i32
    %c0_i32_1 = arith.constant 0 : i32
    return %c0_i32, %c0_i32_0 : i32, i32
  }
  func.func @transform_5(%arg0: i32, %arg1: i32, %arg2: memref<2x2xi32, #tpu.memory_space<smem>>, %arg3: memref<2xi32, #tpu.memory_space<smem>>) -> (i32, i32) {
    %c0_i32 = arith.constant 0 : i32
    %c0_i32_0 = arith.constant 0 : i32
    %c0_i32_1 = arith.constant 0 : i32
    return %c0_i32, %c0_i32_0 : i32, i32
  }
  func.func @transform_6(%arg0: i32, %arg1: i32, %arg2: memref<2x2xi32, #tpu.memory_space<smem>>, %arg3: memref<2xi32, #tpu.memory_space<smem>>) -> (i32, i32) {
    %c0_i32 = arith.constant 0 : i32
    %c0_i32_0 = arith.constant 0 : i32
    %c0_i32_1 = arith.constant 0 : i32
    return %c0_i32, %c0_i32_0 : i32, i32
  }
  func.func @transform_7(%arg0: i32, %arg1: i32, %arg2: memref<2x2xi32, #tpu.memory_space<smem>>, %arg3: memref<2xi32, #tpu.memory_space<smem>>) -> (i32, i32) {
    %c0_i32 = arith.constant 0 : i32
    %c0_i32_0 = arith.constant 0 : i32
    return %arg0, %c0_i32 : i32, i32
  }
}

module attributes {stable_mosaic.version = 11 : i64} {
  func.func @sage_block_sparse_kernel(%arg0: i32, %arg1: i32, %arg2: memref<2x2xi32, #tpu.memory_space<smem>>, %arg3: memref<2xi32, #tpu.memory_space<smem>>, %arg4: memref<1x1x256x256xbf16, #tpu.memory_space<vmem>>, %arg5: memref<256x128xbf16, #tpu.memory_space<vmem>>, %arg6: memref<256x1xf32, #tpu.memory_space<vmem>>, %arg7: memref<256x128xbf16, #tpu.memory_space<vmem>>, %arg8: memref<128x128xbf16, #tpu.memory_space<vmem>>, %arg9: memref<128x128xbf16, #tpu.memory_space<vmem>>, %arg10: memref<1x128xf32, #tpu.memory_space<vmem>>, %arg11: memref<256x128xbf16, #tpu.memory_space<vmem>>, %arg12: memref<256x128xf32, #tpu.memory_space<vmem>>) attributes {dimension_semantics = [#tpu.dimension_semantics<parallel>, #tpu.dimension_semantics<arbitrary>], iteration_bounds = array<i64: 2, 2>, scalar_prefetch = 2 : i64, scratch_operands = 1 : i64, tpu.core_type = #tpu.core_type<tc>, window_params = [{transform_indices = @transform_0, window_bounds = array<i64: 1, 1, 256, 256>}, {transform_indices = @transform_1, window_bounds = array<i64: 256, 128>}, {transform_indices = @transform_2, window_bounds = array<i64: 256, 1>}, {transform_indices = @transform_3, window_bounds = array<i64: 256, 128>}, {pipeline_mode = #tpu.pipeline_mode<synchronous>, transform_indices = @transform_4, window_bounds = array<i64: 128, 128>}, {pipeline_mode = #tpu.pipeline_mode<synchronous>, transform_indices = @transform_5, window_bounds = array<i64: 128, 128>}, {pipeline_mode = #tpu.pipeline_mode<synchronous>, transform_indices = @transform_6, window_bounds = array<i64: 1, 128>}, {transform_indices = @transform_7, window_bounds = array<i64: 256, 128>}]} {
    %c0_i32 = arith.constant 0 : i32
    %0 = arith.cmpi eq, %arg1, %c0_i32 : i32
    %1 = arith.extui %0 : i1 to i32
    %c0_i32_0 = arith.constant 0 : i32
    %2 = arith.cmpi ne, %1, %c0_i32_0 : i32
    scf.if %2 {
      %cst = arith.constant 0.000000e+00 : f32
      %11 = vector.broadcast %cst : f32 to vector<256x128xf32>
      %c0 = arith.constant 0 : index
      %c0_3 = arith.constant 0 : index
      %12 = vector.load %arg12[%c0, %c0_3] : memref<256x128xf32, #tpu.memory_space<vmem>>, vector<256x128xf32>
      tpu.vector_store %arg12[%c0, %c0_3], %11 {strides = array<i32>} : memref<256x128xf32, #tpu.memory_space<vmem>>, vector<256x128xf32>,
    } else {
    }
    %3 = arith.index_cast %arg0 : i32 to index
    %4 = memref.load %arg3[%3] : memref<2xi32, #tpu.memory_space<smem>>
    %5 = arith.cmpi slt, %arg1, %4 : i32
    %6 = arith.extui %5 : i1 to i32
    %c0_i32_1 = arith.constant 0 : i32
    %7 = arith.cmpi ne, %6, %c0_i32_1 : i32
    scf.if %7 {
      %c0 = arith.constant 0 : index
      %c0_3 = arith.constant 0 : index
      %11 = vector.load %arg12[%c0, %c0_3] : memref<256x128xf32, #tpu.memory_space<vmem>>, vector<256x128xf32>
      %c0_4 = arith.constant 0 : index
      %c0_5 = arith.constant 0 : index
      %c0_6 = arith.constant 0 : index
      %c0_7 = arith.constant 0 : index
      %12 = vector.load %arg4[%c0_4, %c0_5, %c0_6, %c0_7] : memref<1x1x256x256xbf16, #tpu.memory_space<vmem>>, vector<1x1x256x256xbf16>
      %13 = vector.shape_cast %12 : vector<1x1x256x256xbf16> to vector<256x256xbf16>
      %c0_8 = arith.constant 0 : index
      %c0_9 = arith.constant 0 : index
      %14 = vector.load %arg5[%c0_8, %c0_9] : memref<256x128xbf16, #tpu.memory_space<vmem>>, vector<256x128xbf16>
      %cst = arith.constant dense<0.000000e+00> : vector<256x128xf32>
      %15 = tpu.matmul %13, %14, %cst {dimension_numbers = #tpu.dot_dimension_numbers<[1], [0], [0], [1], [0, 0, 1, 1], [], []>} : vector<256x256xbf16>, vector<256x128xbf16>, vector<256x128xf32> -> vector<256x128xf32>
      %16 = arith.addf %11, %15 : vector<256x128xf32>
      %c0_10 = arith.constant 0 : index
      %c0_11 = arith.constant 0 : index
      %17 = vector.load %arg12[%c0_10, %c0_11] : memref<256x128xf32, #tpu.memory_space<vmem>>, vector<256x128xf32>
      tpu.vector_store %arg12[%c0_10, %c0_11], %16 {strides = array<i32>} : memref<256x128xf32, #tpu.memory_space<vmem>>, vector<256x128xf32>,
    } else {
    }
    %c1_i32 = arith.constant 1 : i32
    %8 = arith.cmpi eq, %arg1, %c1_i32 : i32
    %9 = arith.extui %8 : i1 to i32
    %c0_i32_2 = arith.constant 0 : i32
    %10 = arith.cmpi ne, %9, %c0_i32_2 : i32
    scf.if %10 {
      %c0 = arith.constant 0 : index
      %c0_3 = arith.constant 0 : index
      %11 = vector.load %arg12[%c0, %c0_3] : memref<256x128xf32, #tpu.memory_space<vmem>>, vector<256x128xf32>
      %c0_4 = arith.constant 0 : index
      %c0_5 = arith.constant 0 : index
      %12 = vector.load %arg6[%c0_4, %c0_5] : memref<256x1xf32, #tpu.memory_space<vmem>>, vector<256x1xf32>
      %13 = vector.broadcast %12 : vector<256x1xf32> to vector<256x128xf32>
      %14 = arith.mulf %11, %13 : vector<256x128xf32>
      %15 = arith.truncf %14 : vector<256x128xf32> to vector<256x128xbf16>
      %c0_6 = arith.constant 0 : index
      %c0_7 = arith.constant 0 : index
      %16 = vector.load %arg8[%c0_6, %c0_7] : memref<128x128xbf16, #tpu.memory_space<vmem>>, vector<128x128xbf16>
      %cst = arith.constant dense<0.000000e+00> : vector<256x128xf32>
      %17 = tpu.matmul %15, %16, %cst {dimension_numbers = #tpu.dot_dimension_numbers<[1], [0], [0], [1], [0, 0, 1, 1], [], []>} : vector<256x128xbf16>, vector<128x128xbf16>, vector<256x128xf32> -> vector<256x128xf32>
      %c0_8 = arith.constant 0 : index
      %c0_9 = arith.constant 0 : index
      %18 = vector.load %arg7[%c0_8, %c0_9] : memref<256x128xbf16, #tpu.memory_space<vmem>>, vector<256x128xbf16>
      %c0_10 = arith.constant 0 : index
      %c0_11 = arith.constant 0 : index
      %19 = vector.load %arg9[%c0_10, %c0_11] : memref<128x128xbf16, #tpu.memory_space<vmem>>, vector<128x128xbf16>
      %cst_12 = arith.constant dense<0.000000e+00> : vector<256x128xf32>
      %20 = tpu.matmul %18, %19, %cst_12 {dimension_numbers = #tpu.dot_dimension_numbers<[1], [0], [0], [1], [0, 0, 1, 1], [], []>} : vector<256x128xbf16>, vector<128x128xbf16>, vector<256x128xf32> -> vector<256x128xf32>
      %21 = arith.addf %17, %20 : vector<256x128xf32>
      %c0_13 = arith.constant 0 : index
      %c0_14 = arith.constant 0 : index
      %22 = vector.load %arg10[%c0_13, %c0_14] : memref<1x128xf32, #tpu.memory_space<vmem>>, vector<1x128xf32>
      %23 = vector.broadcast %22 : vector<1x128xf32> to vector<256x128xf32>
      %24 = arith.addf %21, %23 : vector<256x128xf32>
      %cst_15 = arith.constant 0.000000e+00 : f32
      %25 = vector.broadcast %cst_15 : f32 to vector<256x128xf32>
      %26 = arith.maximumf %24, %25 : vector<256x128xf32>
      %27 = arith.truncf %26 : vector<256x128xf32> to vector<256x128xbf16>
      %c0_16 = arith.constant 0 : index
      %c0_17 = arith.constant 0 : index
      %28 = vector.load %arg11[%c0_16, %c0_17] : memref<256x128xbf16, #tpu.memory_space<vmem>>, vector<256x128xbf16>
      tpu.vector_store %arg11[%c0_16, %c0_17], %27 {strides = array<i32>} : memref<256x128xbf16, #tpu.memory_space<vmem>>, vector<256x128xbf16>,
    } else {
    }
    return
  }
  func.func @transform_0(%arg0: i32, %arg1: i32, %arg2: memref<2x2xi32, #tpu.memory_space<smem>>, %arg3: memref<2xi32, #tpu.memory_space<smem>>) -> (i32, i32, i32, i32) {
    %c0_i32 = arith.constant 0 : i32
    %c0_i32_0 = arith.constant 0 : i32
    %c0_i32_1 = arith.constant 0 : i32
    return %arg0, %arg1, %c0_i32, %c0_i32_0 : i32, i32, i32, i32
  }
  func.func @transform_1(%arg0: i32, %arg1: i32, %arg2: memref<2x2xi32, #tpu.memory_space<smem>>, %arg3: memref<2xi32, #tpu.memory_space<smem>>) -> (i32, i32) {
    %0 = arith.index_cast %arg0 : i32 to index
    %1 = arith.index_cast %arg1 : i32 to index
    %2 = memref.load %arg2[%0, %1] : memref<2x2xi32, #tpu.memory_space<smem>>
    %c0_i32 = arith.constant 0 : i32
    %c0_i32_0 = arith.constant 0 : i32
    return %2, %c0_i32 : i32, i32
  }
  func.func @transform_2(%arg0: i32, %arg1: i32, %arg2: memref<2x2xi32, #tpu.memory_space<smem>>, %arg3: memref<2xi32, #tpu.memory_space<smem>>) -> (i32, i32) {
    %c0_i32 = arith.constant 0 : i32
    %c0_i32_0 = arith.constant 0 : i32
    return %arg0, %c0_i32 : i32, i32
  }
  func.func @transform_3(%arg0: i32, %arg1: i32, %arg2: memref<2x2xi32, #tpu.memory_space<smem>>, %arg3: memref<2xi32, #tpu.memory_space<smem>>) -> (i32, i32) {
    %c0_i32 = arith.constant 0 : i32
    %c0_i32_0 = arith.constant 0 : i32
    return %arg0, %c0_i32 : i32, i32
  }
  func.func @transform_4(%arg0: i32, %arg1: i32, %arg2: memref<2x2xi32, #tpu.memory_space<smem>>, %arg3: memref<2xi32, #tpu.memory_space<smem>>) -> (i32, i32) {
    %c0_i32 = arith.constant 0 : i32
    %c0_i32_0 = arith.constant 0 : i32
    %c0_i32_1 = arith.constant 0 : i32
    return %c0_i32, %c0_i32_0 : i32, i32
  }
  func.func @transform_5(%arg0: i32, %arg1: i32, %arg2: memref<2x2xi32, #tpu.memory_space<smem>>, %arg3: memref<2xi32, #tpu.memory_space<smem>>) -> (i32, i32) {
    %c0_i32 = arith.constant 0 : i32
    %c0_i32_0 = arith.constant 0 : i32
    %c0_i32_1 = arith.constant 0 : i32
    return %c0_i32, %c0_i32_0 : i32, i32
  }
  func.func @transform_6(%arg0: i32, %arg1: i32, %arg2: memref<2x2xi32, #tpu.memory_space<smem>>, %arg3: memref<2xi32, #tpu.memory_space<smem>>) -> (i32, i32) {
    %c0_i32 = arith.constant 0 : i32
    %c0_i32_0 = arith.constant 0 : i32
    %c0_i32_1 = arith.constant 0 : i32
    return %c0_i32, %c0_i32_0 : i32, i32
  }
  func.func @transform_7(%arg0: i32, %arg1: i32, %arg2: memref<2x2xi32, #tpu.memory_space<smem>>, %arg3: memref<2xi32, #tpu.memory_space<smem>>) -> (i32, i32) {
    %c0_i32 = arith.constant 0 : i32
    %c0_i32_0 = arith.constant 0 : i32
    return %arg0, %c0_i32 : i32, i32
  }
}

</mosaic_0001>

<llo_original>
// kernel: graphsage_forward.2
$region0: #{graphsage_forward.2}
  #allocation0 [shape = 'u32[]', space=smem, size = 0x4, offset = 0x4, fixed_abs, tag = 'smem constant byte address 0x4 - core index']
  #allocation1 [shape = 'u32[144,128]{1,0:T(1,128)}', space=vmem, size = 0x12000, scoped, tag = 'internal scratch']
  #allocation2 [shape = 'f32[256,128]{1,0:T(8,128)}', space=vmem, size = 0x20000, scoped, tag = 'scratch operand']
  #allocation3 [shape = 's32[1]{0}', space=sflag, size = 0x4, scoped, tag = 'scoped memory for graphsage_forward.2']
  #allocation4 [shape = 'u8[1024]{0}', space=smem, size = 0x400, scoped, tag = 'prefetched SMEM operand 0']
  #allocation5 [shape = 'u8[512]{0}', space=smem, size = 0x200, scoped, tag = 'prefetched SMEM operand 1']
  %s0 = inlined_call_operand.vmem [shape: s32[2,2], index: 0, kind: input, shape index: {}]
  %s1 = inlined_call_operand.vmem [shape: s32[2], index: 1, kind: input, shape index: {}]
  %s2 = inlined_call_operand.vmem [shape: bf16[2,2,256,256], index: 2, kind: input, shape index: {}]
  %s3 = inlined_call_operand.vmem [shape: bf16[512,128], index: 3, kind: input, shape index: {}, may-alias: {3,5}]
  %s4 = inlined_call_operand.vmem [shape: f32[512,1], index: 4, kind: input, shape index: {}]
  %s5 = inlined_call_operand.vmem [shape: bf16[512,128], index: 5, kind: input, shape index: {}, may-alias: {3,5}]
  %s6 = inlined_call_operand.vmem [shape: bf16[128,128], index: 6, kind: input, shape index: {}]
  %s7 = inlined_call_operand.vmem [shape: bf16[128,128], index: 7, kind: input, shape index: {}]
  %s8 = inlined_call_operand.vmem [shape: f32[1,128], index: 8, kind: input, shape index: {}]
  %s9 = inlined_call_operand.vmem [shape: bf16[512,128], index: 9, kind: output, shape index: {}]
  %s10 = sld [smem:[#allocation0]]
  $region73: #{graphsage_forward.2} parent=0
    _
  %s12 = ssub.s32 1, %s10
  %s13 = scalar_select 0, %s12, %s10
  %s14 = sshll.u32 %s0, 4
  %s15 = int_to_ptr.vmem [resolvable:$true] %s14
  %17 = dma.vmem_to_smem %s15, 32, [#allocation4], [#allocation3]
  %s18 = sshll.u32 %s1, 4
  %s19 = int_to_ptr.vmem [resolvable:$true] %s18
  %21 = dma.vmem_to_smem %s19, 16, [#allocation5], [#allocation3]
  %22 = dma.done [#allocation3], 48
  %23 = sfence
  loop: start=0, step=1, limit=6
  $region2: #{graphsage_forward.2} parent=0 // loop_pre_header
    _
  $region3: #{graphsage_forward.2} parent=0 // loop_header
    %s25 = sphi 0, %s29
    %p26 = scmp.ge.s32.totalorder %s25, 6
    %s32 = sphi 0, %s44
    %s33 = sphi 0, %s40
    %s34 = sphi 0, %s32
    %s35 = sphi 0, %s33
    %s36 = sphi 0, %s34
    %s37 = sphi 0, %s35
    %s49 = sphi 0, %s51
    %s52 = sphi 0, %s49
    %s53 = sphi 0, %s52
    %s69 = sphi 0, %s53
    %s91 = sphi 0, %s93
    %s94 = sphi 0, %s91
    %s95 = sphi 0, %s94
    %s111 = sphi 0, %s95
    %s117 = sphi 0, %s119
    %s120 = sphi 0, %s117
    %s121 = sphi 0, %s120
    %s137 = sphi 0, %s121
    %s143 = sphi 0, %s145
    %s146 = sphi 0, %s143
    %s147 = sphi 0, %s146
    %s163 = sphi 0, %s147
    %s167 = sphi 0, %s167
    %s169 = sphi 0, %s167
    %s170 = sphi 0, %s169
    %s184 = sphi 0, %s170
    %s188 = sphi 0, %s188
    %s190 = sphi 0, %s188
    %s191 = sphi 0, %s190
    %s205 = sphi 0, %s191
    %s209 = sphi 0, %s209
    %s211 = sphi 0, %s209
    %s212 = sphi 0, %s211
    %s226 = sphi 0, %s212
    %s232 = sphi 0, %s234
    %s235 = sphi 0, %s232
    %s236 = sphi 0, %s235
    %s252 = sphi 0, %s236
  $region4: #{graphsage_forward.2} parent=0 // loop_header_branch
    %28 = sbr.rel (%p26) target = $region8
  $region5: #{graphsage_forward.2} parent=0 // loop_body
    %s30 = ssub.s32 %s25, 1
    %s31 = ssub.s32 %s25, 2
    %s38 = sadd.s32 1, %s33
    %p39 = scmp.ge.s32.totalorder %s38, 2
    %s40 = scalar_select %p39, 0, %s38
    %s41 = sadd.s32 1, %s32
    %s42 = scalar_select %p39, %s41, %s32
    %p43 = scmp.ge.s32.totalorder %s42, 2
    %s44 = scalar_select %p43, 0, %s42
    %s45 = ssub.s32 %s32, %s44
    %s46 = ssub.s32 %s33, %s40
    %s47 = sor.u32 %s45, %s46
    %p48 = scmp.eq.s32.totalorder %s47, 0
    %s50 = sadd.s32 %s49, 1
    %s51 = scalar_select %p48, %s49, %s50
    %p54 = pneg %p48
    %p55 = scmp.eq.s32.totalorder %s25, 3
    %p56 = por %p54, %p55
    %p57 = scmp.ne.s32.totalorder %s49, %s52
    %p58 = scmp.eq.s32.totalorder %s25, 0
    %p59 = por %p57, %p58
    %p60 = scmp.ne.s32.totalorder %s49, %s52
    %p61 = scmp.eq.s32.totalorder %s30, 3
    %p62 = por %p60, %p61
    %p63 = scmp.ne.s32.totalorder %s52, %s53
    %p64 = scmp.eq.s32.totalorder %s30, 0
    %p65 = por %p63, %p64
    %p66 = scmp.ne.s32.totalorder %s52, %s53
    %p67 = scmp.eq.s32.totalorder %s31, 3
    %p68 = por %p66, %p67
    %p70 = scmp.ne.s32.totalorder %s53, %s69
    %p71 = scmp.eq.s32.totalorder %s31, 0
    %p72 = por %p70, %p71
    %s73 = sshra.s32 %s33, 7
    %s74 = sand.u32 %s33, 127
    %s75 = sadd.s32 %s73, %s32
    %s76 = smul.u32 %s75, 128
    %s77 = sshra.s32 %s33, 7
    %s78 = sand.u32 %s33, 127
    %s79 = sadd.s32 %s76, %s78
    %s80 = sld [smem:[#allocation4 + %s79]]
    %s81 = sshra.s32 %s40, 7
    %s82 = sand.u32 %s40, 127
    %s83 = sadd.s32 %s81, %s44
    %s84 = smul.u32 %s83, 128
    %s85 = sshra.s32 %s40, 7
    %s86 = sand.u32 %s40, 127
    %s87 = sadd.s32 %s84, %s86
    %s88 = sld [smem:[#allocation4 + %s87]]
    %s89 = ssub.s32 %s80, %s88
    %p90 = scmp.eq.s32.totalorder %s89, 0
    %s92 = sadd.s32 %s91, 1
    %s93 = scalar_select %p90, %s91, %s92
    %p96 = pneg %p90
    %p97 = scmp.eq.s32.totalorder %s25, 3
    %p98 = por %p96, %p97
    %p99 = scmp.ne.s32.totalorder %s91, %s94
    %p100 = scmp.eq.s32.totalorder %s25, 0
    %p101 = por %p99, %p100
    %p102 = scmp.ne.s32.totalorder %s91, %s94
    %p103 = scmp.eq.s32.totalorder %s30, 3
    %p104 = por %p102, %p103
    %p105 = scmp.ne.s32.totalorder %s94, %s95
    %p106 = scmp.eq.s32.totalorder %s30, 0
    %p107 = por %p105, %p106
    %p108 = scmp.ne.s32.totalorder %s94, %s95
    %p109 = scmp.eq.s32.totalorder %s31, 3
    %p110 = por %p108, %p109
    %p112 = scmp.ne.s32.totalorder %s95, %s111
    %p113 = scmp.eq.s32.totalorder %s31, 0
    %p114 = por %p112, %p113
    %s115 = ssub.s32 %s32, %s44
    %p116 = scmp.eq.s32.totalorder %s115, 0
    %s118 = sadd.s32 %s117, 1
    %s119 = scalar_select %p116, %s117, %s118
    %p122 = pneg %p116
    %p123 = scmp.eq.s32.totalorder %s25, 3
    %p124 = por %p122, %p123
    %p125 = scmp.ne.s32.totalorder %s117, %s120
    %p126 = scmp.eq.s32.totalorder %s25, 0
    %p127 = por %p125, %p126
    %p128 = scmp.ne.s32.totalorder %s117, %s120
    %p129 = scmp.eq.s32.totalorder %s30, 3
    %p130 = por %p128, %p129
    %p131 = scmp.ne.s32.totalorder %s120, %s121
    %p132 = scmp.eq.s32.totalorder %s30, 0
    %p133 = por %p131, %p132
    %p134 = scmp.ne.s32.totalorder %s120, %s121
    %p135 = scmp.eq.s32.totalorder %s31, 3
    %p136 = por %p134, %p135
    %p138 = scmp.ne.s32.totalorder %s121, %s137
    %p139 = scmp.eq.s32.totalorder %s31, 0
    %p140 = por %p138, %p139
    %s141 = ssub.s32 %s32, %s44
    %p142 = scmp.eq.s32.totalorder %s141, 0
    %s144 = sadd.s32 %s143, 1
    %s145 = scalar_select %p142, %s143, %s144
    %p148 = pneg %p142
    %p149 = scmp.eq.s32.totalorder %s25, 3
    %p150 = por %p148, %p149
    %p151 = scmp.ne.s32.totalorder %s143, %s146
    %p152 = scmp.eq.s32.totalorder %s25, 0
    %p153 = por %p151, %p152
    %p154 = scmp.ne.s32.totalorder %s143, %s146
    %p155 = scmp.eq.s32.totalorder %s30, 3
    %p156 = por %p154, %p155
    %p157 = scmp.ne.s32.totalorder %s146, %s147
    %p158 = scmp.eq.s32.totalorder %s30, 0
    %p159 = por %p157, %p158
    %p160 = scmp.ne.s32.totalorder %s146, %s147
    %p161 = scmp.eq.s32.totalorder %s31, 3
    %p162 = por %p160, %p161
    %p164 = scmp.ne.s32.totalorder %s147, %s163
    %p165 = scmp.eq.s32.totalorder %s31, 0
    %p166 = por %p164, %p165
    %s168 = sadd.s32 %s167, 1
    %p171 = scmp.eq.s32.totalorder %s25, 3
    %p172 = scmp.ne.s32.totalorder %s167, %s169
    %p173 = scmp.eq.s32.totalorder %s25, 0
    %p174 = por %p172, %p173
    %p175 = scmp.ne.s32.totalorder %s167, %s169
    %p176 = scmp.eq.s32.totalorder %s30, 3
    %p177 = por %p175, %p176
    %p178 = scmp.ne.s32.totalorder %s169, %s170
    %p179 = scmp.eq.s32.totalorder %s30, 0
    %p180 = por %p178, %p179
    %p181 = scmp.ne.s32.totalorder %s169, %s170
    %p182 = scmp.eq.s32.totalorder %s31, 3
    %p183 = por %p181, %p182
    %p185 = scmp.ne.s32.totalorder %s170, %s184
    %p186 = scmp.eq.s32.totalorder %s31, 0
    %p187 = por %p185, %p186
    %s189 = sadd.s32 %s188, 1
    %p192 = scmp.eq.s32.totalorder %s25, 3
    %p193 = scmp.ne.s32.totalorder %s188, %s190
    %p194 = scmp.eq.s32.totalorder %s25, 0
    %p195 = por %p193, %p194
    %p196 = scmp.ne.s32.totalorder %s188, %s190
    %p197 = scmp.eq.s32.totalorder %s30, 3
    %p198 = por %p196, %p197
    %p199 = scmp.ne.s32.totalorder %s190, %s191
    %p200 = scmp.eq.s32.totalorder %s30, 0
    %p201 = por %p199, %p200
    %p202 = scmp.ne.s32.totalorder %s190, %s191
    %p203 = scmp.eq.s32.totalorder %s31, 3
    %p204 = por %p202, %p203
    %p206 = scmp.ne.s32.totalorder %s191, %s205
    %p207 = scmp.eq.s32.totalorder %s31, 0
    %p208 = por %p206, %p207
    %s210 = sadd.s32 %s209, 1
    %p213 = scmp.eq.s32.totalorder %s25, 3
    %p214 = scmp.ne.s32.totalorder %s209, %s211
    %p215 = scmp.eq.s32.totalorder %s25, 0
    %p216 = por %p214, %p215
    %p217 = scmp.ne.s32.totalorder %s209, %s211
    %p218 = scmp.eq.s32.totalorder %s30, 3
    %p219 = por %p217, %p218
    %p220 = scmp.ne.s32.totalorder %s211, %s212
    %p221 = scmp.eq.s32.totalorder %s30, 0
    %p222 = por %p220, %p221
    %p223 = scmp.ne.s32.totalorder %s211, %s212
    %p224 = scmp.eq.s32.totalorder %s31, 3
    %p225 = por %p223, %p224
    %p227 = scmp.ne.s32.totalorder %s212, %s226
    %p228 = scmp.eq.s32.totalorder %s31, 0
    %p229 = por %p227, %p228
    %s230 = ssub.s32 %s32, %s44
    %p231 = scmp.eq.s32.totalorder %s230, 0
    %s233 = sadd.s32 %s232, 1
    %s234 = scalar_select %p231, %s232, %s233
    %p237 = pneg %p231
    %p238 = scmp.eq.s32.totalorder %s25, 3
    %p239 = por %p237, %p238
    %p240 = scmp.ne.s32.totalorder %s232, %s235
    %p241 = scmp.eq.s32.totalorder %s25, 0
    %p242 = por %p240, %p241
    %p243 = scmp.ne.s32.totalorder %s232, %s235
    %p244 = scmp.eq.s32.totalorder %s30, 3
    %p245 = por %p243, %p244
    %p246 = scmp.ne.s32.totalorder %s235, %s236
    %p247 = scmp.eq.s32.totalorder %s30, 0
    %p248 = por %p246, %p247
    %p249 = scmp.ne.s32.totalorder %s235, %s236
    %p250 = scmp.eq.s32.totalorder %s31, 3
    %p251 = por %p249, %p250
    %p253 = scmp.ne.s32.totalorder %s236, %s252
    %p254 = scmp.eq.s32.totalorder %s31, 0
    %p255 = por %p253, %p254
    %p256 = scmp.le.s32.totalorder 1, %s25
    %p257 = scmp.lt.s32.totalorder %s25, 5
    %p258 = pnand %p256, %p257
    %p259 = pneg %p258
    // Predicated region
    $region9: #{graphsage_forward.2} parent=5 // pred_check
      _
    $region10: #{graphsage_forward.2} parent=5 // pred_check_branch
      %261 = sbr.rel (%p258) target = $region12
    $region11: #{graphsage_forward.2} parent=5 // pred_region
      %s262 = ssub.s32 %s25, 1
      // Predicated region
      $region13: #{graphsage_forward.2} parent=11 // pred_check
        %p263 = pneg %p180
      $region14: #{graphsage_forward.2} parent=11 // pred_check_branch
        %265 = sbr.rel (%p263) target = $region16
      $region15: #{graphsage_forward.2} parent=11 // pred_region
        _
      $region16: #{graphsage_forward.2} parent=11 // pred_fallthru
        _
      // Predicated region
      $region17: #{graphsage_forward.2} parent=11 // pred_check
        %p266 = pneg %p201
      $region18: #{graphsage_forward.2} parent=11 // pred_check_branch
        %268 = sbr.rel (%p266) target = $region20
      $region19: #{graphsage_forward.2} parent=11 // pred_region
        _
      $region20: #{graphsage_forward.2} parent=11 // pred_fallthru
        _
      // Predicated region
      $region21: #{graphsage_forward.2} parent=11 // pred_check
        %p269 = pneg %p222
      $region22: #{graphsage_forward.2} parent=11 // pred_check_branch
        %271 = sbr.rel (%p269) target = $region24
      $region23: #{graphsage_forward.2} parent=11 // pred_region
        _
      $region24: #{graphsage_forward.2} parent=11 // pred_fallthru
        _
    $region12: #{graphsage_forward.2} parent=5 // pred_fallthru
      _
    %p272 = scmp.lt.s32.totalorder %s25, 4
    // Predicated region
    $region25: #{graphsage_forward.2} parent=5 // pred_check
      %p273 = pneg %p272
    $region26: #{graphsage_forward.2} parent=5 // pred_check_branch
      %275 = sbr.rel (%p273) target = $region28
    $region27: #{graphsage_forward.2} parent=5 // pred_region
      // Predicated region
      $region29: #{graphsage_forward.2} parent=27 // pred_check
        %p276 = pneg %p59
      $region30: #{graphsage_forward.2} parent=27 // pred_check_branch
        %278 = sbr.rel (%p276) target = $region32
      $region31: #{graphsage_forward.2} parent=27 // pred_region
        %p279 = scmp.lt.s32.totalorder %s32, 1
        %s280 = scalar_select %p279, %s32, 1
        %p281 = scmp.lt.s32.totalorder %s33, 1
        %s282 = scalar_select %p281, %s33, 1
        %s283 = smul.addr %s282, 64
        %s284 = smul.addr %s280, 128
        %s285 = sadd.s32 %s283, %s284
        %s286 = smul.addr %s285, 4
        %s287 = scalar_lea.vmem %s2, %s286
      $region32: #{graphsage_forward.2} parent=27 // pred_fallthru
        _
      // Predicated region
      $region33: #{graphsage_forward.2} parent=27 // pred_check
        %p288 = pneg %p101
      $region34: #{graphsage_forward.2} parent=27 // pred_check_branch
        %290 = sbr.rel (%p288) target = $region36
      $region35: #{graphsage_forward.2} parent=27 // pred_region
        %s291 = sshra.s32 %s33, 7
        %s292 = sand.u32 %s33, 127
        %s293 = sadd.s32 %s291, %s32
        %s294 = smul.u32 %s293, 128
        %s295 = sshra.s32 %s33, 7
        %s296 = sand.u32 %s33, 127
        %s297 = sadd.s32 %s294, %s296
        %s298 = sld [smem:[#allocation4 + %s297]]
        %s299 = smul.u32 32, %s298
        %p300 = scmp.lt.s32.totalorder %s299, 63
        %s301 = scalar_select %p300, %s299, 63
        %s302 = smul.addr %s301, 4
        %s303 = scalar_lea.vmem %s3, %s302
        %s304 = sshra.s32 %s33, 7
        %s305 = sand.u32 %s33, 127
        %s306 = sadd.s32 %s304, %s32
        %s307 = smul.u32 %s306, 128
        %s308 = sshra.s32 %s33, 7
        %s309 = sand.u32 %s33, 127
        %s310 = sadd.s32 %s307, %s309
        %s311 = sld [smem:[#allocation4 + %s310]]
        %s312 = smul.u32 32, %s311
      $region36: #{graphsage_forward.2} parent=27 // pred_fallthru
        _
      // Predicated region
      $region37: #{graphsage_forward.2} parent=27 // pred_check
        %p313 = pneg %p127
      $region38: #{graphsage_forward.2} parent=27 // pred_check_branch
        %315 = sbr.rel (%p313) target = $region40
      $region39: #{graphsage_forward.2} parent=27 // pred_region
        %s316 = smul.u32 32, %s32
        %p317 = scmp.lt.s32.totalorder %s316, 63
        %s318 = scalar_select %p317, %s316, 63
        %s319 = smul.addr %s318, 8
        %s320 = scalar_lea.vmem %s4, %s319
        %s321 = smul.u32 32, %s32
      $region40: #{graphsage_forward.2} parent=27 // pred_fallthru
        _
      // Predicated region
      $region41: #{graphsage_forward.2} parent=27 // pred_check
        %p322 = pneg %p153
      $region42: #{graphsage_forward.2} parent=27 // pred_check_branch
        %324 = sbr.rel (%p322) target = $region44
      $region43: #{graphsage_forward.2} parent=27 // pred_region
        %s325 = smul.u32 32, %s32
        %p326 = scmp.lt.s32.totalorder %s325, 63
        %s327 = scalar_select %p326, %s325, 63
        %s328 = smul.addr %s327, 4
        %s329 = scalar_lea.vmem %s5, %s328
        %s330 = smul.u32 32, %s32
      $region44: #{graphsage_forward.2} parent=27 // pred_fallthru
        _
    $region28: #{graphsage_forward.2} parent=5 // pred_fallthru
      _
    %p331 = scmp.le.s32.totalorder 1, %s25
    %p332 = scmp.lt.s32.totalorder %s25, 5
    %p333 = pnand %p331, %p332
    %p334 = pneg %p333
    // Predicated region
    $region45: #{graphsage_forward.2} parent=5 // pred_check
      _
    $region46: #{graphsage_forward.2} parent=5 // pred_check_branch
      %336 = sbr.rel (%p333) target = $region48
    $region47: #{graphsage_forward.2} parent=5 // pred_region
      %s337 = ssub.s32 %s25, 1
      %p338 = scmp.lt.s32.totalorder %s34, 1
      %s339 = scalar_select %p338, %s34, 1
      %p340 = scmp.lt.s32.totalorder %s35, 1
      %s341 = scalar_select %p340, %s35, 1
      %s342 = smul.addr %s341, 64
      %s343 = smul.addr %s339, 128
      %s344 = sadd.s32 %s342, %s343
      %s345 = smul.addr %s344, 4
      %s346 = scalar_lea.vmem %s2, %s345
      %p347 = pneg %p65
      %p348 = pneg %p62
      %s349 = sshra.s32 %s35, 7
      %s350 = sand.u32 %s35, 127
      %s351 = sadd.s32 %s349, %s34
      %s352 = smul.u32 %s351, 128
      %s353 = sshra.s32 %s35, 7
      %s354 = sand.u32 %s35, 127
      %s355 = sadd.s32 %s352, %s354
      %s356 = sld [smem:[#allocation4 + %s355]]
      %s357 = smul.u32 32, %s356
      %p358 = scmp.lt.s32.totalorder %s357, 63
      %s359 = scalar_select %p358, %s357, 63
      %s360 = smul.addr %s359, 4
      %s361 = scalar_lea.vmem %s3, %s360
      %p362 = pneg %p107
      %p363 = pneg %p104
      %s364 = smul.u32 32, %s34
      %p365 = scmp.lt.s32.totalorder %s364, 63
      %s366 = scalar_select %p365, %s364, 63
      %s367 = smul.addr %s366, 8
      %s368 = scalar_lea.vmem %s4, %s367
      %p369 = pneg %p133
      %p370 = pneg %p130
      %s371 = smul.u32 32, %s34
      %p372 = scmp.lt.s32.totalorder %s371, 63
      %s373 = scalar_select %p372, %s371, 63
      %s374 = smul.addr %s373, 4
      %s375 = scalar_lea.vmem %s5, %s374
      %p376 = pneg %p159
      %p377 = pneg %p156
      %p378 = pneg %p180
      %p379 = pneg %p177
      %p380 = pneg %p201
      %p381 = pneg %p198
      %p382 = pneg %p222
      %p383 = pneg %p219
      %p384 = pneg %p248
      %p385 = pneg %p245
      %s386 = smul.u32 32, %s34
      %p387 = scmp.lt.s32.totalorder %s386, 63
      %s388 = scalar_select %p387, %s386, 63
      %s389 = smul.addr %s388, 4
      %s390 = scalar_lea.vmem %s9, %s389
      %p391 = scmp.lt.s32.totalorder %s34, 1
      %s392 = scalar_select %p391, %s34, 1
      %p393 = scmp.lt.s32.totalorder %s35, 1
      %s394 = scalar_select %p393, %s35, 1
      %s395 = smul.addr %s394, 64
      %s396 = smul.addr %s392, 128
      %s397 = sadd.s32 %s395, %s396
      %s398 = smul.addr %s397, 4
      %s399 = scalar_lea.vmem %s2, %s398
      %s400 = sshra.s32 %s35, 7
      %s401 = sand.u32 %s35, 127
      %s402 = sadd.s32 %s400, %s34
      %s403 = smul.u32 %s402, 128
      %s404 = sshra.s32 %s35, 7
      %s405 = sand.u32 %s35, 127
      %s406 = sadd.s32 %s403, %s405
      %s407 = sld [smem:[#allocation4 + %s406]]
      %s408 = smul.u32 32, %s407
      %p409 = scmp.lt.s32.totalorder %s408, 63
      %s410 = scalar_select %p409, %s408, 63
      %s411 = smul.addr %s410, 4
      %s412 = scalar_lea.vmem %s3, %s411
      %s413 = sshra.s32 %s35, 7
      %s414 = sand.u32 %s35, 127
      %s415 = sadd.s32 %s413, %s34
      %s416 = smul.u32 %s415, 128
      %s417 = sshra.s32 %s35, 7
      %s418 = sand.u32 %s35, 127
      %s419 = sadd.s32 %s416, %s418
      %s420 = sld [smem:[#allocation4 + %s419]]
      %s421 = smul.u32 32, %s420
      %s422 = smul.u32 32, %s34
      %p423 = scmp.lt.s32.totalorder %s422, 63
      %s424 = scalar_select %p423, %s422, 63
      %s425 = smul.addr %s424, 8
      %s426 = scalar_lea.vmem %s4, %s425
      %s427 = smul.u32 32, %s34
      %s428 = smul.u32 32, %s34
      %p429 = scmp.lt.s32.totalorder %s428, 63
      %s430 = scalar_select %p429, %s428, 63
      %s431 = smul.addr %s430, 4
      %s432 = scalar_lea.vmem %s5, %s431
      %s433 = smul.u32 32, %s34
      %s434 = smul.u32 32, %s34
      %p435 = scmp.lt.s32.totalorder %s434, 63
      %s436 = scalar_select %p435, %s434, 63
      %s437 = smul.addr %s436, 4
      %s438 = scalar_lea.vmem %s9, %s437
      %s439 = smul.u32 32, %s34
      %p441 = scmp.eq.s32.totalorder %s35, 0
      // Predicated region
      $region49: #{graphsage_forward.2} parent=47 // pred_check
        %p442 = pneg %p441
      $region50: #{graphsage_forward.2} parent=47 // pred_check_branch
        %444 = sbr.rel (%p442) target = $region52
      $region51: #{graphsage_forward.2} parent=47 // pred_region
        %445 = vst [vmem:[#allocation2] sm:$0xff] 0.0
        %446 = vst [vmem:[#allocation2 + $0x8] sm:$0xff] 0.0
        %447 = vst [vmem:[#allocation2 + $0x10] sm:$0xff] 0.0
        %448 = vst [vmem:[#allocation2 + $0x18] sm:$0xff] 0.0
        %449 = vst [vmem:[#allocation2 + $0x20] sm:$0xff] 0.0
        %450 = vst [vmem:[#allocation2 + $0x28] sm:$0xff] 0.0
        %451 = vst [vmem:[#allocation2 + $0x30] sm:$0xff] 0.0
        %452 = vst [vmem:[#allocation2 + $0x38] sm:$0xff] 0.0
        %453 = vst [vmem:[#allocation2 + $0x40] sm:$0xff] 0.0
        %454 = vst [vmem:[#allocation2 + $0x48] sm:$0xff] 0.0
        %455 = vst [vmem:[#allocation2 + $0x50] sm:$0xff] 0.0
        %456 = vst [vmem:[#allocation2 + $0x58] sm:$0xff] 0.0
        %457 = vst [vmem:[#allocation2 + $0x60] sm:$0xff] 0.0
        %458 = vst [vmem:[#allocation2 + $0x68] sm:$0xff] 0.0
        %459 = vst [vmem:[#allocation2 + $0x70] sm:$0xff] 0.0
        %460 = vst [vmem:[#allocation2 + $0x78] sm:$0xff] 0.0
        %461 = vst [vmem:[#allocation2 + $0x80] sm:$0xff] 0.0
        %462 = vst [vmem:[#allocation2 + $0x88] sm:$0xff] 0.0
        %463 = vst [vmem:[#allocation2 + $0x90] sm:$0xff] 0.0
        %464 = vst [vmem:[#allocation2 + $0x98] sm:$0xff] 0.0
        %465 = vst [vmem:[#allocation2 + $0xa0] sm:$0xff] 0.0
        %466 = vst [vmem:[#allocation2 + $0xa8] sm:$0xff] 0.0
        %467 = vst [vmem:[#allocation2 + $0xb0] sm:$0xff] 0.0
        %468 = vst [vmem:[#allocation2 + $0xb8] sm:$0xff] 0.0
        %469 = vst [vmem:[#allocation2 + $0xc0] sm:$0xff] 0.0
        %470 = vst [vmem:[#allocation2 + $0xc8] sm:$0xff] 0.0
        %471 = vst [vmem:[#allocation2 + $0xd0] sm:$0xff] 0.0
        %472 = vst [vmem:[#allocation2 + $0xd8] sm:$0xff] 0.0
        %473 = vst [vmem:[#allocation2 + $0xe0] sm:$0xff] 0.0
        %474 = vst [vmem:[#allocation2 + $0xe8] sm:$0xff] 0.0
        %475 = vst [vmem:[#allocation2 + $0xf0] sm:$0xff] 0.0
        %476 = vst [vmem:[#allocation2 + $0xf8] sm:$0xff] 0.0
      $region52: #{graphsage_forward.2} parent=47 // pred_fallthru
        _
      %s477 = sld [smem:[#allocation5 + %s34]]
      %p478 = scmp.lt.s32.totalorder %s35, %s477
      // Predicated region
      $region53: #{graphsage_forward.2} parent=47 // pred_check
        %p479 = pneg %p478
      $region54: #{graphsage_forward.2} parent=47 // pred_check_branch
        %481 = sbr.rel (%p479) target = $region56
      $region55: #{graphsage_forward.2} parent=47 // pred_region
        %v482 = vld [vmem:[#allocation2] sm:$0xff]
        %v483 = vld [vmem:[#allocation2 + $0x8] sm:$0xff]
        %v484 = vld [vmem:[#allocation2 + $0x10] sm:$0xff]
        %v485 = vld [vmem:[#allocation2 + $0x18] sm:$0xff]
        %v486 = vld [vmem:[#allocation2 + $0x20] sm:$0xff]
        %v487 = vld [vmem:[#allocation2 + $0x28] sm:$0xff]
        %v488 = vld [vmem:[#allocation2 + $0x30] sm:$0xff]
        %v489 = vld [vmem:[#allocation2 + $0x38] sm:$0xff]
        %v490 = vld [vmem:[#allocation2 + $0x40] sm:$0xff]
        %v491 = vld [vmem:[#allocation2 + $0x48] sm:$0xff]
        %v492 = vld [vmem:[#allocation2 + $0x50] sm:$0xff]
        %v493 = vld [vmem:[#allocation2 + $0x58] sm:$0xff]
        %v494 = vld [vmem:[#allocation2 + $0x60] sm:$0xff]
        %v495 = vld [vmem:[#allocation2 + $0x68] sm:$0xff]
        %v496 = vld [vmem:[#allocation2 + $0x70] sm:$0xff]
        %v497 = vld [vmem:[#allocation2 + $0x78] sm:$0xff]
        %v498 = vld [vmem:[#allocation2 + $0x80] sm:$0xff]
        %v499 = vld [vmem:[#allocation2 + $0x88] sm:$0xff]
        %v500 = vld [vmem:[#allocation2 + $0x90] sm:$0xff]
        %v501 = vld [vmem:[#allocation2 + $0x98] sm:$0xff]
        %v502 = vld [vmem:[#allocation2 + $0xa0] sm:$0xff]
        %v503 = vld [vmem:[#allocation2 + $0xa8] sm:$0xff]
        %v504 = vld [vmem:[#allocation2 + $0xb0] sm:$0xff]
        %v505 = vld [vmem:[#allocation2 + $0xb8] sm:$0xff]
        %v506 = vld [vmem:[#allocation2 + $0xc0] sm:$0xff]
        %v507 = vld [vmem:[#allocation2 + $0xc8] sm:$0xff]
        %v508 = vld [vmem:[#allocation2 + $0xd0] sm:$0xff]
        %v509 = vld [vmem:[#allocation2 + $0xd8] sm:$0xff]
        %v510 = vld [vmem:[#allocation2 + $0xe0] sm:$0xff]
        %v511 = vld [vmem:[#allocation2 + $0xe8] sm:$0xff]
        %v512 = vld [vmem:[#allocation2 + $0xf0] sm:$0xff]
        %v513 = vld [vmem:[#allocation2 + $0xf8] sm:$0xff]
        %v514 = vld [vmem:[%s399] sm:$0xff]
        %v515 = vld [vmem:[%s399 + $0x8] sm:$0xff]
        %v516 = vld [vmem:[%s399 + $0x10] sm:$0xff]
        %v517 = vld [vmem:[%s399 + $0x18] sm:$0xff]
        %v518 = vld [vmem:[%s399 + $0x20] sm:$0xff]
        %v519 = vld [vmem:[%s399 + $0x28] sm:$0xff]
        %v520 = vld [vmem:[%s399 + $0x30] sm:$0xff]
        %v521 = vld [vmem:[%s399 + $0x38] sm:$0xff]
        %v522 = vld [vmem:[%s399 + $0x40] sm:$0xff]
        %v523 = vld [vmem:[%s399 + $0x48] sm:$0xff]
        %v524 = vld [vmem:[%s399 + $0x50] sm:$0xff]
        %v525 = vld [vmem:[%s399 + $0x58] sm:$0xff]
        %v526 = vld [vmem:[%s399 + $0x60] sm:$0xff]
        %v527 = vld [vmem:[%s399 + $0x68] sm:$0xff]
        %v528 = vld [vmem:[%s399 + $0x70] sm:$0xff]
        %v529 = vld [vmem:[%s399 + $0x78] sm:$0xff]
        %v530 = vld [vmem:[%s399 + $0x80] sm:$0xff]
        %v531 = vld [vmem:[%s399 + $0x88] sm:$0xff]
        %v532 = vld [vmem:[%s399 + $0x90] sm:$0xff]
        %v533 = vld [vmem:[%s399 + $0x98] sm:$0xff]
        %v534 = vld [vmem:[%s399 + $0xa0] sm:$0xff]
        %v535 = vld [vmem:[%s399 + $0xa8] sm:$0xff]
        %v536 = vld [vmem:[%s399 + $0xb0] sm:$0xff]
        %v537 = vld [vmem:[%s399 + $0xb8] sm:$0xff]
        %v538 = vld [vmem:[%s399 + $0xc0] sm:$0xff]
        %v539 = vld [vmem:[%s399 + $0xc8] sm:$0xff]
        %v540 = vld [vmem:[%s399 + $0xd0] sm:$0xff]
        %v541 = vld [vmem:[%s399 + $0xd8] sm:$0xff]
        %v542 = vld [vmem:[%s399 + $0xe0] sm:$0xff]
        %v543 = vld [vmem:[%s399 + $0xe8] sm:$0xff]
        %v544 = vld [vmem:[%s399 + $0xf0] sm:$0xff]
        %v545 = vld [vmem:[%s399 + $0xf8] sm:$0xff]
        %v546 = vld [vmem:[%s412] sm:$0xf]
        %v547 = vld [vmem:[%s412 + $0x4] sm:$0xf]
        %v548 = vld [vmem:[%s412 + $0x8] sm:$0xf]
        %v549 = vld [vmem:[%s412 + $0xc] sm:$0xf]
        %v550 = vld [vmem:[%s412 + $0x10] sm:$0xf]
        %v551 = vld [vmem:[%s412 + $0x14] sm:$0xf]
        %v552 = vld [vmem:[%s412 + $0x18] sm:$0xf]
        %v553 = vld [vmem:[%s412 + $0x1c] sm:$0xf]
        %v554 = vld [vmem:[%s412 + $0x20] sm:$0xf]
        %v555 = vld [vmem:[%s412 + $0x24] sm:$0xf]
        %v556 = vld [vmem:[%s412 + $0x28] sm:$0xf]
        %v557 = vld [vmem:[%s412 + $0x2c] sm:$0xf]
        %v558 = vld [vmem:[%s412 + $0x30] sm:$0xf]
        %v559 = vld [vmem:[%s412 + $0x34] sm:$0xf]
        %v560 = vld [vmem:[%s412 + $0x38] sm:$0xf]
        %v561 = vld [vmem:[%s412 + $0x3c] sm:$0xf]
        %v562 = vld [vmem:[%s412 + $0x40] sm:$0xf]
        %v563 = vld [vmem:[%s412 + $0x44] sm:$0xf]
        %v564 = vld [vmem:[%s412 + $0x48] sm:$0xf]
        %v565 = vld [vmem:[%s412 + $0x4c] sm:$0xf]
        %v566 = vld [vmem:[%s412 + $0x50] sm:$0xf]
        %v567 = vld [vmem:[%s412 + $0x54] sm:$0xf]
        %v568 = vld [vmem:[%s412 + $0x58] sm:$0xf]
        %v569 = vld [vmem:[%s412 + $0x5c] sm:$0xf]
        %v570 = vld [vmem:[%s412 + $0x60] sm:$0xf]
        %v571 = vld [vmem:[%s412 + $0x64] sm:$0xf]
        %v572 = vld [vmem:[%s412 + $0x68] sm:$0xf]
        %v573 = vld [vmem:[%s412 + $0x6c] sm:$0xf]
        %v574 = vld [vmem:[%s412 + $0x70] sm:$0xf]
        %v575 = vld [vmem:[%s412 + $0x74] sm:$0xf]
        %v576 = vld [vmem:[%s412 + $0x78] sm:$0xf]
        %v577 = vld [vmem:[%s412 + $0x7c] sm:$0xf]
        %v610 = vunpack.c.l.b16 %v514
        %v611 = vunpack.c.h.b16 %v514
        %v612 = vunpack.c.l.b16 %v515
        %v613 = vunpack.c.h.b16 %v515
        %v614 = vunpack.c.l.b16 %v516
        %v615 = vunpack.c.h.b16 %v516
        %v616 = vunpack.c.l.b16 %v517
        %v617 = vunpack.c.h.b16 %v517
        %v618 = vunpack.c.l.b16 %v518
        %v619 = vunpack.c.h.b16 %v518
        %v620 = vunpack.c.l.b16 %v519
        %v621 = vunpack.c.h.b16 %v519
        %v622 = vunpack.c.l.b16 %v520
        %v623 = vunpack.c.h.b16 %v520
        %v624 = vunpack.c.l.b16 %v521
        %v625 = vunpack.c.h.b16 %v521
        %v626 = vunpack.c.l.b16 %v522
        %v627 = vunpack.c.h.b16 %v522
        %v628 = vunpack.c.l.b16 %v523
        %v629 = vunpack.c.h.b16 %v523
        %v630 = vunpack.c.l.b16 %v524
        %v631 = vunpack.c.h.b16 %v524
        %v632 = vunpack.c.l.b16 %v525
        %v633 = vunpack.c.h.b16 %v525
        %v634 = vunpack.c.l.b16 %v526
        %v635 = vunpack.c.h.b16 %v526
        %v636 = vunpack.c.l.b16 %v527
        %v637 = vunpack.c.h.b16 %v527
        %v638 = vunpack.c.l.b16 %v528
        %v639 = vunpack.c.h.b16 %v528
        %v640 = vunpack.c.l.b16 %v529
        %v641 = vunpack.c.h.b16 %v529
        %v642 = vunpack.c.l.b16 %v530
        %v643 = vunpack.c.h.b16 %v530
        %v644 = vunpack.c.l.b16 %v531
        %v645 = vunpack.c.h.b16 %v531
        %v646 = vunpack.c.l.b16 %v532
        %v647 = vunpack.c.h.b16 %v532
        %v648 = vunpack.c.l.b16 %v533
        %v649 = vunpack.c.h.b16 %v533
        %v650 = vunpack.c.l.b16 %v534
        %v651 = vunpack.c.h.b16 %v534
        %v652 = vunpack.c.l.b16 %v535
        %v653 = vunpack.c.h.b16 %v535
        %v654 = vunpack.c.l.b16 %v536
        %v655 = vunpack.c.h.b16 %v536
        %v656 = vunpack.c.l.b16 %v537
        %v657 = vunpack.c.h.b16 %v537
        %v658 = vunpack.c.l.b16 %v538
        %v659 = vunpack.c.h.b16 %v538
        %v660 = vunpack.c.l.b16 %v539
        %v661 = vunpack.c.h.b16 %v539
        %v662 = vunpack.c.l.b16 %v540
        %v663 = vunpack.c.h.b16 %v540
        %v664 = vunpack.c.l.b16 %v541
        %v665 = vunpack.c.h.b16 %v541
        %v666 = vunpack.c.l.b16 %v542
        %v667 = vunpack.c.h.b16 %v542
        %v668 = vunpack.c.l.b16 %v543
        %v669 = vunpack.c.h.b16 %v543
        %v670 = vunpack.c.l.b16 %v544
        %v671 = vunpack.c.h.b16 %v544
        %v672 = vunpack.c.l.b16 %v545
        %v673 = vunpack.c.h.b16 %v545
        %v674 = vpack.c.b16 %v612, %v610
        %v675 = vpack.c.b16 %v613, %v611
        %v676 = vpack.c.b16 %v616, %v614
        %v677 = vpack.c.b16 %v617, %v615
        %v678 = vpack.c.b16 %v620, %v618
        %v679 = vpack.c.b16 %v621, %v619
        %v680 = vpack.c.b16 %v624, %v622
        %v681 = vpack.c.b16 %v625, %v623
        %v682 = vpack.c.b16 %v628, %v626
        %v683 = vpack.c.b16 %v629, %v627
        %v684 = vpack.c.b16 %v632, %v630
        %v685 = vpack.c.b16 %v633, %v631
        %v686 = vpack.c.b16 %v636, %v634
        %v687 = vpack.c.b16 %v637, %v635
        %v688 = vpack.c.b16 %v640, %v638
        %v689 = vpack.c.b16 %v641, %v639
        %v690 = vpack.c.b16 %v644, %v642
        %v691 = vpack.c.b16 %v645, %v643
        %v692 = vpack.c.b16 %v648, %v646
        %v693 = vpack.c.b16 %v649, %v647
        %v694 = vpack.c.b16 %v652, %v650
        %v695 = vpack.c.b16 %v653, %v651
        %v696 = vpack.c.b16 %v656, %v654
        %v697 = vpack.c.b16 %v657, %v655
        %v698 = vpack.c.b16 %v660, %v658
        %v699 = vpack.c.b16 %v661, %v659
        %v700 = vpack.c.b16 %v664, %v662
        %v701 = vpack.c.b16 %v665, %v663
        %v702 = vpack.c.b16 %v668, %v666
        %v703 = vpack.c.b16 %v669, %v667
        %v704 = vpack.c.b16 %v672, %v670
        %v705 = vpack.c.b16 %v673, %v671
        %v770 = vunpack.c.l.b16 %v546
        %v771 = vunpack.c.l.b16 %v547
        %v772 = vunpack.c.l.b16 %v548
        %v773 = vunpack.c.l.b16 %v549
        %v774 = vunpack.c.l.b16 %v550
        %v775 = vunpack.c.l.b16 %v551
        %v776 = vunpack.c.l.b16 %v552
        %v777 = vunpack.c.l.b16 %v553
        %v778 = vunpack.c.l.b16 %v554
        %v779 = vunpack.c.l.b16 %v555
        %v780 = vunpack.c.l.b16 %v556
        %v781 = vunpack.c.l.b16 %v557
        %v782 = vunpack.c.l.b16 %v558
        %v783 = vunpack.c.l.b16 %v559
        %v784 = vunpack.c.l.b16 %v560
        %v785 = vunpack.c.l.b16 %v561
        %v786 = vunpack.c.l.b16 %v562
        %v787 = vunpack.c.l.b16 %v563
        %v788 = vunpack.c.l.b16 %v564
        %v789 = vunpack.c.l.b16 %v565
        %v790 = vunpack.c.l.b16 %v566
        %v791 = vunpack.c.l.b16 %v567
        %v792 = vunpack.c.l.b16 %v568
        %v793 = vunpack.c.l.b16 %v569
        %v794 = vunpack.c.l.b16 %v570
        %v795 = vunpack.c.l.b16 %v571
        %v796 = vunpack.c.l.b16 %v572
        %v797 = vunpack.c.l.b16 %v573
        %v798 = vunpack.c.l.b16 %v574
        %v799 = vunpack.c.l.b16 %v575
        %v800 = vunpack.c.l.b16 %v576
        %v801 = vunpack.c.l.b16 %v577
        %v802 = vpack.c.b16 %v771, %v770
        %v803 = vpack.c.b16 %v773, %v772
        %v804 = vpack.c.b16 %v775, %v774
        %v805 = vpack.c.b16 %v777, %v776
        %v806 = vpack.c.b16 %v779, %v778
        %v807 = vpack.c.b16 %v781, %v780
        %v808 = vpack.c.b16 %v783, %v782
        %v809 = vpack.c.b16 %v785, %v784
        %v810 = vpack.c.b16 %v787, %v786
        %v811 = vpack.c.b16 %v789, %v788
        %v812 = vpack.c.b16 %v791, %v790
        %v813 = vpack.c.b16 %v793, %v792
        %v814 = vpack.c.b16 %v795, %v794
        %v815 = vpack.c.b16 %v797, %v796
        %v816 = vpack.c.b16 %v799, %v798
        %v817 = vpack.c.b16 %v801, %v800
        %834 = vmatprep.subr.bf16.mxu0 0
        %835 = vmatpush1.bf16.msra.mxu0 %v809
        %836 = vmatprep.subr.bf16.mxu0 0
        %837 = vmatpush1.bf16.msra.mxu0 %v808
        %838 = vmatprep.subr.bf16.mxu0 0
        %839 = vmatpush1.bf16.msra.mxu0 %v807
        %840 = vmatprep.subr.bf16.mxu0 0
        %841 = vmatpush1.bf16.msra.mxu0 %v806
        %842 = vmatprep.subr.bf16.mxu0 0
        %843 = vmatpush1.bf16.msra.mxu0 %v805
        %844 = vmatprep.subr.bf16.mxu0 0
        %845 = vmatpush1.bf16.msra.mxu0 %v804
        %846 = vmatprep.subr.bf16.mxu0 0
        %847 = vmatpush1.bf16.msra.mxu0 %v803
        %848 = vmatprep.subr.bf16.mxu0 0
        %849 = vmatpush1.bf16.msra.mxu0 %v802
        %850 = vmatprep.subr.bf16.mxu0 0
        %851 = vmatpush2.bf16.msra.mxu0 %v817
        %852 = vmatprep.subr.bf16.mxu0 0
        %853 = vmatpush2.bf16.msra.mxu0 %v816
        %854 = vmatprep.subr.bf16.mxu0 0
        %855 = vmatpush2.bf16.msra.mxu0 %v815
        %856 = vmatprep.subr.bf16.mxu0 0
        %857 = vmatpush2.bf16.msra.mxu0 %v814
        %858 = vmatprep.subr.bf16.mxu0 0
        %859 = vmatpush2.bf16.msra.mxu0 %v813
        %860 = vmatprep.subr.bf16.mxu0 0
        %861 = vmatpush2.bf16.msra.mxu0 %v812
        %862 = vmatprep.subr.bf16.mxu0 0
        %863 = vmatpush2.bf16.msra.mxu0 %v811
        %864 = vmatprep.subr.bf16.mxu0 0
        %865 = vmatpush2.bf16.msra.mxu0 %v810
        %866 = vmatprep.mubr.bf16.mxu0 %v675
        %867 = vmatmul.mubr.bf16.gmra.mxu0 %v674
        %v868 = vpop.f32.mrf.mxu0
        %v869 = vadd.f32 0.0, %v868
        %v870 = vpop.f32.mrf.mxu0
        %v871 = vpop.f32.mrf.mxu0
        %v872 = vadd.f32 0.0, %v871
        %v873 = vpop.f32.mrf.mxu0
        %874 = vmatprep.mubr.bf16.mxu0 %v677
        %875 = vmatmul.mubr.bf16.gmra.mxu0 %v676
        %v876 = vpop.f32.mrf.mxu0
        %v877 = vadd.f32 0.0, %v876
        %v878 = vpop.f32.mrf.mxu0
        %v879 = vpop.f32.mrf.mxu0
        %v880 = vadd.f32 0.0, %v879
        %v881 = vpop.f32.mrf.mxu0
        %882 = vmatprep.mubr.bf16.mxu0 %v679
        %883 = vmatmul.mubr.bf16.gmra.mxu0 %v678
        %v884 = vpop.f32.mrf.mxu0
        %v885 = vadd.f32 0.0, %v884
        %v886 = vpop.f32.mrf.mxu0
        %v887 = vpop.f32.mrf.mxu0
        %v888 = vadd.f32 0.0, %v887
        %v889 = vpop.f32.mrf.mxu0
        %890 = vmatprep.mubr.bf16.mxu0 %v681
        %891 = vmatmul.mubr.bf16.gmra.mxu0 %v680
        %v892 = vpop.f32.mrf.mxu0
        %v893 = vadd.f32 0.0, %v892
        %v894 = vpop.f32.mrf.mxu0
        %v895 = vpop.f32.mrf.mxu0
        %v896 = vadd.f32 0.0, %v895
        %v897 = vpop.f32.mrf.mxu0
        %898 = vmatprep.mubr.bf16.mxu0 %v683
        %899 = vmatmul.mubr.bf16.gmra.mxu0 %v682
        %v900 = vpop.f32.mrf.mxu0
        %v901 = vadd.f32 0.0, %v900
        %v902 = vpop.f32.mrf.mxu0
        %v903 = vpop.f32.mrf.mxu0
        %v904 = vadd.f32 0.0, %v903
        %v905 = vpop.f32.mrf.mxu0
        %906 = vmatprep.mubr.bf16.mxu0 %v685
        %907 = vmatmul.mubr.bf16.gmra.mxu0 %v684
        %v908 = vpop.f32.mrf.mxu0
        %v909 = vadd.f32 0.0, %v908
        %v910 = vpop.f32.mrf.mxu0
        %v911 = vpop.f32.mrf.mxu0
        %v912 = vadd.f32 0.0, %v911
        %v913 = vpop.f32.mrf.mxu0
        %914 = vmatprep.mubr.bf16.mxu0 %v687
        %915 = vmatmul.mubr.bf16.gmra.mxu0 %v686
        %v916 = vpop.f32.mrf.mxu0
        %v917 = vadd.f32 0.0, %v916
        %v918 = vpop.f32.mrf.mxu0
        %v919 = vpop.f32.mrf.mxu0
        %v920 = vadd.f32 0.0, %v919
        %v921 = vpop.f32.mrf.mxu0
        %922 = vmatprep.mubr.bf16.mxu0 %v689
        %923 = vmatmul.mubr.bf16.gmra.mxu0 %v688
        %v924 = vpop.f32.mrf.mxu0
        %v925 = vadd.f32 0.0, %v924
        %v926 = vpop.f32.mrf.mxu0
        %v927 = vpop.f32.mrf.mxu0
        %v928 = vadd.f32 0.0, %v927
        %v929 = vpop.f32.mrf.mxu0
        %930 = vmatprep.mubr.bf16.mxu0 %v691
        %931 = vmatmul.mubr.bf16.gmra.mxu0 %v690
        %v932 = vpop.f32.mrf.mxu0
        %v933 = vadd.f32 0.0, %v932
        %v934 = vpop.f32.mrf.mxu0
        %v935 = vpop.f32.mrf.mxu0
        %v936 = vadd.f32 0.0, %v935
        %v937 = vpop.f32.mrf.mxu0
        %938 = vmatprep.mubr.bf16.mxu0 %v693
        %939 = vmatmul.mubr.bf16.gmra.mxu0 %v692
        %v940 = vpop.f32.mrf.mxu0
        %v941 = vadd.f32 0.0, %v940
        %v942 = vpop.f32.mrf.mxu0
        %v943 = vpop.f32.mrf.mxu0
        %v944 = vadd.f32 0.0, %v943
        %v945 = vpop.f32.mrf.mxu0
        %946 = vmatprep.mubr.bf16.mxu0 %v695
        %947 = vmatmul.mubr.bf16.gmra.mxu0 %v694
        %v948 = vpop.f32.mrf.mxu0
        %v949 = vadd.f32 0.0, %v948
        %v950 = vpop.f32.mrf.mxu0
        %v951 = vpop.f32.mrf.mxu0
        %v952 = vadd.f32 0.0, %v951
        %v953 = vpop.f32.mrf.mxu0
        %954 = vmatprep.mubr.bf16.mxu0 %v697
        %955 = vmatmul.mubr.bf16.gmra.mxu0 %v696
        %v956 = vpop.f32.mrf.mxu0
        %v957 = vadd.f32 0.0, %v956
        %v958 = vpop.f32.mrf.mxu0
        %v959 = vpop.f32.mrf.mxu0
        %v960 = vadd.f32 0.0, %v959
        %v961 = vpop.f32.mrf.mxu0
        %962 = vmatprep.mubr.bf16.mxu0 %v699
        %963 = vmatmul.mubr.bf16.gmra.mxu0 %v698
        %v964 = vpop.f32.mrf.mxu0
        %v965 = vadd.f32 0.0, %v964
        %v966 = vpop.f32.mrf.mxu0
        %v967 = vpop.f32.mrf.mxu0
        %v968 = vadd.f32 0.0, %v967
        %v969 = vpop.f32.mrf.mxu0
        %970 = vmatprep.mubr.bf16.mxu0 %v701
        %971 = vmatmul.mubr.bf16.gmra.mxu0 %v700
        %v972 = vpop.f32.mrf.mxu0
        %v973 = vadd.f32 0.0, %v972
        %v974 = vpop.f32.mrf.mxu0
        %v975 = vpop.f32.mrf.mxu0
        %v976 = vadd.f32 0.0, %v975
        %v977 = vpop.f32.mrf.mxu0
        %978 = vmatprep.mubr.bf16.mxu0 %v703
        %979 = vmatmul.mubr.bf16.gmra.mxu0 %v702
        %v980 = vpop.f32.mrf.mxu0
        %v981 = vadd.f32 0.0, %v980
        %v982 = vpop.f32.mrf.mxu0
        %v983 = vpop.f32.mrf.mxu0
        %v984 = vadd.f32 0.0, %v983
        %v985 = vpop.f32.mrf.mxu0
        %986 = vmatprep.mubr.bf16.mxu0 %v705
        %987 = vmatmul.mubr.bf16.gmra.mxu0 %v704
        %v988 = vpop.f32.mrf.mxu0
        %v989 = vadd.f32 0.0, %v988
        %v990 = vpop.f32.mrf.mxu0
        %v991 = vpop.f32.mrf.mxu0
        %v992 = vadd.f32 0.0, %v991
        %v993 = vpop.f32.mrf.mxu0
        %994 = vdwg.mxu0
        %v995 = vadd.f32 %v482, %v869
        %v996 = vadd.f32 %v483, %v872
        %v997 = vadd.f32 %v484, %v877
        %v998 = vadd.f32 %v485, %v880
        %v999 = vadd.f32 %v486, %v885
        %v1000 = vadd.f32 %v487, %v888
        %v1001 = vadd.f32 %v488, %v893
        %v1002 = vadd.f32 %v489, %v896
        %v1003 = vadd.f32 %v490, %v901
        %v1004 = vadd.f32 %v491, %v904
        %v1005 = vadd.f32 %v492, %v909
        %v1006 = vadd.f32 %v493, %v912
        %v1007 = vadd.f32 %v494, %v917
        %v1008 = vadd.f32 %v495, %v920
        %v1009 = vadd.f32 %v496, %v925
        %v1010 = vadd.f32 %v497, %v928
        %v1011 = vadd.f32 %v498, %v933
        %v1012 = vadd.f32 %v499, %v936
        %v1013 = vadd.f32 %v500, %v941
        %v1014 = vadd.f32 %v501, %v944
        %v1015 = vadd.f32 %v502, %v949
        %v1016 = vadd.f32 %v503, %v952
        %v1017 = vadd.f32 %v504, %v957
        %v1018 = vadd.f32 %v505, %v960
        %v1019 = vadd.f32 %v506, %v965
        %v1020 = vadd.f32 %v507, %v968
        %v1021 = vadd.f32 %v508, %v973
        %v1022 = vadd.f32 %v509, %v976
        %v1023 = vadd.f32 %v510, %v981
        %v1024 = vadd.f32 %v511, %v984
        %v1025 = vadd.f32 %v512, %v989
        %v1026 = vadd.f32 %v513, %v992
        %1027 = vst [vmem:[#allocation2] sm:$0xff] %v995
        %1028 = vst [vmem:[#allocation2 + $0x8] sm:$0xff] %v996
        %1029 = vst [vmem:[#allocation2 + $0x10] sm:$0xff] %v997
        %1030 = vst [vmem:[#allocation2 + $0x18] sm:$0xff] %v998
        %1031 = vst [vmem:[#allocation2 + $0x20] sm:$0xff] %v999
        %1032 = vst [vmem:[#allocation2 + $0x28] sm:$0xff] %v1000
        %1033 = vst [vmem:[#allocation2 + $0x30] sm:$0xff] %v1001
        %1034 = vst [vmem:[#allocation2 + $0x38] sm:$0xff] %v1002
        %1035 = vst [vmem:[#allocation2 + $0x40] sm:$0xff] %v1003
        %1036 = vst [vmem:[#allocation2 + $0x48] sm:$0xff] %v1004
        %1037 = vst [vmem:[#allocation2 + $0x50] sm:$0xff] %v1005
        %1038 = vst [vmem:[#allocation2 + $0x58] sm:$0xff] %v1006
        %1039 = vst [vmem:[#allocation2 + $0x60] sm:$0xff] %v1007
        %1040 = vst [vmem:[#allocation2 + $0x68] sm:$0xff] %v1008
        %1041 = vst [vmem:[#allocation2 + $0x70] sm:$0xff] %v1009
        %1042 = vst [vmem:[#allocation2 + $0x78] sm:$0xff] %v1010
        %1043 = vst [vmem:[#allocation2 + $0x80] sm:$0xff] %v1011
        %1044 = vst [vmem:[#allocation2 + $0x88] sm:$0xff] %v1012
        %1045 = vst [vmem:[#allocation2 + $0x90] sm:$0xff] %v1013
        %1046 = vst [vmem:[#allocation2 + $0x98] sm:$0xff] %v1014
        %1047 = vst [vmem:[#allocation2 + $0xa0] sm:$0xff] %v1015
        %1048 = vst [vmem:[#allocation2 + $0xa8] sm:$0xff] %v1016
        %1049 = vst [vmem:[#allocation2 + $0xb0] sm:$0xff] %v1017
        %1050 = vst [vmem:[#allocation2 + $0xb8] sm:$0xff] %v1018
        %1051 = vst [vmem:[#allocation2 + $0xc0] sm:$0xff] %v1019
        %1052 = vst [vmem:[#allocation2 + $0xc8] sm:$0xff] %v1020
        %1053 = vst [vmem:[#allocation2 + $0xd0] sm:$0xff] %v1021
        %1054 = vst [vmem:[#allocation2 + $0xd8] sm:$0xff] %v1022
        %1055 = vst [vmem:[#allocation2 + $0xe0] sm:$0xff] %v1023
        %1056 = vst [vmem:[#allocation2 + $0xe8] sm:$0xff] %v1024
        %1057 = vst [vmem:[#allocation2 + $0xf0] sm:$0xff] %v1025
        %1058 = vst [vmem:[#allocation2 + $0xf8] sm:$0xff] %v1026
      $region56: #{graphsage_forward.2} parent=47 // pred_fallthru
        _
      %p1059 = scmp.eq.s32.totalorder %s35, 1
      // Predicated region
      $region57: #{graphsage_forward.2} parent=47 // pred_check
        %p1060 = pneg %p1059
      $region58: #{graphsage_forward.2} parent=47 // pred_check_branch
        %1062 = sbr.rel (%p1060) target = $region60
      $region59: #{graphsage_forward.2} parent=47 // pred_region
        %v1063 = vld [vmem:[#allocation2] sm:$0xff]
        %v1064 = vld [vmem:[#allocation2 + $0x8] sm:$0xff]
        %v1065 = vld [vmem:[#allocation2 + $0x10] sm:$0xff]
        %v1066 = vld [vmem:[#allocation2 + $0x18] sm:$0xff]
        %v1067 = vld [vmem:[#allocation2 + $0x20] sm:$0xff]
        %v1068 = vld [vmem:[#allocation2 + $0x28] sm:$0xff]
        %v1069 = vld [vmem:[#allocation2 + $0x30] sm:$0xff]
        %v1070 = vld [vmem:[#allocation2 + $0x38] sm:$0xff]
        %v1071 = vld [vmem:[#allocation2 + $0x40] sm:$0xff]
        %v1072 = vld [vmem:[#allocation2 + $0x48] sm:$0xff]
        %v1073 = vld [vmem:[#allocation2 + $0x50] sm:$0xff]
        %v1074 = vld [vmem:[#allocation2 + $0x58] sm:$0xff]
        %v1075 = vld [vmem:[#allocation2 + $0x60] sm:$0xff]
        %v1076 = vld [vmem:[#allocation2 + $0x68] sm:$0xff]
        %v1077 = vld [vmem:[#allocation2 + $0x70] sm:$0xff]
        %v1078 = vld [vmem:[#allocation2 + $0x78] sm:$0xff]
        %v1079 = vld [vmem:[#allocation2 + $0x80] sm:$0xff]
        %v1080 = vld [vmem:[#allocation2 + $0x88] sm:$0xff]
        %v1081 = vld [vmem:[#allocation2 + $0x90] sm:$0xff]
        %v1082 = vld [vmem:[#allocation2 + $0x98] sm:$0xff]
        %v1083 = vld [vmem:[#allocation2 + $0xa0] sm:$0xff]
        %v1084 = vld [vmem:[#allocation2 + $0xa8] sm:$0xff]
        %v1085 = vld [vmem:[#allocation2 + $0xb0] sm:$0xff]
        %v1086 = vld [vmem:[#allocation2 + $0xb8] sm:$0xff]
        %v1087 = vld [vmem:[#allocation2 + $0xc0] sm:$0xff]
        %v1088 = vld [vmem:[#allocation2 + $0xc8] sm:$0xff]
        %v1089 = vld [vmem:[#allocation2 + $0xd0] sm:$0xff]
        %v1090 = vld [vmem:[#allocation2 + $0xd8] sm:$0xff]
        %v1091 = vld [vmem:[#allocation2 + $0xe0] sm:$0xff]
        %v1092 = vld [vmem:[#allocation2 + $0xe8] sm:$0xff]
        %v1093 = vld [vmem:[#allocation2 + $0xf0] sm:$0xff]
        %v1094 = vld [vmem:[#allocation2 + $0xf8] sm:$0xff]
        %v1095 = vld [vmem:[%s426] sm:$0xff]
        %v1096 = vld [vmem:[%s426 + $0x8] sm:$0xff]
        %v1097 = vld [vmem:[%s426 + $0x10] sm:$0xff]
        %v1098 = vld [vmem:[%s426 + $0x18] sm:$0xff]
        %v1099 = vld [vmem:[%s426 + $0x20] sm:$0xff]
        %v1100 = vld [vmem:[%s426 + $0x28] sm:$0xff]
        %v1101 = vld [vmem:[%s426 + $0x30] sm:$0xff]
        %v1102 = vld [vmem:[%s426 + $0x38] sm:$0xff]
        %v1103 = vld [vmem:[%s426 + $0x40] sm:$0xff]
        %v1104 = vld [vmem:[%s426 + $0x48] sm:$0xff]
        %v1105 = vld [vmem:[%s426 + $0x50] sm:$0xff]
        %v1106 = vld [vmem:[%s426 + $0x58] sm:$0xff]
        %v1107 = vld [vmem:[%s426 + $0x60] sm:$0xff]
        %v1108 = vld [vmem:[%s426 + $0x68] sm:$0xff]
        %v1109 = vld [vmem:[%s426 + $0x70] sm:$0xff]
        %v1110 = vld [vmem:[%s426 + $0x78] sm:$0xff]
        %v1111 = vld [vmem:[%s426 + $0x80] sm:$0xff]
        %v1112 = vld [vmem:[%s426 + $0x88] sm:$0xff]
        %v1113 = vld [vmem:[%s426 + $0x90] sm:$0xff]
        %v1114 = vld [vmem:[%s426 + $0x98] sm:$0xff]
        %v1115 = vld [vmem:[%s426 + $0xa0] sm:$0xff]
        %v1116 = vld [vmem:[%s426 + $0xa8] sm:$0xff]
        %v1117 = vld [vmem:[%s426 + $0xb0] sm:$0xff]
        %v1118 = vld [vmem:[%s426 + $0xb8] sm:$0xff]
        %v1119 = vld [vmem:[%s426 + $0xc0] sm:$0xff]
        %v1120 = vld [vmem:[%s426 + $0xc8] sm:$0xff]
        %v1121 = vld [vmem:[%s426 + $0xd0] sm:$0xff]
        %v1122 = vld [vmem:[%s426 + $0xd8] sm:$0xff]
        %v1123 = vld [vmem:[%s426 + $0xe0] sm:$0xff]
        %v1124 = vld [vmem:[%s426 + $0xe8] sm:$0xff]
        %v1125 = vld [vmem:[%s426 + $0xf0] sm:$0xff]
        %v1126 = vld [vmem:[%s426 + $0xf8] sm:$0xff]
        %1128 = vset.pattern.permute.xlu0 0
        %1129 = vperm.xlu0 %1128, %v1095
        %v1130 = vpop.permute.xlu0 %1129
        %1133 = vset.pattern.permute.xlu0 0
        %1134 = vperm.xlu0 %1133, %v1096
        %v1135 = vpop.permute.xlu0 %1134
        %1138 = vset.pattern.permute.xlu0 0
        %1139 = vperm.xlu0 %1138, %v1097
        %v1140 = vpop.permute.xlu0 %1139
        %1143 = vset.pattern.permute.xlu0 0
        %1144 = vperm.xlu0 %1143, %v1098
        %v1145 = vpop.permute.xlu0 %1144
        %1148 = vset.pattern.permute.xlu0 0
        %1149 = vperm.xlu0 %1148, %v1099
        %v1150 = vpop.permute.xlu0 %1149
        %1153 = vset.pattern.permute.xlu0 0
        %1154 = vperm.xlu0 %1153, %v1100
        %v1155 = vpop.permute.xlu0 %1154
        %1158 = vset.pattern.permute.xlu0 0
        %1159 = vperm.xlu0 %1158, %v1101
        %v1160 = vpop.permute.xlu0 %1159
        %1163 = vset.pattern.permute.xlu0 0
        %1164 = vperm.xlu0 %1163, %v1102
        %v1165 = vpop.permute.xlu0 %1164
        %1168 = vset.pattern.permute.xlu0 0
        %1169 = vperm.xlu0 %1168, %v1103
        %v1170 = vpop.permute.xlu0 %1169
        %1173 = vset.pattern.permute.xlu0 0
        %1174 = vperm.xlu0 %1173, %v1104
        %v1175 = vpop.permute.xlu0 %1174
        %1178 = vset.pattern.permute.xlu0 0
        %1179 = vperm.xlu0 %1178, %v1105
        %v1180 = vpop.permute.xlu0 %1179
        %1183 = vset.pattern.permute.xlu0 0
        %1184 = vperm.xlu0 %1183, %v1106
        %v1185 = vpop.permute.xlu0 %1184
        %1188 = vset.pattern.permute.xlu0 0
        %1189 = vperm.xlu0 %1188, %v1107
        %v1190 = vpop.permute.xlu0 %1189
        %1193 = vset.pattern.permute.xlu0 0
        %1194 = vperm.xlu0 %1193, %v1108
        %v1195 = vpop.permute.xlu0 %1194
        %1198 = vset.pattern.permute.xlu0 0
        %1199 = vperm.xlu0 %1198, %v1109
        %v1200 = vpop.permute.xlu0 %1199
        %1203 = vset.pattern.permute.xlu0 0
        %1204 = vperm.xlu0 %1203, %v1110
        %v1205 = vpop.permute.xlu0 %1204
        %1208 = vset.pattern.permute.xlu0 0
        %1209 = vperm.xlu0 %1208, %v1111
        %v1210 = vpop.permute.xlu0 %1209
        %1213 = vset.pattern.permute.xlu0 0
        %1214 = vperm.xlu0 %1213, %v1112
        %v1215 = vpop.permute.xlu0 %1214
        %1218 = vset.pattern.permute.xlu0 0
        %1219 = vperm.xlu0 %1218, %v1113
        %v1220 = vpop.permute.xlu0 %1219
        %1223 = vset.pattern.permute.xlu0 0
        %1224 = vperm.xlu0 %1223, %v1114
        %v1225 = vpop.permute.xlu0 %1224
        %1228 = vset.pattern.permute.xlu0 0
        %1229 = vperm.xlu0 %1228, %v1115
        %v1230 = vpop.permute.xlu0 %1229
        %1233 = vset.pattern.permute.xlu0 0
        %1234 = vperm.xlu0 %1233, %v1116
        %v1235 = vpop.permute.xlu0 %1234
        %1238 = vset.pattern.permute.xlu0 0
        %1239 = vperm.xlu0 %1238, %v1117
        %v1240 = vpop.permute.xlu0 %1239
        %1243 = vset.pattern.permute.xlu0 0
        %1244 = vperm.xlu0 %1243, %v1118
        %v1245 = vpop.permute.xlu0 %1244
        %1248 = vset.pattern.permute.xlu0 0
        %1249 = vperm.xlu0 %1248, %v1119
        %v1250 = vpop.permute.xlu0 %1249
        %1253 = vset.pattern.permute.xlu0 0
        %1254 = vperm.xlu0 %1253, %v1120
        %v1255 = vpop.permute.xlu0 %1254
        %1258 = vset.pattern.permute.xlu0 0
        %1259 = vperm.xlu0 %1258, %v1121
        %v1260 = vpop.permute.xlu0 %1259
        %1263 = vset.pattern.permute.xlu0 0
        %1264 = vperm.xlu0 %1263, %v1122
        %v1265 = vpop.permute.xlu0 %1264
        %1268 = vset.pattern.permute.xlu0 0
        %1269 = vperm.xlu0 %1268, %v1123
        %v1270 = vpop.permute.xlu0 %1269
        %1273 = vset.pattern.permute.xlu0 0
        %1274 = vperm.xlu0 %1273, %v1124
        %v1275 = vpop.permute.xlu0 %1274
        %1278 = vset.pattern.permute.xlu0 0
        %1279 = vperm.xlu0 %1278, %v1125
        %v1280 = vpop.permute.xlu0 %1279
        %1283 = vset.pattern.permute.xlu0 0
        %1284 = vperm.xlu0 %1283, %v1126
        %v1285 = vpop.permute.xlu0 %1284
        %v1287 = vmul.f32 %v1063, %v1130
        %v1288 = vmul.f32 %v1064, %v1135
        %v1289 = vmul.f32 %v1065, %v1140
        %v1290 = vmul.f32 %v1066, %v1145
        %v1291 = vmul.f32 %v1067, %v1150
        %v1292 = vmul.f32 %v1068, %v1155
        %v1293 = vmul.f32 %v1069, %v1160
        %v1294 = vmul.f32 %v1070, %v1165
        %v1295 = vmul.f32 %v1071, %v1170
        %v1296 = vmul.f32 %v1072, %v1175
        %v1297 = vmul.f32 %v1073, %v1180
        %v1298 = vmul.f32 %v1074, %v1185
        %v1299 = vmul.f32 %v1075, %v1190
        %v1300 = vmul.f32 %v1076, %v1195
        %v1301 = vmul.f32 %v1077, %v1200
        %v1302 = vmul.f32 %v1078, %v1205
        %v1303 = vmul.f32 %v1079, %v1210
        %v1304 = vmul.f32 %v1080, %v1215
        %v1305 = vmul.f32 %v1081, %v1220
        %v1306 = vmul.f32 %v1082, %v1225
        %v1307 = vmul.f32 %v1083, %v1230
        %v1308 = vmul.f32 %v1084, %v1235
        %v1309 = vmul.f32 %v1085, %v1240
        %v1310 = vmul.f32 %v1086, %v1245
        %v1311 = vmul.f32 %v1087, %v1250
        %v1312 = vmul.f32 %v1088, %v1255
        %v1313 = vmul.f32 %v1089, %v1260
        %v1314 = vmul.f32 %v1090, %v1265
        %v1315 = vmul.f32 %v1091, %v1270
        %v1316 = vmul.f32 %v1092, %v1275
        %v1317 = vmul.f32 %v1093, %v1280
        %v1318 = vmul.f32 %v1094, %v1285
        %v1319 = vpack.c.bf16 %v1288, %v1287
        %v1320 = vpack.c.bf16 %v1290, %v1289
        %v1321 = vpack.c.bf16 %v1292, %v1291
        %v1322 = vpack.c.bf16 %v1294, %v1293
        %v1323 = vpack.c.bf16 %v1296, %v1295
        %v1324 = vpack.c.bf16 %v1298, %v1297
        %v1325 = vpack.c.bf16 %v1300, %v1299
        %v1326 = vpack.c.bf16 %v1302, %v1301
        %v1327 = vpack.c.bf16 %v1304, %v1303
        %v1328 = vpack.c.bf16 %v1306, %v1305
        %v1329 = vpack.c.bf16 %v1308, %v1307
        %v1330 = vpack.c.bf16 %v1310, %v1309
        %v1331 = vpack.c.bf16 %v1312, %v1311
        %v1332 = vpack.c.bf16 %v1314, %v1313
        %v1333 = vpack.c.bf16 %v1316, %v1315
        %v1334 = vpack.c.bf16 %v1318, %v1317
        %v1335 = vld [vmem:[%s6] sm:$0xf]
        %v1336 = vld [vmem:[%s6 + $0x4] sm:$0xf]
        %v1337 = vld [vmem:[%s6 + $0x8] sm:$0xf]
        %v1338 = vld [vmem:[%s6 + $0xc] sm:$0xf]
        %v1339 = vld [vmem:[%s6 + $0x10] sm:$0xf]
        %v1340 = vld [vmem:[%s6 + $0x14] sm:$0xf]
        %v1341 = vld [vmem:[%s6 + $0x18] sm:$0xf]
        %v1342 = vld [vmem:[%s6 + $0x1c] sm:$0xf]
        %v1343 = vld [vmem:[%s6 + $0x20] sm:$0xf]
        %v1344 = vld [vmem:[%s6 + $0x24] sm:$0xf]
        %v1345 = vld [vmem:[%s6 + $0x28] sm:$0xf]
        %v1346 = vld [vmem:[%s6 + $0x2c] sm:$0xf]
        %v1347 = vld [vmem:[%s6 + $0x30] sm:$0xf]
        %v1348 = vld [vmem:[%s6 + $0x34] sm:$0xf]
        %v1349 = vld [vmem:[%s6 + $0x38] sm:$0xf]
        %v1350 = vld [vmem:[%s6 + $0x3c] sm:$0xf]
        %v1351 = vld [vmem:[%s432] sm:$0xf]
        %v1352 = vld [vmem:[%s432 + $0x4] sm:$0xf]
        %v1353 = vld [vmem:[%s432 + $0x8] sm:$0xf]
        %v1354 = vld [vmem:[%s432 + $0xc] sm:$0xf]
        %v1355 = vld [vmem:[%s432 + $0x10] sm:$0xf]
        %v1356 = vld [vmem:[%s432 + $0x14] sm:$0xf]
        %v1357 = vld [vmem:[%s432 + $0x18] sm:$0xf]
        %v1358 = vld [vmem:[%s432 + $0x1c] sm:$0xf]
        %v1359 = vld [vmem:[%s432 + $0x20] sm:$0xf]
        %v1360 = vld [vmem:[%s432 + $0x24] sm:$0xf]
        %v1361 = vld [vmem:[%s432 + $0x28] sm:$0xf]
        %v1362 = vld [vmem:[%s432 + $0x2c] sm:$0xf]
        %v1363 = vld [vmem:[%s432 + $0x30] sm:$0xf]
        %v1364 = vld [vmem:[%s432 + $0x34] sm:$0xf]
        %v1365 = vld [vmem:[%s432 + $0x38] sm:$0xf]
        %v1366 = vld [vmem:[%s432 + $0x3c] sm:$0xf]
        %v1367 = vld [vmem:[%s432 + $0x40] sm:$0xf]
        %v1368 = vld [vmem:[%s432 + $0x44] sm:$0xf]
        %v1369 = vld [vmem:[%s432 + $0x48] sm:$0xf]
        %v1370 = vld [vmem:[%s432 + $0x4c] sm:$0xf]
        %v1371 = vld [vmem:[%s432 + $0x50] sm:$0xf]
        %v1372 = vld [vmem:[%s432 + $0x54] sm:$0xf]
        %v1373 = vld [vmem:[%s432 + $0x58] sm:$0xf]
        %v1374 = vld [vmem:[%s432 + $0x5c] sm:$0xf]
        %v1375 = vld [vmem:[%s432 + $0x60] sm:$0xf]
        %v1376 = vld [vmem:[%s432 + $0x64] sm:$0xf]
        %v1377 = vld [vmem:[%s432 + $0x68] sm:$0xf]
        %v1378 = vld [vmem:[%s432 + $0x6c] sm:$0xf]
        %v1379 = vld [vmem:[%s432 + $0x70] sm:$0xf]
        %v1380 = vld [vmem:[%s432 + $0x74] sm:$0xf]
        %v1381 = vld [vmem:[%s432 + $0x78] sm:$0xf]
        %v1382 = vld [vmem:[%s432 + $0x7c] sm:$0xf]
        %v1383 = vld [vmem:[%s7] sm:$0xf]
        %v1384 = vld [vmem:[%s7 + $0x4] sm:$0xf]
        %v1385 = vld [vmem:[%s7 + $0x8] sm:$0xf]
        %v1386 = vld [vmem:[%s7 + $0xc] sm:$0xf]
        %v1387 = vld [vmem:[%s7 + $0x10] sm:$0xf]
        %v1388 = vld [vmem:[%s7 + $0x14] sm:$0xf]
        %v1389 = vld [vmem:[%s7 + $0x18] sm:$0xf]
        %v1390 = vld [vmem:[%s7 + $0x1c] sm:$0xf]
        %v1391 = vld [vmem:[%s7 + $0x20] sm:$0xf]
        %v1392 = vld [vmem:[%s7 + $0x24] sm:$0xf]
        %v1393 = vld [vmem:[%s7 + $0x28] sm:$0xf]
        %v1394 = vld [vmem:[%s7 + $0x2c] sm:$0xf]
        %v1395 = vld [vmem:[%s7 + $0x30] sm:$0xf]
        %v1396 = vld [vmem:[%s7 + $0x34] sm:$0xf]
        %v1397 = vld [vmem:[%s7 + $0x38] sm:$0xf]
        %v1398 = vld [vmem:[%s7 + $0x3c] sm:$0xf]
        %v1431 = vunpack.c.l.b16 %v1351
        %v1432 = vunpack.c.l.b16 %v1352
        %v1433 = vunpack.c.l.b16 %v1353
        %v1434 = vunpack.c.l.b16 %v1354
        %v1435 = vunpack.c.l.b16 %v1355
        %v1436 = vunpack.c.l.b16 %v1356
        %v1437 = vunpack.c.l.b16 %v1357
        %v1438 = vunpack.c.l.b16 %v1358
        %v1439 = vunpack.c.l.b16 %v1359
        %v1440 = vunpack.c.l.b16 %v1360
        %v1441 = vunpack.c.l.b16 %v1361
        %v1442 = vunpack.c.l.b16 %v1362
        %v1443 = vunpack.c.l.b16 %v1363
        %v1444 = vunpack.c.l.b16 %v1364
        %v1445 = vunpack.c.l.b16 %v1365
        %v1446 = vunpack.c.l.b16 %v1366
        %v1447 = vunpack.c.l.b16 %v1367
        %v1448 = vunpack.c.l.b16 %v1368
        %v1449 = vunpack.c.l.b16 %v1369
        %v1450 = vunpack.c.l.b16 %v1370
        %v1451 = vunpack.c.l.b16 %v1371
        %v1452 = vunpack.c.l.b16 %v1372
        %v1453 = vunpack.c.l.b16 %v1373
        %v1454 = vunpack.c.l.b16 %v1374
        %v1455 = vunpack.c.l.b16 %v1375
        %v1456 = vunpack.c.l.b16 %v1376
        %v1457 = vunpack.c.l.b16 %v1377
        %v1458 = vunpack.c.l.b16 %v1378
        %v1459 = vunpack.c.l.b16 %v1379
        %v1460 = vunpack.c.l.b16 %v1380
        %v1461 = vunpack.c.l.b16 %v1381
        %v1462 = vunpack.c.l.b16 %v1382
        %v1463 = vpack.c.b16 %v1432, %v1431
        %v1464 = vpack.c.b16 %v1434, %v1433
        %v1465 = vpack.c.b16 %v1436, %v1435
        %v1466 = vpack.c.b16 %v1438, %v1437
        %v1467 = vpack.c.b16 %v1440, %v1439
        %v1468 = vpack.c.b16 %v1442, %v1441
        %v1469 = vpack.c.b16 %v1444, %v1443
        %v1470 = vpack.c.b16 %v1446, %v1445
        %v1471 = vpack.c.b16 %v1448, %v1447
        %v1472 = vpack.c.b16 %v1450, %v1449
        %v1473 = vpack.c.b16 %v1452, %v1451
        %v1474 = vpack.c.b16 %v1454, %v1453
        %v1475 = vpack.c.b16 %v1456, %v1455
        %v1476 = vpack.c.b16 %v1458, %v1457
        %v1477 = vpack.c.b16 %v1460, %v1459
        %v1478 = vpack.c.b16 %v1462, %v1461
        %v1511 = vunpack.c.l.b16 %v1383
        %v1512 = vunpack.c.l.b16 %v1384
        %v1513 = vunpack.c.l.b16 %v1385
        %v1514 = vunpack.c.l.b16 %v1386
        %v1515 = vunpack.c.l.b16 %v1387
        %v1516 = vunpack.c.l.b16 %v1388
        %v1517 = vunpack.c.l.b16 %v1389
        %v1518 = vunpack.c.l.b16 %v1390
        %v1519 = vunpack.c.l.b16 %v1391
        %v1520 = vunpack.c.l.b16 %v1392
        %v1521 = vunpack.c.l.b16 %v1393
        %v1522 = vunpack.c.l.b16 %v1394
        %v1523 = vunpack.c.l.b16 %v1395
        %v1524 = vunpack.c.l.b16 %v1396
        %v1525 = vunpack.c.l.b16 %v1397
        %v1526 = vunpack.c.l.b16 %v1398
        %v1527 = vpack.c.b16 %v1512, %v1511
        %v1528 = vpack.c.b16 %v1514, %v1513
        %v1529 = vpack.c.b16 %v1516, %v1515
        %v1530 = vpack.c.b16 %v1518, %v1517
        %v1531 = vpack.c.b16 %v1520, %v1519
        %v1532 = vpack.c.b16 %v1522, %v1521
        %v1533 = vpack.c.b16 %v1524, %v1523
        %v1534 = vpack.c.b16 %v1526, %v1525
        %1543 = vmatprep.subr.bf16.mxu0 0
        %1544 = vmatpush1.bf16.msra.mxu0 %v1534
        %1545 = vmatprep.subr.bf16.mxu0 0
        %1546 = vmatpush1.bf16.msra.mxu0 %v1533
        %1547 = vmatprep.subr.bf16.mxu0 0
        %1548 = vmatpush1.bf16.msra.mxu0 %v1532
        %1549 = vmatprep.subr.bf16.mxu0 0
        %1550 = vmatpush1.bf16.msra.mxu0 %v1531
        %1551 = vmatprep.subr.bf16.mxu0 0
        %1552 = vmatpush1.bf16.msra.mxu0 %v1530
        %1553 = vmatprep.subr.bf16.mxu0 0
        %1554 = vmatpush1.bf16.msra.mxu0 %v1529
        %1555 = vmatprep.subr.bf16.mxu0 0
        %1556 = vmatpush1.bf16.msra.mxu0 %v1528
        %1557 = vmatprep.subr.bf16.mxu0 0
        %1558 = vmatpush1.bf16.msra.mxu0 %v1527
        %1559 = vmatprep.subr.bf16.mxu0 0
        %1560 = vmatpush2.bf16.msra.mxu0 0
        %1561 = vmatprep.subr.bf16.mxu0 0
        %1562 = vmatpush2.bf16.msra.mxu0 0
        %1563 = vmatprep.subr.bf16.mxu0 0
        %1564 = vmatpush2.bf16.msra.mxu0 0
        %1565 = vmatprep.subr.bf16.mxu0 0
        %1566 = vmatpush2.bf16.msra.mxu0 0
        %1567 = vmatprep.subr.bf16.mxu0 0
        %1568 = vmatpush2.bf16.msra.mxu0 0
        %1569 = vmatprep.subr.bf16.mxu0 0
        %1570 = vmatpush2.bf16.msra.mxu0 0
        %1571 = vmatprep.subr.bf16.mxu0 0
        %1572 = vmatpush2.bf16.msra.mxu0 0
        %1573 = vmatprep.subr.bf16.mxu0 0
        %1574 = vmatpush2.bf16.msra.mxu0 0
        %1575 = vmatprep.mubr.bf16.mxu0 0
        %1576 = vmatmul.mubr.bf16.gmra.mxu0 %v1463
        %v1577 = vpop.f32.mrf.mxu0
        %v1578 = vadd.f32 0.0, %v1577
        %v1579 = vpop.f32.mrf.mxu0
        %v1580 = vpop.f32.mrf.mxu0
        %v1581 = vadd.f32 0.0, %v1580
        %v1582 = vpop.f32.mrf.mxu0
        %1583 = vmatprep.mubr.bf16.mxu0 0
        %1584 = vmatmul.mubr.bf16.gmra.mxu0 %v1464
        %v1585 = vpop.f32.mrf.mxu0
        %v1586 = vadd.f32 0.0, %v1585
        %v1587 = vpop.f32.mrf.mxu0
        %v1588 = vpop.f32.mrf.mxu0
        %v1589 = vadd.f32 0.0, %v1588
        %v1590 = vpop.f32.mrf.mxu0
        %1591 = vmatprep.mubr.bf16.mxu0 0
        %1592 = vmatmul.mubr.bf16.gmra.mxu0 %v1465
        %v1593 = vpop.f32.mrf.mxu0
        %v1594 = vadd.f32 0.0, %v1593
        %v1595 = vpop.f32.mrf.mxu0
        %v1596 = vpop.f32.mrf.mxu0
        %v1597 = vadd.f32 0.0, %v1596
        %v1598 = vpop.f32.mrf.mxu0
        %1599 = vmatprep.mubr.bf16.mxu0 0
        %1600 = vmatmul.mubr.bf16.gmra.mxu0 %v1466
        %v1601 = vpop.f32.mrf.mxu0
        %v1602 = vadd.f32 0.0, %v1601
        %v1603 = vpop.f32.mrf.mxu0
        %v1604 = vpop.f32.mrf.mxu0
        %v1605 = vadd.f32 0.0, %v1604
        %v1606 = vpop.f32.mrf.mxu0
        %1607 = vmatprep.mubr.bf16.mxu0 0
        %1608 = vmatmul.mubr.bf16.gmra.mxu0 %v1467
        %v1609 = vpop.f32.mrf.mxu0
        %v1610 = vadd.f32 0.0, %v1609
        %v1611 = vpop.f32.mrf.mxu0
        %v1612 = vpop.f32.mrf.mxu0
        %v1613 = vadd.f32 0.0, %v1612
        %v1614 = vpop.f32.mrf.mxu0
        %1615 = vmatprep.mubr.bf16.mxu0 0
        %1616 = vmatmul.mubr.bf16.gmra.mxu0 %v1468
        %v1617 = vpop.f32.mrf.mxu0
        %v1618 = vadd.f32 0.0, %v1617
        %v1619 = vpop.f32.mrf.mxu0
        %v1620 = vpop.f32.mrf.mxu0
        %v1621 = vadd.f32 0.0, %v1620
        %v1622 = vpop.f32.mrf.mxu0
        %1623 = vmatprep.mubr.bf16.mxu0 0
        %1624 = vmatmul.mubr.bf16.gmra.mxu0 %v1469
        %v1625 = vpop.f32.mrf.mxu0
        %v1626 = vadd.f32 0.0, %v1625
        %v1627 = vpop.f32.mrf.mxu0
        %v1628 = vpop.f32.mrf.mxu0
        %v1629 = vadd.f32 0.0, %v1628
        %v1630 = vpop.f32.mrf.mxu0
        %1631 = vmatprep.mubr.bf16.mxu0 0
        %1632 = vmatmul.mubr.bf16.gmra.mxu0 %v1470
        %v1633 = vpop.f32.mrf.mxu0
        %v1634 = vadd.f32 0.0, %v1633
        %v1635 = vpop.f32.mrf.mxu0
        %v1636 = vpop.f32.mrf.mxu0
        %v1637 = vadd.f32 0.0, %v1636
        %v1638 = vpop.f32.mrf.mxu0
        %1639 = vmatprep.mubr.bf16.mxu0 0
        %1640 = vmatmul.mubr.bf16.gmra.mxu0 %v1471
        %v1641 = vpop.f32.mrf.mxu0
        %v1642 = vadd.f32 0.0, %v1641
        %v1643 = vpop.f32.mrf.mxu0
        %v1644 = vpop.f32.mrf.mxu0
        %v1645 = vadd.f32 0.0, %v1644
        %v1646 = vpop.f32.mrf.mxu0
        %1647 = vmatprep.mubr.bf16.mxu0 0
        %1648 = vmatmul.mubr.bf16.gmra.mxu0 %v1472
        %v1649 = vpop.f32.mrf.mxu0
        %v1650 = vadd.f32 0.0, %v1649
        %v1651 = vpop.f32.mrf.mxu0
        %v1652 = vpop.f32.mrf.mxu0
        %v1653 = vadd.f32 0.0, %v1652
        %v1654 = vpop.f32.mrf.mxu0
        %1655 = vmatprep.mubr.bf16.mxu0 0
        %1656 = vmatmul.mubr.bf16.gmra.mxu0 %v1473
        %v1657 = vpop.f32.mrf.mxu0
        %v1658 = vadd.f32 0.0, %v1657
        %v1659 = vpop.f32.mrf.mxu0
        %v1660 = vpop.f32.mrf.mxu0
        %v1661 = vadd.f32 0.0, %v1660
        %v1662 = vpop.f32.mrf.mxu0
        %1663 = vmatprep.mubr.bf16.mxu0 0
        %1664 = vmatmul.mubr.bf16.gmra.mxu0 %v1474
        %v1665 = vpop.f32.mrf.mxu0
        %v1666 = vadd.f32 0.0, %v1665
        %v1667 = vpop.f32.mrf.mxu0
        %v1668 = vpop.f32.mrf.mxu0
        %v1669 = vadd.f32 0.0, %v1668
        %v1670 = vpop.f32.mrf.mxu0
        %1671 = vmatprep.mubr.bf16.mxu0 0
        %1672 = vmatmul.mubr.bf16.gmra.mxu0 %v1475
        %v1673 = vpop.f32.mrf.mxu0
        %v1674 = vadd.f32 0.0, %v1673
        %v1675 = vpop.f32.mrf.mxu0
        %v1676 = vpop.f32.mrf.mxu0
        %v1677 = vadd.f32 0.0, %v1676
        %v1678 = vpop.f32.mrf.mxu0
        %1679 = vmatprep.mubr.bf16.mxu0 0
        %1680 = vmatmul.mubr.bf16.gmra.mxu0 %v1476
        %v1681 = vpop.f32.mrf.mxu0
        %v1682 = vadd.f32 0.0, %v1681
        %v1683 = vpop.f32.mrf.mxu0
        %v1684 = vpop.f32.mrf.mxu0
        %v1685 = vadd.f32 0.0, %v1684
        %v1686 = vpop.f32.mrf.mxu0
        %1687 = vmatprep.mubr.bf16.mxu0 0
        %1688 = vmatmul.mubr.bf16.gmra.mxu0 %v1477
        %v1689 = vpop.f32.mrf.mxu0
        %v1690 = vadd.f32 0.0, %v1689
        %v1691 = vpop.f32.mrf.mxu0
        %v1692 = vpop.f32.mrf.mxu0
        %v1693 = vadd.f32 0.0, %v1692
        %v1694 = vpop.f32.mrf.mxu0
        %1695 = vmatprep.mubr.bf16.mxu0 0
        %1696 = vmatmul.mubr.bf16.gmra.mxu0 %v1478
        %v1697 = vpop.f32.mrf.mxu0
        %v1698 = vadd.f32 0.0, %v1697
        %v1699 = vpop.f32.mrf.mxu0
        %v1700 = vpop.f32.mrf.mxu0
        %v1701 = vadd.f32 0.0, %v1700
        %v1702 = vpop.f32.mrf.mxu0
        %1703 = vdwg.mxu0
        %v1720 = vunpack.c.l.b16 %v1335
        %v1721 = vunpack.c.l.b16 %v1336
        %v1722 = vunpack.c.l.b16 %v1337
        %v1723 = vunpack.c.l.b16 %v1338
        %v1724 = vunpack.c.l.b16 %v1339
        %v1725 = vunpack.c.l.b16 %v1340
        %v1726 = vunpack.c.l.b16 %v1341
        %v1727 = vunpack.c.l.b16 %v1342
        %v1728 = vunpack.c.l.b16 %v1343
        %v1729 = vunpack.c.l.b16 %v1344
        %v1730 = vunpack.c.l.b16 %v1345
        %v1731 = vunpack.c.l.b16 %v1346
        %v1732 = vunpack.c.l.b16 %v1347
        %v1733 = vunpack.c.l.b16 %v1348
        %v1734 = vunpack.c.l.b16 %v1349
        %v1735 = vunpack.c.l.b16 %v1350
        %v1736 = vpack.c.b16 %v1721, %v1720
        %v1737 = vpack.c.b16 %v1723, %v1722
        %v1738 = vpack.c.b16 %v1725, %v1724
        %v1739 = vpack.c.b16 %v1727, %v1726
        %v1740 = vpack.c.b16 %v1729, %v1728
        %v1741 = vpack.c.b16 %v1731, %v1730
        %v1742 = vpack.c.b16 %v1733, %v1732
        %v1743 = vpack.c.b16 %v1735, %v1734
        %1752 = vmatprep.subr.bf16.mxu0 0
        %1753 = vmatpush1.bf16.msra.mxu0 %v1743
        %1754 = vmatprep.subr.bf16.mxu0 0
        %1755 = vmatpush1.bf16.msra.mxu0 %v1742
        %1756 = vmatprep.subr.bf16.mxu0 0
        %1757 = vmatpush1.bf16.msra.mxu0 %v1741
        %1758 = vmatprep.subr.bf16.mxu0 0
        %1759 = vmatpush1.bf16.msra.mxu0 %v1740
        %1760 = vmatprep.subr.bf16.mxu0 0
        %1761 = vmatpush1.bf16.msra.mxu0 %v1739
        %1762 = vmatprep.subr.bf16.mxu0 0
        %1763 = vmatpush1.bf16.msra.mxu0 %v1738
        %1764 = vmatprep.subr.bf16.mxu0 0
        %1765 = vmatpush1.bf16.msra.mxu0 %v1737
        %1766 = vmatprep.subr.bf16.mxu0 0
        %1767 = vmatpush1.bf16.msra.mxu0 %v1736
        %1768 = vmatprep.subr.bf16.mxu0 0
        %1769 = vmatpush2.bf16.msra.mxu0 0
        %1770 = vmatprep.subr.bf16.mxu0 0
        %1771 = vmatpush2.bf16.msra.mxu0 0
        %1772 = vmatprep.subr.bf16.mxu0 0
        %1773 = vmatpush2.bf16.msra.mxu0 0
        %1774 = vmatprep.subr.bf16.mxu0 0
        %1775 = vmatpush2.bf16.msra.mxu0 0
        %1776 = vmatprep.subr.bf16.mxu0 0
        %1777 = vmatpush2.bf16.msra.mxu0 0
        %1778 = vmatprep.subr.bf16.mxu0 0
        %1779 = vmatpush2.bf16.msra.mxu0 0
        %1780 = vmatprep.subr.bf16.mxu0 0
        %1781 = vmatpush2.bf16.msra.mxu0 0
        %1782 = vmatprep.subr.bf16.mxu0 0
        %1783 = vmatpush2.bf16.msra.mxu0 0
        %1784 = vmatprep.mubr.bf16.mxu0 0
        %1785 = vmatmul.mubr.bf16.gmra.mxu0 %v1319
        %v1786 = vpop.f32.mrf.mxu0
        %v1787 = vadd.f32 %v1578, %v1786
        %v1788 = vpop.f32.mrf.mxu0
        %v1789 = vpop.f32.mrf.mxu0
        %v1790 = vadd.f32 %v1581, %v1789
        %v1791 = vpop.f32.mrf.mxu0
        %1792 = vmatprep.mubr.bf16.mxu0 0
        %1793 = vmatmul.mubr.bf16.gmra.mxu0 %v1320
        %v1794 = vpop.f32.mrf.mxu0
        %v1795 = vadd.f32 %v1586, %v1794
        %v1796 = vpop.f32.mrf.mxu0
        %v1797 = vpop.f32.mrf.mxu0
        %v1798 = vadd.f32 %v1589, %v1797
        %v1799 = vpop.f32.mrf.mxu0
        %1800 = vmatprep.mubr.bf16.mxu0 0
        %1801 = vmatmul.mubr.bf16.gmra.mxu0 %v1321
        %v1802 = vpop.f32.mrf.mxu0
        %v1803 = vadd.f32 %v1594, %v1802
        %v1804 = vpop.f32.mrf.mxu0
        %v1805 = vpop.f32.mrf.mxu0
        %v1806 = vadd.f32 %v1597, %v1805
        %v1807 = vpop.f32.mrf.mxu0
        %1808 = vmatprep.mubr.bf16.mxu0 0
        %1809 = vmatmul.mubr.bf16.gmra.mxu0 %v1322
        %v1810 = vpop.f32.mrf.mxu0
        %v1811 = vadd.f32 %v1602, %v1810
        %v1812 = vpop.f32.mrf.mxu0
        %v1813 = vpop.f32.mrf.mxu0
        %v1814 = vadd.f32 %v1605, %v1813
        %v1815 = vpop.f32.mrf.mxu0
        %1816 = vmatprep.mubr.bf16.mxu0 0
        %1817 = vmatmul.mubr.bf16.gmra.mxu0 %v1323
        %v1818 = vpop.f32.mrf.mxu0
        %v1819 = vadd.f32 %v1610, %v1818
        %v1820 = vpop.f32.mrf.mxu0
        %v1821 = vpop.f32.mrf.mxu0
        %v1822 = vadd.f32 %v1613, %v1821
        %v1823 = vpop.f32.mrf.mxu0
        %1824 = vmatprep.mubr.bf16.mxu0 0
        %1825 = vmatmul.mubr.bf16.gmra.mxu0 %v1324
        %v1826 = vpop.f32.mrf.mxu0
        %v1827 = vadd.f32 %v1618, %v1826
        %v1828 = vpop.f32.mrf.mxu0
        %v1829 = vpop.f32.mrf.mxu0
        %v1830 = vadd.f32 %v1621, %v1829
        %v1831 = vpop.f32.mrf.mxu0
        %1832 = vmatprep.mubr.bf16.mxu0 0
        %1833 = vmatmul.mubr.bf16.gmra.mxu0 %v1325
        %v1834 = vpop.f32.mrf.mxu0
        %v1835 = vadd.f32 %v1626, %v1834
        %v1836 = vpop.f32.mrf.mxu0
        %v1837 = vpop.f32.mrf.mxu0
        %v1838 = vadd.f32 %v1629, %v1837
        %v1839 = vpop.f32.mrf.mxu0
        %1840 = vmatprep.mubr.bf16.mxu0 0
        %1841 = vmatmul.mubr.bf16.gmra.mxu0 %v1326
        %v1842 = vpop.f32.mrf.mxu0
        %v1843 = vadd.f32 %v1634, %v1842
        %v1844 = vpop.f32.mrf.mxu0
        %v1845 = vpop.f32.mrf.mxu0
        %v1846 = vadd.f32 %v1637, %v1845
        %v1847 = vpop.f32.mrf.mxu0
        %1848 = vmatprep.mubr.bf16.mxu0 0
        %1849 = vmatmul.mubr.bf16.gmra.mxu0 %v1327
        %v1850 = vpop.f32.mrf.mxu0
        %v1851 = vadd.f32 %v1642, %v1850
        %v1852 = vpop.f32.mrf.mxu0
        %v1853 = vpop.f32.mrf.mxu0
        %v1854 = vadd.f32 %v1645, %v1853
        %v1855 = vpop.f32.mrf.mxu0
        %1856 = vmatprep.mubr.bf16.mxu0 0
        %1857 = vmatmul.mubr.bf16.gmra.mxu0 %v1328
        %v1858 = vpop.f32.mrf.mxu0
        %v1859 = vadd.f32 %v1650, %v1858
        %v1860 = vpop.f32.mrf.mxu0
        %v1861 = vpop.f32.mrf.mxu0
        %v1862 = vadd.f32 %v1653, %v1861
        %v1863 = vpop.f32.mrf.mxu0
        %1864 = vmatprep.mubr.bf16.mxu0 0
        %1865 = vmatmul.mubr.bf16.gmra.mxu0 %v1329
        %v1866 = vpop.f32.mrf.mxu0
        %v1867 = vadd.f32 %v1658, %v1866
        %v1868 = vpop.f32.mrf.mxu0
        %v1869 = vpop.f32.mrf.mxu0
        %v1870 = vadd.f32 %v1661, %v1869
        %v1871 = vpop.f32.mrf.mxu0
        %1872 = vmatprep.mubr.bf16.mxu0 0
        %1873 = vmatmul.mubr.bf16.gmra.mxu0 %v1330
        %v1874 = vpop.f32.mrf.mxu0
        %v1875 = vadd.f32 %v1666, %v1874
        %v1876 = vpop.f32.mrf.mxu0
        %v1877 = vpop.f32.mrf.mxu0
        %v1878 = vadd.f32 %v1669, %v1877
        %v1879 = vpop.f32.mrf.mxu0
        %1880 = vmatprep.mubr.bf16.mxu0 0
        %1881 = vmatmul.mubr.bf16.gmra.mxu0 %v1331
        %v1882 = vpop.f32.mrf.mxu0
        %v1883 = vadd.f32 %v1674, %v1882
        %v1884 = vpop.f32.mrf.mxu0
        %v1885 = vpop.f32.mrf.mxu0
        %v1886 = vadd.f32 %v1677, %v1885
        %v1887 = vpop.f32.mrf.mxu0
        %1888 = vmatprep.mubr.bf16.mxu0 0
        %1889 = vmatmul.mubr.bf16.gmra.mxu0 %v1332
        %v1890 = vpop.f32.mrf.mxu0
        %v1891 = vadd.f32 %v1682, %v1890
        %v1892 = vpop.f32.mrf.mxu0
        %v1893 = vpop.f32.mrf.mxu0
        %v1894 = vadd.f32 %v1685, %v1893
        %v1895 = vpop.f32.mrf.mxu0
        %1896 = vmatprep.mubr.bf16.mxu0 0
        %1897 = vmatmul.mubr.bf16.gmra.mxu0 %v1333
        %v1898 = vpop.f32.mrf.mxu0
        %v1899 = vadd.f32 %v1690, %v1898
        %v1900 = vpop.f32.mrf.mxu0
        %v1901 = vpop.f32.mrf.mxu0
        %v1902 = vadd.f32 %v1693, %v1901
        %v1903 = vpop.f32.mrf.mxu0
        %1904 = vmatprep.mubr.bf16.mxu0 0
        %1905 = vmatmul.mubr.bf16.gmra.mxu0 %v1334
        %v1906 = vpop.f32.mrf.mxu0
        %v1907 = vadd.f32 %v1698, %v1906
        %v1908 = vpop.f32.mrf.mxu0
        %v1909 = vpop.f32.mrf.mxu0
        %v1910 = vadd.f32 %v1701, %v1909
        %v1911 = vpop.f32.mrf.mxu0
        %1912 = vdwg.mxu0
        %v1913 = vld [vmem:[%s8] sm:$0x1]
        %v1915 = vlaneseq
        %v1916 = vshrl.u32 %v1915, 7
        %v1917 = vsub.s32 0, %v1916
        %v1918 = vrot.slane %v1913, %v1917
        %v1920 = vadd.f32 %v1787, %v1918
        %v1921 = vadd.f32 %v1790, %v1918
        %v1922 = vadd.f32 %v1795, %v1918
        %v1923 = vadd.f32 %v1798, %v1918
        %v1924 = vadd.f32 %v1803, %v1918
        %v1925 = vadd.f32 %v1806, %v1918
        %v1926 = vadd.f32 %v1811, %v1918
        %v1927 = vadd.f32 %v1814, %v1918
        %v1928 = vadd.f32 %v1819, %v1918
        %v1929 = vadd.f32 %v1822, %v1918
        %v1930 = vadd.f32 %v1827, %v1918
        %v1931 = vadd.f32 %v1830, %v1918
        %v1932 = vadd.f32 %v1835, %v1918
        %v1933 = vadd.f32 %v1838, %v1918
        %v1934 = vadd.f32 %v1843, %v1918
        %v1935 = vadd.f32 %v1846, %v1918
        %v1936 = vadd.f32 %v1851, %v1918
        %v1937 = vadd.f32 %v1854, %v1918
        %v1938 = vadd.f32 %v1859, %v1918
        %v1939 = vadd.f32 %v1862, %v1918
        %v1940 = vadd.f32 %v1867, %v1918
        %v1941 = vadd.f32 %v1870, %v1918
        %v1942 = vadd.f32 %v1875, %v1918
        %v1943 = vadd.f32 %v1878, %v1918
        %v1944 = vadd.f32 %v1883, %v1918
        %v1945 = vadd.f32 %v1886, %v1918
        %v1946 = vadd.f32 %v1891, %v1918
        %v1947 = vadd.f32 %v1894, %v1918
        %v1948 = vadd.f32 %v1899, %v1918
        %v1949 = vadd.f32 %v1902, %v1918
        %v1950 = vadd.f32 %v1907, %v1918
        %v1951 = vadd.f32 %v1910, %v1918
        %v1952 = vmax.f32 %v1920, 0.0
        %v1953 = vmax.f32 %v1921, 0.0
        %v1954 = vmax.f32 %v1922, 0.0
        %v1955 = vmax.f32 %v1923, 0.0
        %v1956 = vmax.f32 %v1924, 0.0
        %v1957 = vmax.f32 %v1925, 0.0
        %v1958 = vmax.f32 %v1926, 0.0
        %v1959 = vmax.f32 %v1927, 0.0
        %v1960 = vmax.f32 %v1928, 0.0
        %v1961 = vmax.f32 %v1929, 0.0
        %v1962 = vmax.f32 %v1930, 0.0
        %v1963 = vmax.f32 %v1931, 0.0
        %v1964 = vmax.f32 %v1932, 0.0
        %v1965 = vmax.f32 %v1933, 0.0
        %v1966 = vmax.f32 %v1934, 0.0
        %v1967 = vmax.f32 %v1935, 0.0
        %v1968 = vmax.f32 %v1936, 0.0
        %v1969 = vmax.f32 %v1937, 0.0
        %v1970 = vmax.f32 %v1938, 0.0
        %v1971 = vmax.f32 %v1939, 0.0
        %v1972 = vmax.f32 %v1940, 0.0
        %v1973 = vmax.f32 %v1941, 0.0
        %v1974 = vmax.f32 %v1942, 0.0
        %v1975 = vmax.f32 %v1943, 0.0
        %v1976 = vmax.f32 %v1944, 0.0
        %v1977 = vmax.f32 %v1945, 0.0
        %v1978 = vmax.f32 %v1946, 0.0
        %v1979 = vmax.f32 %v1947, 0.0
        %v1980 = vmax.f32 %v1948, 0.0
        %v1981 = vmax.f32 %v1949, 0.0
        %v1982 = vmax.f32 %v1950, 0.0
        %v1983 = vmax.f32 %v1951, 0.0
        %v1984 = vpack.c.bf16 %v1953, %v1952
        %v1985 = vpack.c.bf16 %v1955, %v1954
        %v1986 = vpack.c.bf16 %v1957, %v1956
        %v1987 = vpack.c.bf16 %v1959, %v1958
        %v1988 = vpack.c.bf16 %v1961, %v1960
        %v1989 = vpack.c.bf16 %v1963, %v1962
        %v1990 = vpack.c.bf16 %v1965, %v1964
        %v1991 = vpack.c.bf16 %v1967, %v1966
        %v1992 = vpack.c.bf16 %v1969, %v1968
        %v1993 = vpack.c.bf16 %v1971, %v1970
        %v1994 = vpack.c.bf16 %v1973, %v1972
        %v1995 = vpack.c.bf16 %v1975, %v1974
        %v1996 = vpack.c.bf16 %v1977, %v1976
        %v1997 = vpack.c.bf16 %v1979, %v1978
        %v1998 = vpack.c.bf16 %v1981, %v1980
        %v1999 = vpack.c.bf16 %v1983, %v1982
        %v2016 = vunpack.c.l.b16 %v1984
        %v2017 = vunpack.c.h.b16 %v1984
        %v2018 = vunpack.c.l.b16 %v1985
        %v2019 = vunpack.c.h.b16 %v1985
        %v2020 = vunpack.c.l.b16 %v1986
        %v2021 = vunpack.c.h.b16 %v1986
        %v2022 = vunpack.c.l.b16 %v1987
        %v2023 = vunpack.c.h.b16 %v1987
        %v2024 = vunpack.c.l.b16 %v1988
        %v2025 = vunpack.c.h.b16 %v1988
        %v2026 = vunpack.c.l.b16 %v1989
        %v2027 = vunpack.c.h.b16 %v1989
        %v2028 = vunpack.c.l.b16 %v1990
        %v2029 = vunpack.c.h.b16 %v1990
        %v2030 = vunpack.c.l.b16 %v1991
        %v2031 = vunpack.c.h.b16 %v1991
        %v2032 = vunpack.c.l.b16 %v1992
        %v2033 = vunpack.c.h.b16 %v1992
        %v2034 = vunpack.c.l.b16 %v1993
        %v2035 = vunpack.c.h.b16 %v1993
        %v2036 = vunpack.c.l.b16 %v1994
        %v2037 = vunpack.c.h.b16 %v1994
        %v2038 = vunpack.c.l.b16 %v1995
        %v2039 = vunpack.c.h.b16 %v1995
        %v2040 = vunpack.c.l.b16 %v1996
        %v2041 = vunpack.c.h.b16 %v1996
        %v2042 = vunpack.c.l.b16 %v1997
        %v2043 = vunpack.c.h.b16 %v1997
        %v2044 = vunpack.c.l.b16 %v1998
        %v2045 = vunpack.c.h.b16 %v1998
        %v2046 = vunpack.c.l.b16 %v1999
        %v2047 = vunpack.c.h.b16 %v1999
        %v2048 = vpack.c.b16 %v2016, %v2016
        %v2049 = vpack.c.b16 %v2017, %v2017
        %v2050 = vpack.c.b16 %v2018, %v2018
        %v2051 = vpack.c.b16 %v2019, %v2019
        %v2052 = vpack.c.b16 %v2020, %v2020
        %v2053 = vpack.c.b16 %v2021, %v2021
        %v2054 = vpack.c.b16 %v2022, %v2022
        %v2055 = vpack.c.b16 %v2023, %v2023
        %v2056 = vpack.c.b16 %v2024, %v2024
        %v2057 = vpack.c.b16 %v2025, %v2025
        %v2058 = vpack.c.b16 %v2026, %v2026
        %v2059 = vpack.c.b16 %v2027, %v2027
        %v2060 = vpack.c.b16 %v2028, %v2028
        %v2061 = vpack.c.b16 %v2029, %v2029
        %v2062 = vpack.c.b16 %v2030, %v2030
        %v2063 = vpack.c.b16 %v2031, %v2031
        %v2064 = vpack.c.b16 %v2032, %v2032
        %v2065 = vpack.c.b16 %v2033, %v2033
        %v2066 = vpack.c.b16 %v2034, %v2034
        %v2067 = vpack.c.b16 %v2035, %v2035
        %v2068 = vpack.c.b16 %v2036, %v2036
        %v2069 = vpack.c.b16 %v2037, %v2037
        %v2070 = vpack.c.b16 %v2038, %v2038
        %v2071 = vpack.c.b16 %v2039, %v2039
        %v2072 = vpack.c.b16 %v2040, %v2040
        %v2073 = vpack.c.b16 %v2041, %v2041
        %v2074 = vpack.c.b16 %v2042, %v2042
        %v2075 = vpack.c.b16 %v2043, %v2043
        %v2076 = vpack.c.b16 %v2044, %v2044
        %v2077 = vpack.c.b16 %v2045, %v2045
        %v2078 = vpack.c.b16 %v2046, %v2046
        %v2079 = vpack.c.b16 %v2047, %v2047
        %2112 = vst [vmem:[%s438] sm:$0xf] %v2048
        %2113 = vst [vmem:[%s438 + $0x4] sm:$0xf] %v2049
        %2114 = vst [vmem:[%s438 + $0x8] sm:$0xf] %v2050
        %2115 = vst [vmem:[%s438 + $0xc] sm:$0xf] %v2051
        %2116 = vst [vmem:[%s438 + $0x10] sm:$0xf] %v2052
        %2117 = vst [vmem:[%s438 + $0x14] sm:$0xf] %v2053
        %2118 = vst [vmem:[%s438 + $0x18] sm:$0xf] %v2054
        %2119 = vst [vmem:[%s438 + $0x1c] sm:$0xf] %v2055
        %2120 = vst [vmem:[%s438 + $0x20] sm:$0xf] %v2056
        %2121 = vst [vmem:[%s438 + $0x24] sm:$0xf] %v2057
        %2122 = vst [vmem:[%s438 + $0x28] sm:$0xf] %v2058
        %2123 = vst [vmem:[%s438 + $0x2c] sm:$0xf] %v2059
        %2124 = vst [vmem:[%s438 + $0x30] sm:$0xf] %v2060
        %2125 = vst [vmem:[%s438 + $0x34] sm:$0xf] %v2061
        %2126 = vst [vmem:[%s438 + $0x38] sm:$0xf] %v2062
        %2127 = vst [vmem:[%s438 + $0x3c] sm:$0xf] %v2063
        %2128 = vst [vmem:[%s438 + $0x40] sm:$0xf] %v2064
        %2129 = vst [vmem:[%s438 + $0x44] sm:$0xf] %v2065
        %2130 = vst [vmem:[%s438 + $0x48] sm:$0xf] %v2066
        %2131 = vst [vmem:[%s438 + $0x4c] sm:$0xf] %v2067
        %2132 = vst [vmem:[%s438 + $0x50] sm:$0xf] %v2068
        %2133 = vst [vmem:[%s438 + $0x54] sm:$0xf] %v2069
        %2134 = vst [vmem:[%s438 + $0x58] sm:$0xf] %v2070
        %2135 = vst [vmem:[%s438 + $0x5c] sm:$0xf] %v2071
        %2136 = vst [vmem:[%s438 + $0x60] sm:$0xf] %v2072
        %2137 = vst [vmem:[%s438 + $0x64] sm:$0xf] %v2073
        %2138 = vst [vmem:[%s438 + $0x68] sm:$0xf] %v2074
        %2139 = vst [vmem:[%s438 + $0x6c] sm:$0xf] %v2075
        %2140 = vst [vmem:[%s438 + $0x70] sm:$0xf] %v2076
        %2141 = vst [vmem:[%s438 + $0x74] sm:$0xf] %v2077
        %2142 = vst [vmem:[%s438 + $0x78] sm:$0xf] %v2078
        %2143 = vst [vmem:[%s438 + $0x7c] sm:$0xf] %v2079
      $region60: #{graphsage_forward.2} parent=47 // pred_fallthru
        _
      %s2144 = smul.u32 32, %s34
      %p2145 = scmp.lt.s32.totalorder %s2144, 63
      %s2146 = scalar_select %p2145, %s2144, 63
      %s2147 = smul.addr %s2146, 4
      %s2148 = scalar_lea.vmem %s9, %s2147
      // Predicated region
      $region61: #{graphsage_forward.2} parent=47 // pred_check
        %p2149 = pneg %p245
      $region62: #{graphsage_forward.2} parent=47 // pred_check_branch
        %2151 = sbr.rel (%p2149) target = $region64
      $region63: #{graphsage_forward.2} parent=47 // pred_region
        %s2152 = smul.u32 32, %s34
      $region64: #{graphsage_forward.2} parent=47 // pred_fallthru
        _
    $region48: #{graphsage_forward.2} parent=5 // pred_fallthru
      _
    %p2153 = scmp.le.s32.totalorder 2, %s25
    // Predicated region
    $region65: #{graphsage_forward.2} parent=5 // pred_check
      %p2154 = pneg %p2153
    $region66: #{graphsage_forward.2} parent=5 // pred_check_branch
      %2156 = sbr.rel (%p2154) target = $region68
    $region67: #{graphsage_forward.2} parent=5 // pred_region
      %s2157 = ssub.s32 %s25, 2
      // Predicated region
      $region69: #{graphsage_forward.2} parent=67 // pred_check
        %p2158 = pneg %p251
      $region70: #{graphsage_forward.2} parent=67 // pred_check_branch
        %2160 = sbr.rel (%p2158) target = $region72
      $region71: #{graphsage_forward.2} parent=67 // pred_region
        %s2161 = smul.u32 32, %s36
        %p2162 = scmp.lt.s32.totalorder %s2161, 63
        %s2163 = scalar_select %p2162, %s2161, 63
        %s2164 = smul.addr %s2163, 4
        %s2165 = scalar_lea.vmem %s9, %s2164
      $region72: #{graphsage_forward.2} parent=67 // pred_fallthru
        _
    $region68: #{graphsage_forward.2} parent=5 // pred_fallthru
      _
  $region6: #{graphsage_forward.2} parent=0 // loop_footer
    %s29 = sadd.s32 1, %s25
  $region7: #{graphsage_forward.2} parent=0 // loop_footer_branch
    %24 = sbr.rel target = $region3
  $region8: #{graphsage_forward.2} parent=0 // loop_exit
    _

// kernel: graphsage_forward.3
$region0: #{graphsage_forward.3}
  #allocation0 [shape = 'u32[]', space=smem, size = 0x4, offset = 0x4, fixed_abs, tag = 'smem constant byte address 0x4 - core index']
  #allocation1 [shape = 'u32[144,128]{1,0:T(1,128)}', space=vmem, size = 0x12000, scoped, tag = 'internal scratch']
  #allocation2 [shape = 'f32[256,128]{1,0:T(8,128)}', space=vmem, size = 0x20000, scoped, tag = 'scratch operand']
  #allocation3 [shape = 's32[1]{0}', space=sflag, size = 0x4, scoped, tag = 'scoped memory for graphsage_forward.3']
  #allocation4 [shape = 'u8[1024]{0}', space=smem, size = 0x400, scoped, tag = 'prefetched SMEM operand 0']
  #allocation5 [shape = 'u8[512]{0}', space=smem, size = 0x200, scoped, tag = 'prefetched SMEM operand 1']
  %s0 = inlined_call_operand.vmem [shape: s32[2,2], index: 0, kind: input, shape index: {}]
  %s1 = inlined_call_operand.vmem [shape: s32[2], index: 1, kind: input, shape index: {}]
  %s2 = inlined_call_operand.vmem [shape: bf16[2,2,256,256], index: 2, kind: input, shape index: {}]
  %s3 = inlined_call_operand.vmem [shape: bf16[512,128], index: 3, kind: input, shape index: {}, may-alias: {3,5}]
  %s4 = inlined_call_operand.vmem [shape: f32[512,1], index: 4, kind: input, shape index: {}]
  %s5 = inlined_call_operand.vmem [shape: bf16[512,128], index: 5, kind: input, shape index: {}, may-alias: {3,5}]
  %s6 = inlined_call_operand.vmem [shape: bf16[128,128], index: 6, kind: input, shape index: {}]
  %s7 = inlined_call_operand.vmem [shape: bf16[128,128], index: 7, kind: input, shape index: {}]
  %s8 = inlined_call_operand.vmem [shape: f32[1,128], index: 8, kind: input, shape index: {}]
  %s9 = inlined_call_operand.hbm [shape: f32[512,128], index: 9, kind: output, shape index: {}]
  %s10 = sld [smem:[#allocation0]]
  $region73: #{graphsage_forward.3} parent=0
    _
  %s12 = ssub.s32 1, %s10
  %s13 = scalar_select 0, %s12, %s10
  %s14 = sshll.u32 %s0, 4
  %s15 = int_to_ptr.vmem [resolvable:$true] %s14
  %17 = dma.vmem_to_smem %s15, 32, [#allocation4], [#allocation3]
  %s18 = sshll.u32 %s1, 4
  %s19 = int_to_ptr.vmem [resolvable:$true] %s18
  %21 = dma.vmem_to_smem %s19, 16, [#allocation5], [#allocation3]
  %22 = dma.done [#allocation3], 48
  %23 = sfence
  $region1: #{graphsage_forward.3} parent=0
    #allocation6 [shape = 'u8[262144]{0}', space=vmem, size = 0x40000, scoped, tag = 'output window, operand 0']
    #allocation7 [shape = 's32[2]{0}', space=sflag, size = 0x8, scoped, tag = 'scoped memory for graphsage_forward.3']
    %24 = vsyncpa [#allocation7], 0
    %s25 = scalar_lea.sflag [#allocation7], 1
    %26 = vsyncpa %s25, 0
    loop: start=0, step=1, limit=6
    $region2: #{graphsage_forward.3} parent=1 // loop_pre_header
      _
    $region3: #{graphsage_forward.3} parent=1 // loop_header
      %s28 = sphi 0, %s32
      %p29 = scmp.ge.s32.totalorder %s28, 6
      %s35 = sphi 0, %s47
      %s36 = sphi 0, %s43
      %s37 = sphi 0, %s35
      %s38 = sphi 0, %s36
      %s39 = sphi 0, %s37
      %s40 = sphi 0, %s38
      %s52 = sphi 0, %s54
      %s55 = sphi 0, %s52
      %s56 = sphi 0, %s55
      %s72 = sphi 0, %s56
      %s94 = sphi 0, %s96
      %s97 = sphi 0, %s94
      %s98 = sphi 0, %s97
      %s114 = sphi 0, %s98
      %s120 = sphi 0, %s122
      %s123 = sphi 0, %s120
      %s124 = sphi 0, %s123
      %s140 = sphi 0, %s124
      %s146 = sphi 0, %s148
      %s149 = sphi 0, %s146
      %s150 = sphi 0, %s149
      %s166 = sphi 0, %s150
      %s170 = sphi 0, %s170
      %s172 = sphi 0, %s170
      %s173 = sphi 0, %s172
      %s187 = sphi 0, %s173
      %s191 = sphi 0, %s191
      %s193 = sphi 0, %s191
      %s194 = sphi 0, %s193
      %s208 = sphi 0, %s194
      %s212 = sphi 0, %s212
      %s214 = sphi 0, %s212
      %s215 = sphi 0, %s214
      %s229 = sphi 0, %s215
      %s235 = sphi 0, %s237
      %s238 = sphi 0, %s235
      %s239 = sphi 0, %s238
      %s255 = sphi 0, %s239
    $region4: #{graphsage_forward.3} parent=1 // loop_header_branch
      %31 = sbr.rel (%p29) target = $region8
    $region5: #{graphsage_forward.3} parent=1 // loop_body
      %s33 = ssub.s32 %s28, 1
      %s34 = ssub.s32 %s28, 2
      %s41 = sadd.s32 1, %s36
      %p42 = scmp.ge.s32.totalorder %s41, 2
      %s43 = scalar_select %p42, 0, %s41
      %s44 = sadd.s32 1, %s35
      %s45 = scalar_select %p42, %s44, %s35
      %p46 = scmp.ge.s32.totalorder %s45, 2
      %s47 = scalar_select %p46, 0, %s45
      %s48 = ssub.s32 %s35, %s47
      %s49 = ssub.s32 %s36, %s43
      %s50 = sor.u32 %s48, %s49
      %p51 = scmp.eq.s32.totalorder %s50, 0
      %s53 = sadd.s32 %s52, 1
      %s54 = scalar_select %p51, %s52, %s53
      %p57 = pneg %p51
      %p58 = scmp.eq.s32.totalorder %s28, 3
      %p59 = por %p57, %p58
      %p60 = scmp.ne.s32.totalorder %s52, %s55
      %p61 = scmp.eq.s32.totalorder %s28, 0
      %p62 = por %p60, %p61
      %p63 = scmp.ne.s32.totalorder %s52, %s55
      %p64 = scmp.eq.s32.totalorder %s33, 3
      %p65 = por %p63, %p64
      %p66 = scmp.ne.s32.totalorder %s55, %s56
      %p67 = scmp.eq.s32.totalorder %s33, 0
      %p68 = por %p66, %p67
      %p69 = scmp.ne.s32.totalorder %s55, %s56
      %p70 = scmp.eq.s32.totalorder %s34, 3
      %p71 = por %p69, %p70
      %p73 = scmp.ne.s32.totalorder %s56, %s72
      %p74 = scmp.eq.s32.totalorder %s34, 0
      %p75 = por %p73, %p74
      %s76 = sshra.s32 %s36, 7
      %s77 = sand.u32 %s36, 127
      %s78 = sadd.s32 %s76, %s35
      %s79 = smul.u32 %s78, 128
      %s80 = sshra.s32 %s36, 7
      %s81 = sand.u32 %s36, 127
      %s82 = sadd.s32 %s79, %s81
      %s83 = sld [smem:[#allocation4 + %s82]]
      %s84 = sshra.s32 %s43, 7
      %s85 = sand.u32 %s43, 127
      %s86 = sadd.s32 %s84, %s47
      %s87 = smul.u32 %s86, 128
      %s88 = sshra.s32 %s43, 7
      %s89 = sand.u32 %s43, 127
      %s90 = sadd.s32 %s87, %s89
      %s91 = sld [smem:[#allocation4 + %s90]]
      %s92 = ssub.s32 %s83, %s91
      %p93 = scmp.eq.s32.totalorder %s92, 0
      %s95 = sadd.s32 %s94, 1
      %s96 = scalar_select %p93, %s94, %s95
      %p99 = pneg %p93
      %p100 = scmp.eq.s32.totalorder %s28, 3
      %p101 = por %p99, %p100
      %p102 = scmp.ne.s32.totalorder %s94, %s97
      %p103 = scmp.eq.s32.totalorder %s28, 0
      %p104 = por %p102, %p103
      %p105 = scmp.ne.s32.totalorder %s94, %s97
      %p106 = scmp.eq.s32.totalorder %s33, 3
      %p107 = por %p105, %p106
      %p108 = scmp.ne.s32.totalorder %s97, %s98
      %p109 = scmp.eq.s32.totalorder %s33, 0
      %p110 = por %p108, %p109
      %p111 = scmp.ne.s32.totalorder %s97, %s98
      %p112 = scmp.eq.s32.totalorder %s34, 3
      %p113 = por %p111, %p112
      %p115 = scmp.ne.s32.totalorder %s98, %s114
      %p116 = scmp.eq.s32.totalorder %s34, 0
      %p117 = por %p115, %p116
      %s118 = ssub.s32 %s35, %s47
      %p119 = scmp.eq.s32.totalorder %s118, 0
      %s121 = sadd.s32 %s120, 1
      %s122 = scalar_select %p119, %s120, %s121
      %p125 = pneg %p119
      %p126 = scmp.eq.s32.totalorder %s28, 3
      %p127 = por %p125, %p126
      %p128 = scmp.ne.s32.totalorder %s120, %s123
      %p129 = scmp.eq.s32.totalorder %s28, 0
      %p130 = por %p128, %p129
      %p131 = scmp.ne.s32.totalorder %s120, %s123
      %p132 = scmp.eq.s32.totalorder %s33, 3
      %p133 = por %p131, %p132
      %p134 = scmp.ne.s32.totalorder %s123, %s124
      %p135 = scmp.eq.s32.totalorder %s33, 0
      %p136 = por %p134, %p135
      %p137 = scmp.ne.s32.totalorder %s123, %s124
      %p138 = scmp.eq.s32.totalorder %s34, 3
      %p139 = por %p137, %p138
      %p141 = scmp.ne.s32.totalorder %s124, %s140
      %p142 = scmp.eq.s32.totalorder %s34, 0
      %p143 = por %p141, %p142
      %s144 = ssub.s32 %s35, %s47
      %p145 = scmp.eq.s32.totalorder %s144, 0
      %s147 = sadd.s32 %s146, 1
      %s148 = scalar_select %p145, %s146, %s147
      %p151 = pneg %p145
      %p152 = scmp.eq.s32.totalorder %s28, 3
      %p153 = por %p151, %p152
      %p154 = scmp.ne.s32.totalorder %s146, %s149
      %p155 = scmp.eq.s32.totalorder %s28, 0
      %p156 = por %p154, %p155
      %p157 = scmp.ne.s32.totalorder %s146, %s149
      %p158 = scmp.eq.s32.totalorder %s33, 3
      %p159 = por %p157, %p158
      %p160 = scmp.ne.s32.totalorder %s149, %s150
      %p161 = scmp.eq.s32.totalorder %s33, 0
      %p162 = por %p160, %p161
      %p163 = scmp.ne.s32.totalorder %s149, %s150
      %p164 = scmp.eq.s32.totalorder %s34, 3
      %p165 = por %p163, %p164
      %p167 = scmp.ne.s32.totalorder %s150, %s166
      %p168 = scmp.eq.s32.totalorder %s34, 0
      %p169 = por %p167, %p168
      %s171 = sadd.s32 %s170, 1
      %p174 = scmp.eq.s32.totalorder %s28, 3
      %p175 = scmp.ne.s32.totalorder %s170, %s172
      %p176 = scmp.eq.s32.totalorder %s28, 0
      %p177 = por %p175, %p176
      %p178 = scmp.ne.s32.totalorder %s170, %s172
      %p179 = scmp.eq.s32.totalorder %s33, 3
      %p180 = por %p178, %p179
      %p181 = scmp.ne.s32.totalorder %s172, %s173
      %p182 = scmp.eq.s32.totalorder %s33, 0
      %p183 = por %p181, %p182
      %p184 = scmp.ne.s32.totalorder %s172, %s173
      %p185 = scmp.eq.s32.totalorder %s34, 3
      %p186 = por %p184, %p185
      %p188 = scmp.ne.s32.totalorder %s173, %s187
      %p189 = scmp.eq.s32.totalorder %s34, 0
      %p190 = por %p188, %p189
      %s192 = sadd.s32 %s191, 1
      %p195 = scmp.eq.s32.totalorder %s28, 3
      %p196 = scmp.ne.s32.totalorder %s191, %s193
      %p197 = scmp.eq.s32.totalorder %s28, 0
      %p198 = por %p196, %p197
      %p199 = scmp.ne.s32.totalorder %s191, %s193
      %p200 = scmp.eq.s32.totalorder %s33, 3
      %p201 = por %p199, %p200
      %p202 = scmp.ne.s32.totalorder %s193, %s194
      %p203 = scmp.eq.s32.totalorder %s33, 0
      %p204 = por %p202, %p203
      %p205 = scmp.ne.s32.totalorder %s193, %s194
      %p206 = scmp.eq.s32.totalorder %s34, 3
      %p207 = por %p205, %p206
      %p209 = scmp.ne.s32.totalorder %s194, %s208
      %p210 = scmp.eq.s32.totalorder %s34, 0
      %p211 = por %p209, %p210
      %s213 = sadd.s32 %s212, 1
      %p216 = scmp.eq.s32.totalorder %s28, 3
      %p217 = scmp.ne.s32.totalorder %s212, %s214
      %p218 = scmp.eq.s32.totalorder %s28, 0
      %p219 = por %p217, %p218
      %p220 = scmp.ne.s32.totalorder %s212, %s214
      %p221 = scmp.eq.s32.totalorder %s33, 3
      %p222 = por %p220, %p221
      %p223 = scmp.ne.s32.totalorder %s214, %s215
      %p224 = scmp.eq.s32.totalorder %s33, 0
      %p225 = por %p223, %p224
      %p226 = scmp.ne.s32.totalorder %s214, %s215
      %p227 = scmp.eq.s32.totalorder %s34, 3
      %p228 = por %p226, %p227
      %p230 = scmp.ne.s32.totalorder %s215, %s229
      %p231 = scmp.eq.s32.totalorder %s34, 0
      %p232 = por %p230, %p231
      %s233 = ssub.s32 %s35, %s47
      %p234 = scmp.eq.s32.totalorder %s233, 0
      %s236 = sadd.s32 %s235, 1
      %s237 = scalar_select %p234, %s235, %s236
      %p240 = pneg %p234
      %p241 = scmp.eq.s32.totalorder %s28, 3
      %p242 = por %p240, %p241
      %p243 = scmp.ne.s32.totalorder %s235, %s238
      %p244 = scmp.eq.s32.totalorder %s28, 0
      %p245 = por %p243, %p244
      %p246 = scmp.ne.s32.totalorder %s235, %s238
      %p247 = scmp.eq.s32.totalorder %s33, 3
      %p248 = por %p246, %p247
      %p249 = scmp.ne.s32.totalorder %s238, %s239
      %p250 = scmp.eq.s32.totalorder %s33, 0
      %p251 = por %p249, %p250
      %p252 = scmp.ne.s32.totalorder %s238, %s239
      %p253 = scmp.eq.s32.totalorder %s34, 3
      %p254 = por %p252, %p253
      %p256 = scmp.ne.s32.totalorder %s239, %s255
      %p257 = scmp.eq.s32.totalorder %s34, 0
      %p258 = por %p256, %p257
      %p259 = scmp.le.s32.totalorder 1, %s28
      %p260 = scmp.lt.s32.totalorder %s28, 5
      %p261 = pnand %p259, %p260
      %p262 = pneg %p261
      // Predicated region
      $region9: #{graphsage_forward.3} parent=5 // pred_check
        _
      $region10: #{graphsage_forward.3} parent=5 // pred_check_branch
        %264 = sbr.rel (%p261) target = $region12
      $region11: #{graphsage_forward.3} parent=5 // pred_region
        %s265 = ssub.s32 %s28, 1
        // Predicated region
        $region13: #{graphsage_forward.3} parent=11 // pred_check
          %p266 = pneg %p183
        $region14: #{graphsage_forward.3} parent=11 // pred_check_branch
          %268 = sbr.rel (%p266) target = $region16
        $region15: #{graphsage_forward.3} parent=11 // pred_region
          _
        $region16: #{graphsage_forward.3} parent=11 // pred_fallthru
          _
        // Predicated region
        $region17: #{graphsage_forward.3} parent=11 // pred_check
          %p269 = pneg %p204
        $region18: #{graphsage_forward.3} parent=11 // pred_check_branch
          %271 = sbr.rel (%p269) target = $region20
        $region19: #{graphsage_forward.3} parent=11 // pred_region
          _
        $region20: #{graphsage_forward.3} parent=11 // pred_fallthru
          _
        // Predicated region
        $region21: #{graphsage_forward.3} parent=11 // pred_check
          %p272 = pneg %p225
        $region22: #{graphsage_forward.3} parent=11 // pred_check_branch
          %274 = sbr.rel (%p272) target = $region24
        $region23: #{graphsage_forward.3} parent=11 // pred_region
          _
        $region24: #{graphsage_forward.3} parent=11 // pred_fallthru
          _
      $region12: #{graphsage_forward.3} parent=5 // pred_fallthru
        _
      %p275 = scmp.lt.s32.totalorder %s28, 4
      // Predicated region
      $region25: #{graphsage_forward.3} parent=5 // pred_check
        %p276 = pneg %p275
      $region26: #{graphsage_forward.3} parent=5 // pred_check_branch
        %278 = sbr.rel (%p276) target = $region28
      $region27: #{graphsage_forward.3} parent=5 // pred_region
        // Predicated region
        $region29: #{graphsage_forward.3} parent=27 // pred_check
          %p279 = pneg %p62
        $region30: #{graphsage_forward.3} parent=27 // pred_check_branch
          %281 = sbr.rel (%p279) target = $region32
        $region31: #{graphsage_forward.3} parent=27 // pred_region
          %p282 = scmp.lt.s32.totalorder %s35, 1
          %s283 = scalar_select %p282, %s35, 1
          %p284 = scmp.lt.s32.totalorder %s36, 1
          %s285 = scalar_select %p284, %s36, 1
          %s286 = smul.addr %s285, 64
          %s287 = smul.addr %s283, 128
          %s288 = sadd.s32 %s286, %s287
          %s289 = smul.addr %s288, 4
          %s290 = scalar_lea.vmem %s2, %s289
        $region32: #{graphsage_forward.3} parent=27 // pred_fallthru
          _
        // Predicated region
        $region33: #{graphsage_forward.3} parent=27 // pred_check
          %p291 = pneg %p104
        $region34: #{graphsage_forward.3} parent=27 // pred_check_branch
          %293 = sbr.rel (%p291) target = $region36
        $region35: #{graphsage_forward.3} parent=27 // pred_region
          %s294 = sshra.s32 %s36, 7
          %s295 = sand.u32 %s36, 127
          %s296 = sadd.s32 %s294, %s35
          %s297 = smul.u32 %s296, 128
          %s298 = sshra.s32 %s36, 7
          %s299 = sand.u32 %s36, 127
          %s300 = sadd.s32 %s297, %s299
          %s301 = sld [smem:[#allocation4 + %s300]]
          %s302 = smul.u32 32, %s301
          %p303 = scmp.lt.s32.totalorder %s302, 63
          %s304 = scalar_select %p303, %s302, 63
          %s305 = smul.addr %s304, 4
          %s306 = scalar_lea.vmem %s3, %s305
          %s307 = sshra.s32 %s36, 7
          %s308 = sand.u32 %s36, 127
          %s309 = sadd.s32 %s307, %s35
          %s310 = smul.u32 %s309, 128
          %s311 = sshra.s32 %s36, 7
          %s312 = sand.u32 %s36, 127
          %s313 = sadd.s32 %s310, %s312
          %s314 = sld [smem:[#allocation4 + %s313]]
          %s315 = smul.u32 32, %s314
        $region36: #{graphsage_forward.3} parent=27 // pred_fallthru
          _
        // Predicated region
        $region37: #{graphsage_forward.3} parent=27 // pred_check
          %p316 = pneg %p130
        $region38: #{graphsage_forward.3} parent=27 // pred_check_branch
          %318 = sbr.rel (%p316) target = $region40
        $region39: #{graphsage_forward.3} parent=27 // pred_region
          %s319 = smul.u32 32, %s35
          %p320 = scmp.lt.s32.totalorder %s319, 63
          %s321 = scalar_select %p320, %s319, 63
          %s322 = smul.addr %s321, 8
          %s323 = scalar_lea.vmem %s4, %s322
          %s324 = smul.u32 32, %s35
        $region40: #{graphsage_forward.3} parent=27 // pred_fallthru
          _
        // Predicated region
        $region41: #{graphsage_forward.3} parent=27 // pred_check
          %p325 = pneg %p156
        $region42: #{graphsage_forward.3} parent=27 // pred_check_branch
          %327 = sbr.rel (%p325) target = $region44
        $region43: #{graphsage_forward.3} parent=27 // pred_region
          %s328 = smul.u32 32, %s35
          %p329 = scmp.lt.s32.totalorder %s328, 63
          %s330 = scalar_select %p329, %s328, 63
          %s331 = smul.addr %s330, 4
          %s332 = scalar_lea.vmem %s5, %s331
          %s333 = smul.u32 32, %s35
        $region44: #{graphsage_forward.3} parent=27 // pred_fallthru
          _
      $region28: #{graphsage_forward.3} parent=5 // pred_fallthru
        _
      %p334 = scmp.le.s32.totalorder 1, %s28
      %p335 = scmp.lt.s32.totalorder %s28, 5
      %p336 = pnand %p334, %p335
      %p337 = pneg %p336
      // Predicated region
      $region45: #{graphsage_forward.3} parent=5 // pred_check
        _
      $region46: #{graphsage_forward.3} parent=5 // pred_check_branch
        %339 = sbr.rel (%p336) target = $region48
      $region47: #{graphsage_forward.3} parent=5 // pred_region
        %s340 = ssub.s32 %s28, 1
        %p341 = scmp.lt.s32.totalorder %s37, 1
        %s342 = scalar_select %p341, %s37, 1
        %p343 = scmp.lt.s32.totalorder %s38, 1
        %s344 = scalar_select %p343, %s38, 1
        %s345 = smul.addr %s344, 64
        %s346 = smul.addr %s342, 128
        %s347 = sadd.s32 %s345, %s346
        %s348 = smul.addr %s347, 4
        %s349 = scalar_lea.vmem %s2, %s348
        %p350 = pneg %p68
        %p351 = pneg %p65
        %s352 = sshra.s32 %s38, 7
        %s353 = sand.u32 %s38, 127
        %s354 = sadd.s32 %s352, %s37
        %s355 = smul.u32 %s354, 128
        %s356 = sshra.s32 %s38, 7
        %s357 = sand.u32 %s38, 127
        %s358 = sadd.s32 %s355, %s357
        %s359 = sld [smem:[#allocation4 + %s358]]
        %s360 = smul.u32 32, %s359
        %p361 = scmp.lt.s32.totalorder %s360, 63
        %s362 = scalar_select %p361, %s360, 63
        %s363 = smul.addr %s362, 4
        %s364 = scalar_lea.vmem %s3, %s363
        %p365 = pneg %p110
        %p366 = pneg %p107
        %s367 = smul.u32 32, %s37
        %p368 = scmp.lt.s32.totalorder %s367, 63
        %s369 = scalar_select %p368, %s367, 63
        %s370 = smul.addr %s369, 8
        %s371 = scalar_lea.vmem %s4, %s370
        %p372 = pneg %p136
        %p373 = pneg %p133
        %s374 = smul.u32 32, %s37
        %p375 = scmp.lt.s32.totalorder %s374, 63
        %s376 = scalar_select %p375, %s374, 63
        %s377 = smul.addr %s376, 4
        %s378 = scalar_lea.vmem %s5, %s377
        %p379 = pneg %p162
        %p380 = pneg %p159
        %p381 = pneg %p183
        %p382 = pneg %p180
        %p383 = pneg %p204
        %p384 = pneg %p201
        %p385 = pneg %p225
        %p386 = pneg %p222
        %p387 = pneg %p251
        %p388 = pneg %p248
        %s389 = sand.u32 %s238, 1
        %s390 = scalar_lea.sflag [#allocation7], %s389
        %s391 = sand.u32 %s238, 1
        %s392 = smul.addr %s391, 256
        %s393 = scalar_lea.vmem [#allocation6], %s392
        %p394 = scmp.lt.s32.totalorder %s37, 1
        %s395 = scalar_select %p394, %s37, 1
        %p396 = scmp.lt.s32.totalorder %s38, 1
        %s397 = scalar_select %p396, %s38, 1
        %s398 = smul.addr %s397, 64
        %s399 = smul.addr %s395, 128
        %s400 = sadd.s32 %s398, %s399
        %s401 = smul.addr %s400, 4
        %s402 = scalar_lea.vmem %s2, %s401
        %s403 = sshra.s32 %s38, 7
        %s404 = sand.u32 %s38, 127
        %s405 = sadd.s32 %s403, %s37
        %s406 = smul.u32 %s405, 128
        %s407 = sshra.s32 %s38, 7
        %s408 = sand.u32 %s38, 127
        %s409 = sadd.s32 %s406, %s408
        %s410 = sld [smem:[#allocation4 + %s409]]
        %s411 = smul.u32 32, %s410
        %p412 = scmp.lt.s32.totalorder %s411, 63
        %s413 = scalar_select %p412, %s411, 63
        %s414 = smul.addr %s413, 4
        %s415 = scalar_lea.vmem %s3, %s414
        %s416 = sshra.s32 %s38, 7
        %s417 = sand.u32 %s38, 127
        %s418 = sadd.s32 %s416, %s37
        %s419 = smul.u32 %s418, 128
        %s420 = sshra.s32 %s38, 7
        %s421 = sand.u32 %s38, 127
        %s422 = sadd.s32 %s419, %s421
        %s423 = sld [smem:[#allocation4 + %s422]]
        %s424 = smul.u32 32, %s423
        %s425 = smul.u32 32, %s37
        %p426 = scmp.lt.s32.totalorder %s425, 63
        %s427 = scalar_select %p426, %s425, 63
        %s428 = smul.addr %s427, 8
        %s429 = scalar_lea.vmem %s4, %s428
        %s430 = smul.u32 32, %s37
        %s431 = smul.u32 32, %s37
        %p432 = scmp.lt.s32.totalorder %s431, 63
        %s433 = scalar_select %p432, %s431, 63
        %s434 = smul.addr %s433, 4
        %s435 = scalar_lea.vmem %s5, %s434
        %s436 = smul.u32 32, %s37
        %s437 = smul.u32 32, %s37
        %p439 = scmp.eq.s32.totalorder %s38, 0
        // Predicated region
        $region49: #{graphsage_forward.3} parent=47 // pred_check
          %p440 = pneg %p439
        $region50: #{graphsage_forward.3} parent=47 // pred_check_branch
          %442 = sbr.rel (%p440) target = $region52
        $region51: #{graphsage_forward.3} parent=47 // pred_region
          %443 = vst [vmem:[#allocation2] sm:$0xff] 0.0
          %444 = vst [vmem:[#allocation2 + $0x8] sm:$0xff] 0.0
          %445 = vst [vmem:[#allocation2 + $0x10] sm:$0xff] 0.0
          %446 = vst [vmem:[#allocation2 + $0x18] sm:$0xff] 0.0
          %447 = vst [vmem:[#allocation2 + $0x20] sm:$0xff] 0.0
          %448 = vst [vmem:[#allocation2 + $0x28] sm:$0xff] 0.0
          %449 = vst [vmem:[#allocation2 + $0x30] sm:$0xff] 0.0
          %450 = vst [vmem:[#allocation2 + $0x38] sm:$0xff] 0.0
          %451 = vst [vmem:[#allocation2 + $0x40] sm:$0xff] 0.0
          %452 = vst [vmem:[#allocation2 + $0x48] sm:$0xff] 0.0
          %453 = vst [vmem:[#allocation2 + $0x50] sm:$0xff] 0.0
          %454 = vst [vmem:[#allocation2 + $0x58] sm:$0xff] 0.0
          %455 = vst [vmem:[#allocation2 + $0x60] sm:$0xff] 0.0
          %456 = vst [vmem:[#allocation2 + $0x68] sm:$0xff] 0.0
          %457 = vst [vmem:[#allocation2 + $0x70] sm:$0xff] 0.0
          %458 = vst [vmem:[#allocation2 + $0x78] sm:$0xff] 0.0
          %459 = vst [vmem:[#allocation2 + $0x80] sm:$0xff] 0.0
          %460 = vst [vmem:[#allocation2 + $0x88] sm:$0xff] 0.0
          %461 = vst [vmem:[#allocation2 + $0x90] sm:$0xff] 0.0
          %462 = vst [vmem:[#allocation2 + $0x98] sm:$0xff] 0.0
          %463 = vst [vmem:[#allocation2 + $0xa0] sm:$0xff] 0.0
          %464 = vst [vmem:[#allocation2 + $0xa8] sm:$0xff] 0.0
          %465 = vst [vmem:[#allocation2 + $0xb0] sm:$0xff] 0.0
          %466 = vst [vmem:[#allocation2 + $0xb8] sm:$0xff] 0.0
          %467 = vst [vmem:[#allocation2 + $0xc0] sm:$0xff] 0.0
          %468 = vst [vmem:[#allocation2 + $0xc8] sm:$0xff] 0.0
          %469 = vst [vmem:[#allocation2 + $0xd0] sm:$0xff] 0.0
          %470 = vst [vmem:[#allocation2 + $0xd8] sm:$0xff] 0.0
          %471 = vst [vmem:[#allocation2 + $0xe0] sm:$0xff] 0.0
          %472 = vst [vmem:[#allocation2 + $0xe8] sm:$0xff] 0.0
          %473 = vst [vmem:[#allocation2 + $0xf0] sm:$0xff] 0.0
          %474 = vst [vmem:[#allocation2 + $0xf8] sm:$0xff] 0.0
        $region52: #{graphsage_forward.3} parent=47 // pred_fallthru
          _
        %s475 = sld [smem:[#allocation5 + %s37]]
        %p476 = scmp.lt.s32.totalorder %s38, %s475
        // Predicated region
        $region53: #{graphsage_forward.3} parent=47 // pred_check
          %p477 = pneg %p476
        $region54: #{graphsage_forward.3} parent=47 // pred_check_branch
          %479 = sbr.rel (%p477) target = $region56
        $region55: #{graphsage_forward.3} parent=47 // pred_region
          %v480 = vld [vmem:[#allocation2] sm:$0xff]
          %v481 = vld [vmem:[#allocation2 + $0x8] sm:$0xff]
          %v482 = vld [vmem:[#allocation2 + $0x10] sm:$0xff]
          %v483 = vld [vmem:[#allocation2 + $0x18] sm:$0xff]
          %v484 = vld [vmem:[#allocation2 + $0x20] sm:$0xff]
          %v485 = vld [vmem:[#allocation2 + $0x28] sm:$0xff]
          %v486 = vld [vmem:[#allocation2 + $0x30] sm:$0xff]
          %v487 = vld [vmem:[#allocation2 + $0x38] sm:$0xff]
          %v488 = vld [vmem:[#allocation2 + $0x40] sm:$0xff]
          %v489 = vld [vmem:[#allocation2 + $0x48] sm:$0xff]
          %v490 = vld [vmem:[#allocation2 + $0x50] sm:$0xff]
          %v491 = vld [vmem:[#allocation2 + $0x58] sm:$0xff]
          %v492 = vld [vmem:[#allocation2 + $0x60] sm:$0xff]
          %v493 = vld [vmem:[#allocation2 + $0x68] sm:$0xff]
          %v494 = vld [vmem:[#allocation2 + $0x70] sm:$0xff]
          %v495 = vld [vmem:[#allocation2 + $0x78] sm:$0xff]
          %v496 = vld [vmem:[#allocation2 + $0x80] sm:$0xff]
          %v497 = vld [vmem:[#allocation2 + $0x88] sm:$0xff]
          %v498 = vld [vmem:[#allocation2 + $0x90] sm:$0xff]
          %v499 = vld [vmem:[#allocation2 + $0x98] sm:$0xff]
          %v500 = vld [vmem:[#allocation2 + $0xa0] sm:$0xff]
          %v501 = vld [vmem:[#allocation2 + $0xa8] sm:$0xff]
          %v502 = vld [vmem:[#allocation2 + $0xb0] sm:$0xff]
          %v503 = vld [vmem:[#allocation2 + $0xb8] sm:$0xff]
          %v504 = vld [vmem:[#allocation2 + $0xc0] sm:$0xff]
          %v505 = vld [vmem:[#allocation2 + $0xc8] sm:$0xff]
          %v506 = vld [vmem:[#allocation2 + $0xd0] sm:$0xff]
          %v507 = vld [vmem:[#allocation2 + $0xd8] sm:$0xff]
          %v508 = vld [vmem:[#allocation2 + $0xe0] sm:$0xff]
          %v509 = vld [vmem:[#allocation2 + $0xe8] sm:$0xff]
          %v510 = vld [vmem:[#allocation2 + $0xf0] sm:$0xff]
          %v511 = vld [vmem:[#allocation2 + $0xf8] sm:$0xff]
          %v512 = vld [vmem:[%s402] sm:$0xff]
          %v513 = vld [vmem:[%s402 + $0x8] sm:$0xff]
          %v514 = vld [vmem:[%s402 + $0x10] sm:$0xff]
          %v515 = vld [vmem:[%s402 + $0x18] sm:$0xff]
          %v516 = vld [vmem:[%s402 + $0x20] sm:$0xff]
          %v517 = vld [vmem:[%s402 + $0x28] sm:$0xff]
          %v518 = vld [vmem:[%s402 + $0x30] sm:$0xff]
          %v519 = vld [vmem:[%s402 + $0x38] sm:$0xff]
          %v520 = vld [vmem:[%s402 + $0x40] sm:$0xff]
          %v521 = vld [vmem:[%s402 + $0x48] sm:$0xff]
          %v522 = vld [vmem:[%s402 + $0x50] sm:$0xff]
          %v523 = vld [vmem:[%s402 + $0x58] sm:$0xff]
          %v524 = vld [vmem:[%s402 + $0x60] sm:$0xff]
          %v525 = vld [vmem:[%s402 + $0x68] sm:$0xff]
          %v526 = vld [vmem:[%s402 + $0x70] sm:$0xff]
          %v527 = vld [vmem:[%s402 + $0x78] sm:$0xff]
          %v528 = vld [vmem:[%s402 + $0x80] sm:$0xff]
          %v529 = vld [vmem:[%s402 + $0x88] sm:$0xff]
          %v530 = vld [vmem:[%s402 + $0x90] sm:$0xff]
          %v531 = vld [vmem:[%s402 + $0x98] sm:$0xff]
          %v532 = vld [vmem:[%s402 + $0xa0] sm:$0xff]
          %v533 = vld [vmem:[%s402 + $0xa8] sm:$0xff]
          %v534 = vld [vmem:[%s402 + $0xb0] sm:$0xff]
          %v535 = vld [vmem:[%s402 + $0xb8] sm:$0xff]
          %v536 = vld [vmem:[%s402 + $0xc0] sm:$0xff]
          %v537 = vld [vmem:[%s402 + $0xc8] sm:$0xff]
          %v538 = vld [vmem:[%s402 + $0xd0] sm:$0xff]
          %v539 = vld [vmem:[%s402 + $0xd8] sm:$0xff]
          %v540 = vld [vmem:[%s402 + $0xe0] sm:$0xff]
          %v541 = vld [vmem:[%s402 + $0xe8] sm:$0xff]
          %v542 = vld [vmem:[%s402 + $0xf0] sm:$0xff]
          %v543 = vld [vmem:[%s402 + $0xf8] sm:$0xff]
          %v544 = vld [vmem:[%s415] sm:$0xf]
          %v545 = vld [vmem:[%s415 + $0x4] sm:$0xf]
          %v546 = vld [vmem:[%s415 + $0x8] sm:$0xf]
          %v547 = vld [vmem:[%s415 + $0xc] sm:$0xf]
          %v548 = vld [vmem:[%s415 + $0x10] sm:$0xf]
          %v549 = vld [vmem:[%s415 + $0x14] sm:$0xf]
          %v550 = vld [vmem:[%s415 + $0x18] sm:$0xf]
          %v551 = vld [vmem:[%s415 + $0x1c] sm:$0xf]
          %v552 = vld [vmem:[%s415 + $0x20] sm:$0xf]
          %v553 = vld [vmem:[%s415 + $0x24] sm:$0xf]
          %v554 = vld [vmem:[%s415 + $0x28] sm:$0xf]
          %v555 = vld [vmem:[%s415 + $0x2c] sm:$0xf]
          %v556 = vld [vmem:[%s415 + $0x30] sm:$0xf]
          %v557 = vld [vmem:[%s415 + $0x34] sm:$0xf]
          %v558 = vld [vmem:[%s415 + $0x38] sm:$0xf]
          %v559 = vld [vmem:[%s415 + $0x3c] sm:$0xf]
          %v560 = vld [vmem:[%s415 + $0x40] sm:$0xf]
          %v561 = vld [vmem:[%s415 + $0x44] sm:$0xf]
          %v562 = vld [vmem:[%s415 + $0x48] sm:$0xf]
          %v563 = vld [vmem:[%s415 + $0x4c] sm:$0xf]
          %v564 = vld [vmem:[%s415 + $0x50] sm:$0xf]
          %v565 = vld [vmem:[%s415 + $0x54] sm:$0xf]
          %v566 = vld [vmem:[%s415 + $0x58] sm:$0xf]
          %v567 = vld [vmem:[%s415 + $0x5c] sm:$0xf]
          %v568 = vld [vmem:[%s415 + $0x60] sm:$0xf]
          %v569 = vld [vmem:[%s415 + $0x64] sm:$0xf]
          %v570 = vld [vmem:[%s415 + $0x68] sm:$0xf]
          %v571 = vld [vmem:[%s415 + $0x6c] sm:$0xf]
          %v572 = vld [vmem:[%s415 + $0x70] sm:$0xf]
          %v573 = vld [vmem:[%s415 + $0x74] sm:$0xf]
          %v574 = vld [vmem:[%s415 + $0x78] sm:$0xf]
          %v575 = vld [vmem:[%s415 + $0x7c] sm:$0xf]
          %v608 = vunpack.c.l.b16 %v512
          %v609 = vunpack.c.h.b16 %v512
          %v610 = vunpack.c.l.b16 %v513
          %v611 = vunpack.c.h.b16 %v513
          %v612 = vunpack.c.l.b16 %v514
          %v613 = vunpack.c.h.b16 %v514
          %v614 = vunpack.c.l.b16 %v515
          %v615 = vunpack.c.h.b16 %v515
          %v616 = vunpack.c.l.b16 %v516
          %v617 = vunpack.c.h.b16 %v516
          %v618 = vunpack.c.l.b16 %v517
          %v619 = vunpack.c.h.b16 %v517
          %v620 = vunpack.c.l.b16 %v518
          %v621 = vunpack.c.h.b16 %v518
          %v622 = vunpack.c.l.b16 %v519
          %v623 = vunpack.c.h.b16 %v519
          %v624 = vunpack.c.l.b16 %v520
          %v625 = vunpack.c.h.b16 %v520
          %v626 = vunpack.c.l.b16 %v521
          %v627 = vunpack.c.h.b16 %v521
          %v628 = vunpack.c.l.b16 %v522
          %v629 = vunpack.c.h.b16 %v522
          %v630 = vunpack.c.l.b16 %v523
          %v631 = vunpack.c.h.b16 %v523
          %v632 = vunpack.c.l.b16 %v524
          %v633 = vunpack.c.h.b16 %v524
          %v634 = vunpack.c.l.b16 %v525
          %v635 = vunpack.c.h.b16 %v525
          %v636 = vunpack.c.l.b16 %v526
          %v637 = vunpack.c.h.b16 %v526
          %v638 = vunpack.c.l.b16 %v527
          %v639 = vunpack.c.h.b16 %v527
          %v640 = vunpack.c.l.b16 %v528
          %v641 = vunpack.c.h.b16 %v528
          %v642 = vunpack.c.l.b16 %v529
          %v643 = vunpack.c.h.b16 %v529
          %v644 = vunpack.c.l.b16 %v530
          %v645 = vunpack.c.h.b16 %v530
          %v646 = vunpack.c.l.b16 %v531
          %v647 = vunpack.c.h.b16 %v531
          %v648 = vunpack.c.l.b16 %v532
          %v649 = vunpack.c.h.b16 %v532
          %v650 = vunpack.c.l.b16 %v533
          %v651 = vunpack.c.h.b16 %v533
          %v652 = vunpack.c.l.b16 %v534
          %v653 = vunpack.c.h.b16 %v534
          %v654 = vunpack.c.l.b16 %v535
          %v655 = vunpack.c.h.b16 %v535
          %v656 = vunpack.c.l.b16 %v536
          %v657 = vunpack.c.h.b16 %v536
          %v658 = vunpack.c.l.b16 %v537
          %v659 = vunpack.c.h.b16 %v537
          %v660 = vunpack.c.l.b16 %v538
          %v661 = vunpack.c.h.b16 %v538
          %v662 = vunpack.c.l.b16 %v539
          %v663 = vunpack.c.h.b16 %v539
          %v664 = vunpack.c.l.b16 %v540
          %v665 = vunpack.c.h.b16 %v540
          %v666 = vunpack.c.l.b16 %v541
          %v667 = vunpack.c.h.b16 %v541
          %v668 = vunpack.c.l.b16 %v542
          %v669 = vunpack.c.h.b16 %v542
          %v670 = vunpack.c.l.b16 %v543
          %v671 = vunpack.c.h.b16 %v543
          %v672 = vpack.c.b16 %v610, %v608
          %v673 = vpack.c.b16 %v611, %v609
          %v674 = vpack.c.b16 %v614, %v612
          %v675 = vpack.c.b16 %v615, %v613
          %v676 = vpack.c.b16 %v618, %v616
          %v677 = vpack.c.b16 %v619, %v617
          %v678 = vpack.c.b16 %v622, %v620
          %v679 = vpack.c.b16 %v623, %v621
          %v680 = vpack.c.b16 %v626, %v624
          %v681 = vpack.c.b16 %v627, %v625
          %v682 = vpack.c.b16 %v630, %v628
          %v683 = vpack.c.b16 %v631, %v629
          %v684 = vpack.c.b16 %v634, %v632
          %v685 = vpack.c.b16 %v635, %v633
          %v686 = vpack.c.b16 %v638, %v636
          %v687 = vpack.c.b16 %v639, %v637
          %v688 = vpack.c.b16 %v642, %v640
          %v689 = vpack.c.b16 %v643, %v641
          %v690 = vpack.c.b16 %v646, %v644
          %v691 = vpack.c.b16 %v647, %v645
          %v692 = vpack.c.b16 %v650, %v648
          %v693 = vpack.c.b16 %v651, %v649
          %v694 = vpack.c.b16 %v654, %v652
          %v695 = vpack.c.b16 %v655, %v653
          %v696 = vpack.c.b16 %v658, %v656
          %v697 = vpack.c.b16 %v659, %v657
          %v698 = vpack.c.b16 %v662, %v660
          %v699 = vpack.c.b16 %v663, %v661
          %v700 = vpack.c.b16 %v666, %v664
          %v701 = vpack.c.b16 %v667, %v665
          %v702 = vpack.c.b16 %v670, %v668
          %v703 = vpack.c.b16 %v671, %v669
          %v768 = vunpack.c.l.b16 %v544
          %v769 = vunpack.c.l.b16 %v545
          %v770 = vunpack.c.l.b16 %v546
          %v771 = vunpack.c.l.b16 %v547
          %v772 = vunpack.c.l.b16 %v548
          %v773 = vunpack.c.l.b16 %v549
          %v774 = vunpack.c.l.b16 %v550
          %v775 = vunpack.c.l.b16 %v551
          %v776 = vunpack.c.l.b16 %v552
          %v777 = vunpack.c.l.b16 %v553
          %v778 = vunpack.c.l.b16 %v554
          %v779 = vunpack.c.l.b16 %v555
          %v780 = vunpack.c.l.b16 %v556
          %v781 = vunpack.c.l.b16 %v557
          %v782 = vunpack.c.l.b16 %v558
          %v783 = vunpack.c.l.b16 %v559
          %v784 = vunpack.c.l.b16 %v560
          %v785 = vunpack.c.l.b16 %v561
          %v786 = vunpack.c.l.b16 %v562
          %v787 = vunpack.c.l.b16 %v563
          %v788 = vunpack.c.l.b16 %v564
          %v789 = vunpack.c.l.b16 %v565
          %v790 = vunpack.c.l.b16 %v566
          %v791 = vunpack.c.l.b16 %v567
          %v792 = vunpack.c.l.b16 %v568
          %v793 = vunpack.c.l.b16 %v569
          %v794 = vunpack.c.l.b16 %v570
          %v795 = vunpack.c.l.b16 %v571
          %v796 = vunpack.c.l.b16 %v572
          %v797 = vunpack.c.l.b16 %v573
          %v798 = vunpack.c.l.b16 %v574
          %v799 = vunpack.c.l.b16 %v575
          %v800 = vpack.c.b16 %v769, %v768
          %v801 = vpack.c.b16 %v771, %v770
          %v802 = vpack.c.b16 %v773, %v772
          %v803 = vpack.c.b16 %v775, %v774
          %v804 = vpack.c.b16 %v777, %v776
          %v805 = vpack.c.b16 %v779, %v778
          %v806 = vpack.c.b16 %v781, %v780
          %v807 = vpack.c.b16 %v783, %v782
          %v808 = vpack.c.b16 %v785, %v784
          %v809 = vpack.c.b16 %v787, %v786
          %v810 = vpack.c.b16 %v789, %v788
          %v811 = vpack.c.b16 %v791, %v790
          %v812 = vpack.c.b16 %v793, %v792
          %v813 = vpack.c.b16 %v795, %v794
          %v814 = vpack.c.b16 %v797, %v796
          %v815 = vpack.c.b16 %v799, %v798
          %832 = vmatprep.subr.bf16.mxu0 0
          %833 = vmatpush1.bf16.msra.mxu0 %v807
          %834 = vmatprep.subr.bf16.mxu0 0
          %835 = vmatpush1.bf16.msra.mxu0 %v806
          %836 = vmatprep.subr.bf16.mxu0 0
          %837 = vmatpush1.bf16.msra.mxu0 %v805
          %838 = vmatprep.subr.bf16.mxu0 0
          %839 = vmatpush1.bf16.msra.mxu0 %v804
          %840 = vmatprep.subr.bf16.mxu0 0
          %841 = vmatpush1.bf16.msra.mxu0 %v803
          %842 = vmatprep.subr.bf16.mxu0 0
          %843 = vmatpush1.bf16.msra.mxu0 %v802
          %844 = vmatprep.subr.bf16.mxu0 0
          %845 = vmatpush1.bf16.msra.mxu0 %v801
          %846 = vmatprep.subr.bf16.mxu0 0
          %847 = vmatpush1.bf16.msra.mxu0 %v800
          %848 = vmatprep.subr.bf16.mxu0 0
          %849 = vmatpush2.bf16.msra.mxu0 %v815
          %850 = vmatprep.subr.bf16.mxu0 0
          %851 = vmatpush2.bf16.msra.mxu0 %v814
          %852 = vmatprep.subr.bf16.mxu0 0
          %853 = vmatpush2.bf16.msra.mxu0 %v813
          %854 = vmatprep.subr.bf16.mxu0 0
          %855 = vmatpush2.bf16.msra.mxu0 %v812
          %856 = vmatprep.subr.bf16.mxu0 0
          %857 = vmatpush2.bf16.msra.mxu0 %v811
          %858 = vmatprep.subr.bf16.mxu0 0
          %859 = vmatpush2.bf16.msra.mxu0 %v810
          %860 = vmatprep.subr.bf16.mxu0 0
          %861 = vmatpush2.bf16.msra.mxu0 %v809
          %862 = vmatprep.subr.bf16.mxu0 0
          %863 = vmatpush2.bf16.msra.mxu0 %v808
          %864 = vmatprep.mubr.bf16.mxu0 %v673
          %865 = vmatmul.mubr.bf16.gmra.mxu0 %v672
          %v866 = vpop.f32.mrf.mxu0
          %v867 = vadd.f32 0.0, %v866
          %v868 = vpop.f32.mrf.mxu0
          %v869 = vpop.f32.mrf.mxu0
          %v870 = vadd.f32 0.0, %v869
          %v871 = vpop.f32.mrf.mxu0
          %872 = vmatprep.mubr.bf16.mxu0 %v675
          %873 = vmatmul.mubr.bf16.gmra.mxu0 %v674
          %v874 = vpop.f32.mrf.mxu0
          %v875 = vadd.f32 0.0, %v874
          %v876 = vpop.f32.mrf.mxu0
          %v877 = vpop.f32.mrf.mxu0
          %v878 = vadd.f32 0.0, %v877
          %v879 = vpop.f32.mrf.mxu0
          %880 = vmatprep.mubr.bf16.mxu0 %v677
          %881 = vmatmul.mubr.bf16.gmra.mxu0 %v676
          %v882 = vpop.f32.mrf.mxu0
          %v883 = vadd.f32 0.0, %v882
          %v884 = vpop.f32.mrf.mxu0
          %v885 = vpop.f32.mrf.mxu0
          %v886 = vadd.f32 0.0, %v885
          %v887 = vpop.f32.mrf.mxu0
          %888 = vmatprep.mubr.bf16.mxu0 %v679
          %889 = vmatmul.mubr.bf16.gmra.mxu0 %v678
          %v890 = vpop.f32.mrf.mxu0
          %v891 = vadd.f32 0.0, %v890
          %v892 = vpop.f32.mrf.mxu0
          %v893 = vpop.f32.mrf.mxu0
          %v894 = vadd.f32 0.0, %v893
          %v895 = vpop.f32.mrf.mxu0
          %896 = vmatprep.mubr.bf16.mxu0 %v681
          %897 = vmatmul.mubr.bf16.gmra.mxu0 %v680
          %v898 = vpop.f32.mrf.mxu0
          %v899 = vadd.f32 0.0, %v898
          %v900 = vpop.f32.mrf.mxu0
          %v901 = vpop.f32.mrf.mxu0
          %v902 = vadd.f32 0.0, %v901
          %v903 = vpop.f32.mrf.mxu0
          %904 = vmatprep.mubr.bf16.mxu0 %v683
          %905 = vmatmul.mubr.bf16.gmra.mxu0 %v682
          %v906 = vpop.f32.mrf.mxu0
          %v907 = vadd.f32 0.0, %v906
          %v908 = vpop.f32.mrf.mxu0
          %v909 = vpop.f32.mrf.mxu0
          %v910 = vadd.f32 0.0, %v909
          %v911 = vpop.f32.mrf.mxu0
          %912 = vmatprep.mubr.bf16.mxu0 %v685
          %913 = vmatmul.mubr.bf16.gmra.mxu0 %v684
          %v914 = vpop.f32.mrf.mxu0
          %v915 = vadd.f32 0.0, %v914
          %v916 = vpop.f32.mrf.mxu0
          %v917 = vpop.f32.mrf.mxu0
          %v918 = vadd.f32 0.0, %v917
          %v919 = vpop.f32.mrf.mxu0
          %920 = vmatprep.mubr.bf16.mxu0 %v687
          %921 = vmatmul.mubr.bf16.gmra.mxu0 %v686
          %v922 = vpop.f32.mrf.mxu0
          %v923 = vadd.f32 0.0, %v922
          %v924 = vpop.f32.mrf.mxu0
          %v925 = vpop.f32.mrf.mxu0
          %v926 = vadd.f32 0.0, %v925
          %v927 = vpop.f32.mrf.mxu0
          %928 = vmatprep.mubr.bf16.mxu0 %v689
          %929 = vmatmul.mubr.bf16.gmra.mxu0 %v688
          %v930 = vpop.f32.mrf.mxu0
          %v931 = vadd.f32 0.0, %v930
          %v932 = vpop.f32.mrf.mxu0
          %v933 = vpop.f32.mrf.mxu0
          %v934 = vadd.f32 0.0, %v933
          %v935 = vpop.f32.mrf.mxu0
          %936 = vmatprep.mubr.bf16.mxu0 %v691
          %937 = vmatmul.mubr.bf16.gmra.mxu0 %v690
          %v938 = vpop.f32.mrf.mxu0
          %v939 = vadd.f32 0.0, %v938
          %v940 = vpop.f32.mrf.mxu0
          %v941 = vpop.f32.mrf.mxu0
          %v942 = vadd.f32 0.0, %v941
          %v943 = vpop.f32.mrf.mxu0
          %944 = vmatprep.mubr.bf16.mxu0 %v693
          %945 = vmatmul.mubr.bf16.gmra.mxu0 %v692
          %v946 = vpop.f32.mrf.mxu0
          %v947 = vadd.f32 0.0, %v946
          %v948 = vpop.f32.mrf.mxu0
          %v949 = vpop.f32.mrf.mxu0
          %v950 = vadd.f32 0.0, %v949
          %v951 = vpop.f32.mrf.mxu0
          %952 = vmatprep.mubr.bf16.mxu0 %v695
          %953 = vmatmul.mubr.bf16.gmra.mxu0 %v694
          %v954 = vpop.f32.mrf.mxu0
          %v955 = vadd.f32 0.0, %v954
          %v956 = vpop.f32.mrf.mxu0
          %v957 = vpop.f32.mrf.mxu0
          %v958 = vadd.f32 0.0, %v957
          %v959 = vpop.f32.mrf.mxu0
          %960 = vmatprep.mubr.bf16.mxu0 %v697
          %961 = vmatmul.mubr.bf16.gmra.mxu0 %v696
          %v962 = vpop.f32.mrf.mxu0
          %v963 = vadd.f32 0.0, %v962
          %v964 = vpop.f32.mrf.mxu0
          %v965 = vpop.f32.mrf.mxu0
          %v966 = vadd.f32 0.0, %v965
          %v967 = vpop.f32.mrf.mxu0
          %968 = vmatprep.mubr.bf16.mxu0 %v699
          %969 = vmatmul.mubr.bf16.gmra.mxu0 %v698
          %v970 = vpop.f32.mrf.mxu0
          %v971 = vadd.f32 0.0, %v970
          %v972 = vpop.f32.mrf.mxu0
          %v973 = vpop.f32.mrf.mxu0
          %v974 = vadd.f32 0.0, %v973
          %v975 = vpop.f32.mrf.mxu0
          %976 = vmatprep.mubr.bf16.mxu0 %v701
          %977 = vmatmul.mubr.bf16.gmra.mxu0 %v700
          %v978 = vpop.f32.mrf.mxu0
          %v979 = vadd.f32 0.0, %v978
          %v980 = vpop.f32.mrf.mxu0
          %v981 = vpop.f32.mrf.mxu0
          %v982 = vadd.f32 0.0, %v981
          %v983 = vpop.f32.mrf.mxu0
          %984 = vmatprep.mubr.bf16.mxu0 %v703
          %985 = vmatmul.mubr.bf16.gmra.mxu0 %v702
          %v986 = vpop.f32.mrf.mxu0
          %v987 = vadd.f32 0.0, %v986
          %v988 = vpop.f32.mrf.mxu0
          %v989 = vpop.f32.mrf.mxu0
          %v990 = vadd.f32 0.0, %v989
          %v991 = vpop.f32.mrf.mxu0
          %992 = vdwg.mxu0
          %v993 = vadd.f32 %v480, %v867
          %v994 = vadd.f32 %v481, %v870
          %v995 = vadd.f32 %v482, %v875
          %v996 = vadd.f32 %v483, %v878
          %v997 = vadd.f32 %v484, %v883
          %v998 = vadd.f32 %v485, %v886
          %v999 = vadd.f32 %v486, %v891
          %v1000 = vadd.f32 %v487, %v894
          %v1001 = vadd.f32 %v488, %v899
          %v1002 = vadd.f32 %v489, %v902
          %v1003 = vadd.f32 %v490, %v907
          %v1004 = vadd.f32 %v491, %v910
          %v1005 = vadd.f32 %v492, %v915
          %v1006 = vadd.f32 %v493, %v918
          %v1007 = vadd.f32 %v494, %v923
          %v1008 = vadd.f32 %v495, %v926
          %v1009 = vadd.f32 %v496, %v931
          %v1010 = vadd.f32 %v497, %v934
          %v1011 = vadd.f32 %v498, %v939
          %v1012 = vadd.f32 %v499, %v942
          %v1013 = vadd.f32 %v500, %v947
          %v1014 = vadd.f32 %v501, %v950
          %v1015 = vadd.f32 %v502, %v955
          %v1016 = vadd.f32 %v503, %v958
          %v1017 = vadd.f32 %v504, %v963
          %v1018 = vadd.f32 %v505, %v966
          %v1019 = vadd.f32 %v506, %v971
          %v1020 = vadd.f32 %v507, %v974
          %v1021 = vadd.f32 %v508, %v979
          %v1022 = vadd.f32 %v509, %v982
          %v1023 = vadd.f32 %v510, %v987
          %v1024 = vadd.f32 %v511, %v990
          %1025 = vst [vmem:[#allocation2] sm:$0xff] %v993
          %1026 = vst [vmem:[#allocation2 + $0x8] sm:$0xff] %v994
          %1027 = vst [vmem:[#allocation2 + $0x10] sm:$0xff] %v995
          %1028 = vst [vmem:[#allocation2 + $0x18] sm:$0xff] %v996
          %1029 = vst [vmem:[#allocation2 + $0x20] sm:$0xff] %v997
          %1030 = vst [vmem:[#allocation2 + $0x28] sm:$0xff] %v998
          %1031 = vst [vmem:[#allocation2 + $0x30] sm:$0xff] %v999
          %1032 = vst [vmem:[#allocation2 + $0x38] sm:$0xff] %v1000
          %1033 = vst [vmem:[#allocation2 + $0x40] sm:$0xff] %v1001
          %1034 = vst [vmem:[#allocation2 + $0x48] sm:$0xff] %v1002
          %1035 = vst [vmem:[#allocation2 + $0x50] sm:$0xff] %v1003
          %1036 = vst [vmem:[#allocation2 + $0x58] sm:$0xff] %v1004
          %1037 = vst [vmem:[#allocation2 + $0x60] sm:$0xff] %v1005
          %1038 = vst [vmem:[#allocation2 + $0x68] sm:$0xff] %v1006
          %1039 = vst [vmem:[#allocation2 + $0x70] sm:$0xff] %v1007
          %1040 = vst [vmem:[#allocation2 + $0x78] sm:$0xff] %v1008
          %1041 = vst [vmem:[#allocation2 + $0x80] sm:$0xff] %v1009
          %1042 = vst [vmem:[#allocation2 + $0x88] sm:$0xff] %v1010
          %1043 = vst [vmem:[#allocation2 + $0x90] sm:$0xff] %v1011
          %1044 = vst [vmem:[#allocation2 + $0x98] sm:$0xff] %v1012
          %1045 = vst [vmem:[#allocation2 + $0xa0] sm:$0xff] %v1013
          %1046 = vst [vmem:[#allocation2 + $0xa8] sm:$0xff] %v1014
          %1047 = vst [vmem:[#allocation2 + $0xb0] sm:$0xff] %v1015
          %1048 = vst [vmem:[#allocation2 + $0xb8] sm:$0xff] %v1016
          %1049 = vst [vmem:[#allocation2 + $0xc0] sm:$0xff] %v1017
          %1050 = vst [vmem:[#allocation2 + $0xc8] sm:$0xff] %v1018
          %1051 = vst [vmem:[#allocation2 + $0xd0] sm:$0xff] %v1019
          %1052 = vst [vmem:[#allocation2 + $0xd8] sm:$0xff] %v1020
          %1053 = vst [vmem:[#allocation2 + $0xe0] sm:$0xff] %v1021
          %1054 = vst [vmem:[#allocation2 + $0xe8] sm:$0xff] %v1022
          %1055 = vst [vmem:[#allocation2 + $0xf0] sm:$0xff] %v1023
          %1056 = vst [vmem:[#allocation2 + $0xf8] sm:$0xff] %v1024
        $region56: #{graphsage_forward.3} parent=47 // pred_fallthru
          _
        %p1057 = scmp.eq.s32.totalorder %s38, 1
        // Predicated region
        $region57: #{graphsage_forward.3} parent=47 // pred_check
          %p1058 = pneg %p1057
        $region58: #{graphsage_forward.3} parent=47 // pred_check_branch
          %1060 = sbr.rel (%p1058) target = $region60
        $region59: #{graphsage_forward.3} parent=47 // pred_region
          %v1061 = vld [vmem:[#allocation2] sm:$0xff]
          %v1062 = vld [vmem:[#allocation2 + $0x8] sm:$0xff]
          %v1063 = vld [vmem:[#allocation2 + $0x10] sm:$0xff]
          %v1064 = vld [vmem:[#allocation2 + $0x18] sm:$0xff]
          %v1065 = vld [vmem:[#allocation2 + $0x20] sm:$0xff]
          %v1066 = vld [vmem:[#allocation2 + $0x28] sm:$0xff]
          %v1067 = vld [vmem:[#allocation2 + $0x30] sm:$0xff]
          %v1068 = vld [vmem:[#allocation2 + $0x38] sm:$0xff]
          %v1069 = vld [vmem:[#allocation2 + $0x40] sm:$0xff]
          %v1070 = vld [vmem:[#allocation2 + $0x48] sm:$0xff]
          %v1071 = vld [vmem:[#allocation2 + $0x50] sm:$0xff]
          %v1072 = vld [vmem:[#allocation2 + $0x58] sm:$0xff]
          %v1073 = vld [vmem:[#allocation2 + $0x60] sm:$0xff]
          %v1074 = vld [vmem:[#allocation2 + $0x68] sm:$0xff]
          %v1075 = vld [vmem:[#allocation2 + $0x70] sm:$0xff]
          %v1076 = vld [vmem:[#allocation2 + $0x78] sm:$0xff]
          %v1077 = vld [vmem:[#allocation2 + $0x80] sm:$0xff]
          %v1078 = vld [vmem:[#allocation2 + $0x88] sm:$0xff]
          %v1079 = vld [vmem:[#allocation2 + $0x90] sm:$0xff]
          %v1080 = vld [vmem:[#allocation2 + $0x98] sm:$0xff]
          %v1081 = vld [vmem:[#allocation2 + $0xa0] sm:$0xff]
          %v1082 = vld [vmem:[#allocation2 + $0xa8] sm:$0xff]
          %v1083 = vld [vmem:[#allocation2 + $0xb0] sm:$0xff]
          %v1084 = vld [vmem:[#allocation2 + $0xb8] sm:$0xff]
          %v1085 = vld [vmem:[#allocation2 + $0xc0] sm:$0xff]
          %v1086 = vld [vmem:[#allocation2 + $0xc8] sm:$0xff]
          %v1087 = vld [vmem:[#allocation2 + $0xd0] sm:$0xff]
          %v1088 = vld [vmem:[#allocation2 + $0xd8] sm:$0xff]
          %v1089 = vld [vmem:[#allocation2 + $0xe0] sm:$0xff]
          %v1090 = vld [vmem:[#allocation2 + $0xe8] sm:$0xff]
          %v1091 = vld [vmem:[#allocation2 + $0xf0] sm:$0xff]
          %v1092 = vld [vmem:[#allocation2 + $0xf8] sm:$0xff]
          %v1093 = vld [vmem:[%s429] sm:$0xff]
          %v1094 = vld [vmem:[%s429 + $0x8] sm:$0xff]
          %v1095 = vld [vmem:[%s429 + $0x10] sm:$0xff]
          %v1096 = vld [vmem:[%s429 + $0x18] sm:$0xff]
          %v1097 = vld [vmem:[%s429 + $0x20] sm:$0xff]
          %v1098 = vld [vmem:[%s429 + $0x28] sm:$0xff]
          %v1099 = vld [vmem:[%s429 + $0x30] sm:$0xff]
          %v1100 = vld [vmem:[%s429 + $0x38] sm:$0xff]
          %v1101 = vld [vmem:[%s429 + $0x40] sm:$0xff]
          %v1102 = vld [vmem:[%s429 + $0x48] sm:$0xff]
          %v1103 = vld [vmem:[%s429 + $0x50] sm:$0xff]
          %v1104 = vld [vmem:[%s429 + $0x58] sm:$0xff]
          %v1105 = vld [vmem:[%s429 + $0x60] sm:$0xff]
          %v1106 = vld [vmem:[%s429 + $0x68] sm:$0xff]
          %v1107 = vld [vmem:[%s429 + $0x70] sm:$0xff]
          %v1108 = vld [vmem:[%s429 + $0x78] sm:$0xff]
          %v1109 = vld [vmem:[%s429 + $0x80] sm:$0xff]
          %v1110 = vld [vmem:[%s429 + $0x88] sm:$0xff]
          %v1111 = vld [vmem:[%s429 + $0x90] sm:$0xff]
          %v1112 = vld [vmem:[%s429 + $0x98] sm:$0xff]
          %v1113 = vld [vmem:[%s429 + $0xa0] sm:$0xff]
          %v1114 = vld [vmem:[%s429 + $0xa8] sm:$0xff]
          %v1115 = vld [vmem:[%s429 + $0xb0] sm:$0xff]
          %v1116 = vld [vmem:[%s429 + $0xb8] sm:$0xff]
          %v1117 = vld [vmem:[%s429 + $0xc0] sm:$0xff]
          %v1118 = vld [vmem:[%s429 + $0xc8] sm:$0xff]
          %v1119 = vld [vmem:[%s429 + $0xd0] sm:$0xff]
          %v1120 = vld [vmem:[%s429 + $0xd8] sm:$0xff]
          %v1121 = vld [vmem:[%s429 + $0xe0] sm:$0xff]
          %v1122 = vld [vmem:[%s429 + $0xe8] sm:$0xff]
          %v1123 = vld [vmem:[%s429 + $0xf0] sm:$0xff]
          %v1124 = vld [vmem:[%s429 + $0xf8] sm:$0xff]
          %1126 = vset.pattern.permute.xlu0 0
          %1127 = vperm.xlu0 %1126, %v1093
          %v1128 = vpop.permute.xlu0 %1127
          %1131 = vset.pattern.permute.xlu0 0
          %1132 = vperm.xlu0 %1131, %v1094
          %v1133 = vpop.permute.xlu0 %1132
          %1136 = vset.pattern.permute.xlu0 0
          %1137 = vperm.xlu0 %1136, %v1095
          %v1138 = vpop.permute.xlu0 %1137
          %1141 = vset.pattern.permute.xlu0 0
          %1142 = vperm.xlu0 %1141, %v1096
          %v1143 = vpop.permute.xlu0 %1142
          %1146 = vset.pattern.permute.xlu0 0
          %1147 = vperm.xlu0 %1146, %v1097
          %v1148 = vpop.permute.xlu0 %1147
          %1151 = vset.pattern.permute.xlu0 0
          %1152 = vperm.xlu0 %1151, %v1098
          %v1153 = vpop.permute.xlu0 %1152
          %1156 = vset.pattern.permute.xlu0 0
          %1157 = vperm.xlu0 %1156, %v1099
          %v1158 = vpop.permute.xlu0 %1157
          %1161 = vset.pattern.permute.xlu0 0
          %1162 = vperm.xlu0 %1161, %v1100
          %v1163 = vpop.permute.xlu0 %1162
          %1166 = vset.pattern.permute.xlu0 0
          %1167 = vperm.xlu0 %1166, %v1101
          %v1168 = vpop.permute.xlu0 %1167
          %1171 = vset.pattern.permute.xlu0 0
          %1172 = vperm.xlu0 %1171, %v1102
          %v1173 = vpop.permute.xlu0 %1172
          %1176 = vset.pattern.permute.xlu0 0
          %1177 = vperm.xlu0 %1176, %v1103
          %v1178 = vpop.permute.xlu0 %1177
          %1181 = vset.pattern.permute.xlu0 0
          %1182 = vperm.xlu0 %1181, %v1104
          %v1183 = vpop.permute.xlu0 %1182
          %1186 = vset.pattern.permute.xlu0 0
          %1187 = vperm.xlu0 %1186, %v1105
          %v1188 = vpop.permute.xlu0 %1187
          %1191 = vset.pattern.permute.xlu0 0
          %1192 = vperm.xlu0 %1191, %v1106
          %v1193 = vpop.permute.xlu0 %1192
          %1196 = vset.pattern.permute.xlu0 0
          %1197 = vperm.xlu0 %1196, %v1107
          %v1198 = vpop.permute.xlu0 %1197
          %1201 = vset.pattern.permute.xlu0 0
          %1202 = vperm.xlu0 %1201, %v1108
          %v1203 = vpop.permute.xlu0 %1202
          %1206 = vset.pattern.permute.xlu0 0
          %1207 = vperm.xlu0 %1206, %v1109
          %v1208 = vpop.permute.xlu0 %1207
          %1211 = vset.pattern.permute.xlu0 0
          %1212 = vperm.xlu0 %1211, %v1110
          %v1213 = vpop.permute.xlu0 %1212
          %1216 = vset.pattern.permute.xlu0 0
          %1217 = vperm.xlu0 %1216, %v1111
          %v1218 = vpop.permute.xlu0 %1217
          %1221 = vset.pattern.permute.xlu0 0
          %1222 = vperm.xlu0 %1221, %v1112
          %v1223 = vpop.permute.xlu0 %1222
          %1226 = vset.pattern.permute.xlu0 0
          %1227 = vperm.xlu0 %1226, %v1113
          %v1228 = vpop.permute.xlu0 %1227
          %1231 = vset.pattern.permute.xlu0 0
          %1232 = vperm.xlu0 %1231, %v1114
          %v1233 = vpop.permute.xlu0 %1232
          %1236 = vset.pattern.permute.xlu0 0
          %1237 = vperm.xlu0 %1236, %v1115
          %v1238 = vpop.permute.xlu0 %1237
          %1241 = vset.pattern.permute.xlu0 0
          %1242 = vperm.xlu0 %1241, %v1116
          %v1243 = vpop.permute.xlu0 %1242
          %1246 = vset.pattern.permute.xlu0 0
          %1247 = vperm.xlu0 %1246, %v1117
          %v1248 = vpop.permute.xlu0 %1247
          %1251 = vset.pattern.permute.xlu0 0
          %1252 = vperm.xlu0 %1251, %v1118
          %v1253 = vpop.permute.xlu0 %1252
          %1256 = vset.pattern.permute.xlu0 0
          %1257 = vperm.xlu0 %1256, %v1119
          %v1258 = vpop.permute.xlu0 %1257
          %1261 = vset.pattern.permute.xlu0 0
          %1262 = vperm.xlu0 %1261, %v1120
          %v1263 = vpop.permute.xlu0 %1262
          %1266 = vset.pattern.permute.xlu0 0
          %1267 = vperm.xlu0 %1266, %v1121
          %v1268 = vpop.permute.xlu0 %1267
          %1271 = vset.pattern.permute.xlu0 0
          %1272 = vperm.xlu0 %1271, %v1122
          %v1273 = vpop.permute.xlu0 %1272
          %1276 = vset.pattern.permute.xlu0 0
          %1277 = vperm.xlu0 %1276, %v1123
          %v1278 = vpop.permute.xlu0 %1277
          %1281 = vset.pattern.permute.xlu0 0
          %1282 = vperm.xlu0 %1281, %v1124
          %v1283 = vpop.permute.xlu0 %1282
          %v1285 = vmul.f32 %v1061, %v1128
          %v1286 = vmul.f32 %v1062, %v1133
          %v1287 = vmul.f32 %v1063, %v1138
          %v1288 = vmul.f32 %v1064, %v1143
          %v1289 = vmul.f32 %v1065, %v1148
          %v1290 = vmul.f32 %v1066, %v1153
          %v1291 = vmul.f32 %v1067, %v1158
          %v1292 = vmul.f32 %v1068, %v1163
          %v1293 = vmul.f32 %v1069, %v1168
          %v1294 = vmul.f32 %v1070, %v1173
          %v1295 = vmul.f32 %v1071, %v1178
          %v1296 = vmul.f32 %v1072, %v1183
          %v1297 = vmul.f32 %v1073, %v1188
          %v1298 = vmul.f32 %v1074, %v1193
          %v1299 = vmul.f32 %v1075, %v1198
          %v1300 = vmul.f32 %v1076, %v1203
          %v1301 = vmul.f32 %v1077, %v1208
          %v1302 = vmul.f32 %v1078, %v1213
          %v1303 = vmul.f32 %v1079, %v1218
          %v1304 = vmul.f32 %v1080, %v1223
          %v1305 = vmul.f32 %v1081, %v1228
          %v1306 = vmul.f32 %v1082, %v1233
          %v1307 = vmul.f32 %v1083, %v1238
          %v1308 = vmul.f32 %v1084, %v1243
          %v1309 = vmul.f32 %v1085, %v1248
          %v1310 = vmul.f32 %v1086, %v1253
          %v1311 = vmul.f32 %v1087, %v1258
          %v1312 = vmul.f32 %v1088, %v1263
          %v1313 = vmul.f32 %v1089, %v1268
          %v1314 = vmul.f32 %v1090, %v1273
          %v1315 = vmul.f32 %v1091, %v1278
          %v1316 = vmul.f32 %v1092, %v1283
          %v1317 = vpack.c.bf16 %v1286, %v1285
          %v1318 = vpack.c.bf16 %v1288, %v1287
          %v1319 = vpack.c.bf16 %v1290, %v1289
          %v1320 = vpack.c.bf16 %v1292, %v1291
          %v1321 = vpack.c.bf16 %v1294, %v1293
          %v1322 = vpack.c.bf16 %v1296, %v1295
          %v1323 = vpack.c.bf16 %v1298, %v1297
          %v1324 = vpack.c.bf16 %v1300, %v1299
          %v1325 = vpack.c.bf16 %v1302, %v1301
          %v1326 = vpack.c.bf16 %v1304, %v1303
          %v1327 = vpack.c.bf16 %v1306, %v1305
          %v1328 = vpack.c.bf16 %v1308, %v1307
          %v1329 = vpack.c.bf16 %v1310, %v1309
          %v1330 = vpack.c.bf16 %v1312, %v1311
          %v1331 = vpack.c.bf16 %v1314, %v1313
          %v1332 = vpack.c.bf16 %v1316, %v1315
          %v1333 = vld [vmem:[%s6] sm:$0xf]
          %v1334 = vld [vmem:[%s6 + $0x4] sm:$0xf]
          %v1335 = vld [vmem:[%s6 + $0x8] sm:$0xf]
          %v1336 = vld [vmem:[%s6 + $0xc] sm:$0xf]
          %v1337 = vld [vmem:[%s6 + $0x10] sm:$0xf]
          %v1338 = vld [vmem:[%s6 + $0x14] sm:$0xf]
          %v1339 = vld [vmem:[%s6 + $0x18] sm:$0xf]
          %v1340 = vld [vmem:[%s6 + $0x1c] sm:$0xf]
          %v1341 = vld [vmem:[%s6 + $0x20] sm:$0xf]
          %v1342 = vld [vmem:[%s6 + $0x24] sm:$0xf]
          %v1343 = vld [vmem:[%s6 + $0x28] sm:$0xf]
          %v1344 = vld [vmem:[%s6 + $0x2c] sm:$0xf]
          %v1345 = vld [vmem:[%s6 + $0x30] sm:$0xf]
          %v1346 = vld [vmem:[%s6 + $0x34] sm:$0xf]
          %v1347 = vld [vmem:[%s6 + $0x38] sm:$0xf]
          %v1348 = vld [vmem:[%s6 + $0x3c] sm:$0xf]
          %v1349 = vld [vmem:[%s435] sm:$0xf]
          %v1350 = vld [vmem:[%s435 + $0x4] sm:$0xf]
          %v1351 = vld [vmem:[%s435 + $0x8] sm:$0xf]
          %v1352 = vld [vmem:[%s435 + $0xc] sm:$0xf]
          %v1353 = vld [vmem:[%s435 + $0x10] sm:$0xf]
          %v1354 = vld [vmem:[%s435 + $0x14] sm:$0xf]
          %v1355 = vld [vmem:[%s435 + $0x18] sm:$0xf]
          %v1356 = vld [vmem:[%s435 + $0x1c] sm:$0xf]
          %v1357 = vld [vmem:[%s435 + $0x20] sm:$0xf]
          %v1358 = vld [vmem:[%s435 + $0x24] sm:$0xf]
          %v1359 = vld [vmem:[%s435 + $0x28] sm:$0xf]
          %v1360 = vld [vmem:[%s435 + $0x2c] sm:$0xf]
          %v1361 = vld [vmem:[%s435 + $0x30] sm:$0xf]
          %v1362 = vld [vmem:[%s435 + $0x34] sm:$0xf]
          %v1363 = vld [vmem:[%s435 + $0x38] sm:$0xf]
          %v1364 = vld [vmem:[%s435 + $0x3c] sm:$0xf]
          %v1365 = vld [vmem:[%s435 + $0x40] sm:$0xf]
          %v1366 = vld [vmem:[%s435 + $0x44] sm:$0xf]
          %v1367 = vld [vmem:[%s435 + $0x48] sm:$0xf]
          %v1368 = vld [vmem:[%s435 + $0x4c] sm:$0xf]
          %v1369 = vld [vmem:[%s435 + $0x50] sm:$0xf]
          %v1370 = vld [vmem:[%s435 + $0x54] sm:$0xf]
          %v1371 = vld [vmem:[%s435 + $0x58] sm:$0xf]
          %v1372 = vld [vmem:[%s435 + $0x5c] sm:$0xf]
          %v1373 = vld [vmem:[%s435 + $0x60] sm:$0xf]
          %v1374 = vld [vmem:[%s435 + $0x64] sm:$0xf]
          %v1375 = vld [vmem:[%s435 + $0x68] sm:$0xf]
          %v1376 = vld [vmem:[%s435 + $0x6c] sm:$0xf]
          %v1377 = vld [vmem:[%s435 + $0x70] sm:$0xf]
          %v1378 = vld [vmem:[%s435 + $0x74] sm:$0xf]
          %v1379 = vld [vmem:[%s435 + $0x78] sm:$0xf]
          %v1380 = vld [vmem:[%s435 + $0x7c] sm:$0xf]
          %v1381 = vld [vmem:[%s7] sm:$0xf]
          %v1382 = vld [vmem:[%s7 + $0x4] sm:$0xf]
          %v1383 = vld [vmem:[%s7 + $0x8] sm:$0xf]
          %v1384 = vld [vmem:[%s7 + $0xc] sm:$0xf]
          %v1385 = vld [vmem:[%s7 + $0x10] sm:$0xf]
          %v1386 = vld [vmem:[%s7 + $0x14] sm:$0xf]
          %v1387 = vld [vmem:[%s7 + $0x18] sm:$0xf]
          %v1388 = vld [vmem:[%s7 + $0x1c] sm:$0xf]
          %v1389 = vld [vmem:[%s7 + $0x20] sm:$0xf]
          %v1390 = vld [vmem:[%s7 + $0x24] sm:$0xf]
          %v1391 = vld [vmem:[%s7 + $0x28] sm:$0xf]
          %v1392 = vld [vmem:[%s7 + $0x2c] sm:$0xf]
          %v1393 = vld [vmem:[%s7 + $0x30] sm:$0xf]
          %v1394 = vld [vmem:[%s7 + $0x34] sm:$0xf]
          %v1395 = vld [vmem:[%s7 + $0x38] sm:$0xf]
          %v1396 = vld [vmem:[%s7 + $0x3c] sm:$0xf]
          %v1429 = vunpack.c.l.b16 %v1349
          %v1430 = vunpack.c.l.b16 %v1350
          %v1431 = vunpack.c.l.b16 %v1351
          %v1432 = vunpack.c.l.b16 %v1352
          %v1433 = vunpack.c.l.b16 %v1353
          %v1434 = vunpack.c.l.b16 %v1354
          %v1435 = vunpack.c.l.b16 %v1355
          %v1436 = vunpack.c.l.b16 %v1356
          %v1437 = vunpack.c.l.b16 %v1357
          %v1438 = vunpack.c.l.b16 %v1358
          %v1439 = vunpack.c.l.b16 %v1359
          %v1440 = vunpack.c.l.b16 %v1360
          %v1441 = vunpack.c.l.b16 %v1361
          %v1442 = vunpack.c.l.b16 %v1362
          %v1443 = vunpack.c.l.b16 %v1363
          %v1444 = vunpack.c.l.b16 %v1364
          %v1445 = vunpack.c.l.b16 %v1365
          %v1446 = vunpack.c.l.b16 %v1366
          %v1447 = vunpack.c.l.b16 %v1367
          %v1448 = vunpack.c.l.b16 %v1368
          %v1449 = vunpack.c.l.b16 %v1369
          %v1450 = vunpack.c.l.b16 %v1370
          %v1451 = vunpack.c.l.b16 %v1371
          %v1452 = vunpack.c.l.b16 %v1372
          %v1453 = vunpack.c.l.b16 %v1373
          %v1454 = vunpack.c.l.b16 %v1374
          %v1455 = vunpack.c.l.b16 %v1375
          %v1456 = vunpack.c.l.b16 %v1376
          %v1457 = vunpack.c.l.b16 %v1377
          %v1458 = vunpack.c.l.b16 %v1378
          %v1459 = vunpack.c.l.b16 %v1379
          %v1460 = vunpack.c.l.b16 %v1380
          %v1461 = vpack.c.b16 %v1430, %v1429
          %v1462 = vpack.c.b16 %v1432, %v1431
          %v1463 = vpack.c.b16 %v1434, %v1433
          %v1464 = vpack.c.b16 %v1436, %v1435
          %v1465 = vpack.c.b16 %v1438, %v1437
          %v1466 = vpack.c.b16 %v1440, %v1439
          %v1467 = vpack.c.b16 %v1442, %v1441
          %v1468 = vpack.c.b16 %v1444, %v1443
          %v1469 = vpack.c.b16 %v1446, %v1445
          %v1470 = vpack.c.b16 %v1448, %v1447
          %v1471 = vpack.c.b16 %v1450, %v1449
          %v1472 = vpack.c.b16 %v1452, %v1451
          %v1473 = vpack.c.b16 %v1454, %v1453
          %v1474 = vpack.c.b16 %v1456, %v1455
          %v1475 = vpack.c.b16 %v1458, %v1457
          %v1476 = vpack.c.b16 %v1460, %v1459
          %v1509 = vunpack.c.l.b16 %v1381
          %v1510 = vunpack.c.l.b16 %v1382
          %v1511 = vunpack.c.l.b16 %v1383
          %v1512 = vunpack.c.l.b16 %v1384
          %v1513 = vunpack.c.l.b16 %v1385
          %v1514 = vunpack.c.l.b16 %v1386
          %v1515 = vunpack.c.l.b16 %v1387
          %v1516 = vunpack.c.l.b16 %v1388
          %v1517 = vunpack.c.l.b16 %v1389
          %v1518 = vunpack.c.l.b16 %v1390
          %v1519 = vunpack.c.l.b16 %v1391
          %v1520 = vunpack.c.l.b16 %v1392
          %v1521 = vunpack.c.l.b16 %v1393
          %v1522 = vunpack.c.l.b16 %v1394
          %v1523 = vunpack.c.l.b16 %v1395
          %v1524 = vunpack.c.l.b16 %v1396
          %v1525 = vpack.c.b16 %v1510, %v1509
          %v1526 = vpack.c.b16 %v1512, %v1511
          %v1527 = vpack.c.b16 %v1514, %v1513
          %v1528 = vpack.c.b16 %v1516, %v1515
          %v1529 = vpack.c.b16 %v1518, %v1517
          %v1530 = vpack.c.b16 %v1520, %v1519
          %v1531 = vpack.c.b16 %v1522, %v1521
          %v1532 = vpack.c.b16 %v1524, %v1523
          %1541 = vmatprep.subr.bf16.mxu0 0
          %1542 = vmatpush1.bf16.msra.mxu0 %v1532
          %1543 = vmatprep.subr.bf16.mxu0 0
          %1544 = vmatpush1.bf16.msra.mxu0 %v1531
          %1545 = vmatprep.subr.bf16.mxu0 0
          %1546 = vmatpush1.bf16.msra.mxu0 %v1530
          %1547 = vmatprep.subr.bf16.mxu0 0
          %1548 = vmatpush1.bf16.msra.mxu0 %v1529
          %1549 = vmatprep.subr.bf16.mxu0 0
          %1550 = vmatpush1.bf16.msra.mxu0 %v1528
          %1551 = vmatprep.subr.bf16.mxu0 0
          %1552 = vmatpush1.bf16.msra.mxu0 %v1527
          %1553 = vmatprep.subr.bf16.mxu0 0
          %1554 = vmatpush1.bf16.msra.mxu0 %v1526
          %1555 = vmatprep.subr.bf16.mxu0 0
          %1556 = vmatpush1.bf16.msra.mxu0 %v1525
          %1557 = vmatprep.subr.bf16.mxu0 0
          %1558 = vmatpush2.bf16.msra.mxu0 0
          %1559 = vmatprep.subr.bf16.mxu0 0
          %1560 = vmatpush2.bf16.msra.mxu0 0
          %1561 = vmatprep.subr.bf16.mxu0 0
          %1562 = vmatpush2.bf16.msra.mxu0 0
          %1563 = vmatprep.subr.bf16.mxu0 0
          %1564 = vmatpush2.bf16.msra.mxu0 0
          %1565 = vmatprep.subr.bf16.mxu0 0
          %1566 = vmatpush2.bf16.msra.mxu0 0
          %1567 = vmatprep.subr.bf16.mxu0 0
          %1568 = vmatpush2.bf16.msra.mxu0 0
          %1569 = vmatprep.subr.bf16.mxu0 0
          %1570 = vmatpush2.bf16.msra.mxu0 0
          %1571 = vmatprep.subr.bf16.mxu0 0
          %1572 = vmatpush2.bf16.msra.mxu0 0
          %1573 = vmatprep.mubr.bf16.mxu0 0
          %1574 = vmatmul.mubr.bf16.gmra.mxu0 %v1461
          %v1575 = vpop.f32.mrf.mxu0
          %v1576 = vadd.f32 0.0, %v1575
          %v1577 = vpop.f32.mrf.mxu0
          %v1578 = vpop.f32.mrf.mxu0
          %v1579 = vadd.f32 0.0, %v1578
          %v1580 = vpop.f32.mrf.mxu0
          %1581 = vmatprep.mubr.bf16.mxu0 0
          %1582 = vmatmul.mubr.bf16.gmra.mxu0 %v1462
          %v1583 = vpop.f32.mrf.mxu0
          %v1584 = vadd.f32 0.0, %v1583
          %v1585 = vpop.f32.mrf.mxu0
          %v1586 = vpop.f32.mrf.mxu0
          %v1587 = vadd.f32 0.0, %v1586
          %v1588 = vpop.f32.mrf.mxu0
          %1589 = vmatprep.mubr.bf16.mxu0 0
          %1590 = vmatmul.mubr.bf16.gmra.mxu0 %v1463
          %v1591 = vpop.f32.mrf.mxu0
          %v1592 = vadd.f32 0.0, %v1591
          %v1593 = vpop.f32.mrf.mxu0
          %v1594 = vpop.f32.mrf.mxu0
          %v1595 = vadd.f32 0.0, %v1594
          %v1596 = vpop.f32.mrf.mxu0
          %1597 = vmatprep.mubr.bf16.mxu0 0
          %1598 = vmatmul.mubr.bf16.gmra.mxu0 %v1464
          %v1599 = vpop.f32.mrf.mxu0
          %v1600 = vadd.f32 0.0, %v1599
          %v1601 = vpop.f32.mrf.mxu0
          %v1602 = vpop.f32.mrf.mxu0
          %v1603 = vadd.f32 0.0, %v1602
          %v1604 = vpop.f32.mrf.mxu0
          %1605 = vmatprep.mubr.bf16.mxu0 0
          %1606 = vmatmul.mubr.bf16.gmra.mxu0 %v1465
          %v1607 = vpop.f32.mrf.mxu0
          %v1608 = vadd.f32 0.0, %v1607
          %v1609 = vpop.f32.mrf.mxu0
          %v1610 = vpop.f32.mrf.mxu0
          %v1611 = vadd.f32 0.0, %v1610
          %v1612 = vpop.f32.mrf.mxu0
          %1613 = vmatprep.mubr.bf16.mxu0 0
          %1614 = vmatmul.mubr.bf16.gmra.mxu0 %v1466
          %v1615 = vpop.f32.mrf.mxu0
          %v1616 = vadd.f32 0.0, %v1615
          %v1617 = vpop.f32.mrf.mxu0
          %v1618 = vpop.f32.mrf.mxu0
          %v1619 = vadd.f32 0.0, %v1618
          %v1620 = vpop.f32.mrf.mxu0
          %1621 = vmatprep.mubr.bf16.mxu0 0
          %1622 = vmatmul.mubr.bf16.gmra.mxu0 %v1467
          %v1623 = vpop.f32.mrf.mxu0
          %v1624 = vadd.f32 0.0, %v1623
          %v1625 = vpop.f32.mrf.mxu0
          %v1626 = vpop.f32.mrf.mxu0
          %v1627 = vadd.f32 0.0, %v1626
          %v1628 = vpop.f32.mrf.mxu0
          %1629 = vmatprep.mubr.bf16.mxu0 0
          %1630 = vmatmul.mubr.bf16.gmra.mxu0 %v1468
          %v1631 = vpop.f32.mrf.mxu0
          %v1632 = vadd.f32 0.0, %v1631
          %v1633 = vpop.f32.mrf.mxu0
          %v1634 = vpop.f32.mrf.mxu0
          %v1635 = vadd.f32 0.0, %v1634
          %v1636 = vpop.f32.mrf.mxu0
          %1637 = vmatprep.mubr.bf16.mxu0 0
          %1638 = vmatmul.mubr.bf16.gmra.mxu0 %v1469
          %v1639 = vpop.f32.mrf.mxu0
          %v1640 = vadd.f32 0.0, %v1639
          %v1641 = vpop.f32.mrf.mxu0
          %v1642 = vpop.f32.mrf.mxu0
          %v1643 = vadd.f32 0.0, %v1642
          %v1644 = vpop.f32.mrf.mxu0
          %1645 = vmatprep.mubr.bf16.mxu0 0
          %1646 = vmatmul.mubr.bf16.gmra.mxu0 %v1470
          %v1647 = vpop.f32.mrf.mxu0
          %v1648 = vadd.f32 0.0, %v1647
          %v1649 = vpop.f32.mrf.mxu0
          %v1650 = vpop.f32.mrf.mxu0
          %v1651 = vadd.f32 0.0, %v1650
          %v1652 = vpop.f32.mrf.mxu0
          %1653 = vmatprep.mubr.bf16.mxu0 0
          %1654 = vmatmul.mubr.bf16.gmra.mxu0 %v1471
          %v1655 = vpop.f32.mrf.mxu0
          %v1656 = vadd.f32 0.0, %v1655
          %v1657 = vpop.f32.mrf.mxu0
          %v1658 = vpop.f32.mrf.mxu0
          %v1659 = vadd.f32 0.0, %v1658
          %v1660 = vpop.f32.mrf.mxu0
          %1661 = vmatprep.mubr.bf16.mxu0 0
          %1662 = vmatmul.mubr.bf16.gmra.mxu0 %v1472
          %v1663 = vpop.f32.mrf.mxu0
          %v1664 = vadd.f32 0.0, %v1663
          %v1665 = vpop.f32.mrf.mxu0
          %v1666 = vpop.f32.mrf.mxu0
          %v1667 = vadd.f32 0.0, %v1666
          %v1668 = vpop.f32.mrf.mxu0
          %1669 = vmatprep.mubr.bf16.mxu0 0
          %1670 = vmatmul.mubr.bf16.gmra.mxu0 %v1473
          %v1671 = vpop.f32.mrf.mxu0
          %v1672 = vadd.f32 0.0, %v1671
          %v1673 = vpop.f32.mrf.mxu0
          %v1674 = vpop.f32.mrf.mxu0
          %v1675 = vadd.f32 0.0, %v1674
          %v1676 = vpop.f32.mrf.mxu0
          %1677 = vmatprep.mubr.bf16.mxu0 0
          %1678 = vmatmul.mubr.bf16.gmra.mxu0 %v1474
          %v1679 = vpop.f32.mrf.mxu0
          %v1680 = vadd.f32 0.0, %v1679
          %v1681 = vpop.f32.mrf.mxu0
          %v1682 = vpop.f32.mrf.mxu0
          %v1683 = vadd.f32 0.0, %v1682
          %v1684 = vpop.f32.mrf.mxu0
          %1685 = vmatprep.mubr.bf16.mxu0 0
          %1686 = vmatmul.mubr.bf16.gmra.mxu0 %v1475
          %v1687 = vpop.f32.mrf.mxu0
          %v1688 = vadd.f32 0.0, %v1687
          %v1689 = vpop.f32.mrf.mxu0
          %v1690 = vpop.f32.mrf.mxu0
          %v1691 = vadd.f32 0.0, %v1690
          %v1692 = vpop.f32.mrf.mxu0
          %1693 = vmatprep.mubr.bf16.mxu0 0
          %1694 = vmatmul.mubr.bf16.gmra.mxu0 %v1476
          %v1695 = vpop.f32.mrf.mxu0
          %v1696 = vadd.f32 0.0, %v1695
          %v1697 = vpop.f32.mrf.mxu0
          %v1698 = vpop.f32.mrf.mxu0
          %v1699 = vadd.f32 0.0, %v1698
          %v1700 = vpop.f32.mrf.mxu0
          %1701 = vdwg.mxu0
          %v1718 = vunpack.c.l.b16 %v1333
          %v1719 = vunpack.c.l.b16 %v1334
          %v1720 = vunpack.c.l.b16 %v1335
          %v1721 = vunpack.c.l.b16 %v1336
          %v1722 = vunpack.c.l.b16 %v1337
          %v1723 = vunpack.c.l.b16 %v1338
          %v1724 = vunpack.c.l.b16 %v1339
          %v1725 = vunpack.c.l.b16 %v1340
          %v1726 = vunpack.c.l.b16 %v1341
          %v1727 = vunpack.c.l.b16 %v1342
          %v1728 = vunpack.c.l.b16 %v1343
          %v1729 = vunpack.c.l.b16 %v1344
          %v1730 = vunpack.c.l.b16 %v1345
          %v1731 = vunpack.c.l.b16 %v1346
          %v1732 = vunpack.c.l.b16 %v1347
          %v1733 = vunpack.c.l.b16 %v1348
          %v1734 = vpack.c.b16 %v1719, %v1718
          %v1735 = vpack.c.b16 %v1721, %v1720
          %v1736 = vpack.c.b16 %v1723, %v1722
          %v1737 = vpack.c.b16 %v1725, %v1724
          %v1738 = vpack.c.b16 %v1727, %v1726
          %v1739 = vpack.c.b16 %v1729, %v1728
          %v1740 = vpack.c.b16 %v1731, %v1730
          %v1741 = vpack.c.b16 %v1733, %v1732
          %1750 = vmatprep.subr.bf16.mxu0 0
          %1751 = vmatpush1.bf16.msra.mxu0 %v1741
          %1752 = vmatprep.subr.bf16.mxu0 0
          %1753 = vmatpush1.bf16.msra.mxu0 %v1740
          %1754 = vmatprep.subr.bf16.mxu0 0
          %1755 = vmatpush1.bf16.msra.mxu0 %v1739
          %1756 = vmatprep.subr.bf16.mxu0 0
          %1757 = vmatpush1.bf16.msra.mxu0 %v1738
          %1758 = vmatprep.subr.bf16.mxu0 0
          %1759 = vmatpush1.bf16.msra.mxu0 %v1737
          %1760 = vmatprep.subr.bf16.mxu0 0
          %1761 = vmatpush1.bf16.msra.mxu0 %v1736
          %1762 = vmatprep.subr.bf16.mxu0 0
          %1763 = vmatpush1.bf16.msra.mxu0 %v1735
          %1764 = vmatprep.subr.bf16.mxu0 0
          %1765 = vmatpush1.bf16.msra.mxu0 %v1734
          %1766 = vmatprep.subr.bf16.mxu0 0
          %1767 = vmatpush2.bf16.msra.mxu0 0
          %1768 = vmatprep.subr.bf16.mxu0 0
          %1769 = vmatpush2.bf16.msra.mxu0 0
          %1770 = vmatprep.subr.bf16.mxu0 0
          %1771 = vmatpush2.bf16.msra.mxu0 0
          %1772 = vmatprep.subr.bf16.mxu0 0
          %1773 = vmatpush2.bf16.msra.mxu0 0
          %1774 = vmatprep.subr.bf16.mxu0 0
          %1775 = vmatpush2.bf16.msra.mxu0 0
          %1776 = vmatprep.subr.bf16.mxu0 0
          %1777 = vmatpush2.bf16.msra.mxu0 0
          %1778 = vmatprep.subr.bf16.mxu0 0
          %1779 = vmatpush2.bf16.msra.mxu0 0
          %1780 = vmatprep.subr.bf16.mxu0 0
          %1781 = vmatpush2.bf16.msra.mxu0 0
          %1782 = vmatprep.mubr.bf16.mxu0 0
          %1783 = vmatmul.mubr.bf16.gmra.mxu0 %v1317
          %v1784 = vpop.f32.mrf.mxu0
          %v1785 = vadd.f32 %v1576, %v1784
          %v1786 = vpop.f32.mrf.mxu0
          %v1787 = vpop.f32.mrf.mxu0
          %v1788 = vadd.f32 %v1579, %v1787
          %v1789 = vpop.f32.mrf.mxu0
          %1790 = vmatprep.mubr.bf16.mxu0 0
          %1791 = vmatmul.mubr.bf16.gmra.mxu0 %v1318
          %v1792 = vpop.f32.mrf.mxu0
          %v1793 = vadd.f32 %v1584, %v1792
          %v1794 = vpop.f32.mrf.mxu0
          %v1795 = vpop.f32.mrf.mxu0
          %v1796 = vadd.f32 %v1587, %v1795
          %v1797 = vpop.f32.mrf.mxu0
          %1798 = vmatprep.mubr.bf16.mxu0 0
          %1799 = vmatmul.mubr.bf16.gmra.mxu0 %v1319
          %v1800 = vpop.f32.mrf.mxu0
          %v1801 = vadd.f32 %v1592, %v1800
          %v1802 = vpop.f32.mrf.mxu0
          %v1803 = vpop.f32.mrf.mxu0
          %v1804 = vadd.f32 %v1595, %v1803
          %v1805 = vpop.f32.mrf.mxu0
          %1806 = vmatprep.mubr.bf16.mxu0 0
          %1807 = vmatmul.mubr.bf16.gmra.mxu0 %v1320
          %v1808 = vpop.f32.mrf.mxu0
          %v1809 = vadd.f32 %v1600, %v1808
          %v1810 = vpop.f32.mrf.mxu0
          %v1811 = vpop.f32.mrf.mxu0
          %v1812 = vadd.f32 %v1603, %v1811
          %v1813 = vpop.f32.mrf.mxu0
          %1814 = vmatprep.mubr.bf16.mxu0 0
          %1815 = vmatmul.mubr.bf16.gmra.mxu0 %v1321
          %v1816 = vpop.f32.mrf.mxu0
          %v1817 = vadd.f32 %v1608, %v1816
          %v1818 = vpop.f32.mrf.mxu0
          %v1819 = vpop.f32.mrf.mxu0
          %v1820 = vadd.f32 %v1611, %v1819
          %v1821 = vpop.f32.mrf.mxu0
          %1822 = vmatprep.mubr.bf16.mxu0 0
          %1823 = vmatmul.mubr.bf16.gmra.mxu0 %v1322
          %v1824 = vpop.f32.mrf.mxu0
          %v1825 = vadd.f32 %v1616, %v1824
          %v1826 = vpop.f32.mrf.mxu0
          %v1827 = vpop.f32.mrf.mxu0
          %v1828 = vadd.f32 %v1619, %v1827
          %v1829 = vpop.f32.mrf.mxu0
          %1830 = vmatprep.mubr.bf16.mxu0 0
          %1831 = vmatmul.mubr.bf16.gmra.mxu0 %v1323
          %v1832 = vpop.f32.mrf.mxu0
          %v1833 = vadd.f32 %v1624, %v1832
          %v1834 = vpop.f32.mrf.mxu0
          %v1835 = vpop.f32.mrf.mxu0
          %v1836 = vadd.f32 %v1627, %v1835
          %v1837 = vpop.f32.mrf.mxu0
          %1838 = vmatprep.mubr.bf16.mxu0 0
          %1839 = vmatmul.mubr.bf16.gmra.mxu0 %v1324
          %v1840 = vpop.f32.mrf.mxu0
          %v1841 = vadd.f32 %v1632, %v1840
          %v1842 = vpop.f32.mrf.mxu0
          %v1843 = vpop.f32.mrf.mxu0
          %v1844 = vadd.f32 %v1635, %v1843
          %v1845 = vpop.f32.mrf.mxu0
          %1846 = vmatprep.mubr.bf16.mxu0 0
          %1847 = vmatmul.mubr.bf16.gmra.mxu0 %v1325
          %v1848 = vpop.f32.mrf.mxu0
          %v1849 = vadd.f32 %v1640, %v1848
          %v1850 = vpop.f32.mrf.mxu0
          %v1851 = vpop.f32.mrf.mxu0
          %v1852 = vadd.f32 %v1643, %v1851
          %v1853 = vpop.f32.mrf.mxu0
          %1854 = vmatprep.mubr.bf16.mxu0 0
          %1855 = vmatmul.mubr.bf16.gmra.mxu0 %v1326
          %v1856 = vpop.f32.mrf.mxu0
          %v1857 = vadd.f32 %v1648, %v1856
          %v1858 = vpop.f32.mrf.mxu0
          %v1859 = vpop.f32.mrf.mxu0
          %v1860 = vadd.f32 %v1651, %v1859
          %v1861 = vpop.f32.mrf.mxu0
          %1862 = vmatprep.mubr.bf16.mxu0 0
          %1863 = vmatmul.mubr.bf16.gmra.mxu0 %v1327
          %v1864 = vpop.f32.mrf.mxu0
          %v1865 = vadd.f32 %v1656, %v1864
          %v1866 = vpop.f32.mrf.mxu0
          %v1867 = vpop.f32.mrf.mxu0
          %v1868 = vadd.f32 %v1659, %v1867
          %v1869 = vpop.f32.mrf.mxu0
          %1870 = vmatprep.mubr.bf16.mxu0 0
          %1871 = vmatmul.mubr.bf16.gmra.mxu0 %v1328
          %v1872 = vpop.f32.mrf.mxu0
          %v1873 = vadd.f32 %v1664, %v1872
          %v1874 = vpop.f32.mrf.mxu0
          %v1875 = vpop.f32.mrf.mxu0
          %v1876 = vadd.f32 %v1667, %v1875
          %v1877 = vpop.f32.mrf.mxu0
          %1878 = vmatprep.mubr.bf16.mxu0 0
          %1879 = vmatmul.mubr.bf16.gmra.mxu0 %v1329
          %v1880 = vpop.f32.mrf.mxu0
          %v1881 = vadd.f32 %v1672, %v1880
          %v1882 = vpop.f32.mrf.mxu0
          %v1883 = vpop.f32.mrf.mxu0
          %v1884 = vadd.f32 %v1675, %v1883
          %v1885 = vpop.f32.mrf.mxu0
          %1886 = vmatprep.mubr.bf16.mxu0 0
          %1887 = vmatmul.mubr.bf16.gmra.mxu0 %v1330
          %v1888 = vpop.f32.mrf.mxu0
          %v1889 = vadd.f32 %v1680, %v1888
          %v1890 = vpop.f32.mrf.mxu0
          %v1891 = vpop.f32.mrf.mxu0
          %v1892 = vadd.f32 %v1683, %v1891
          %v1893 = vpop.f32.mrf.mxu0
          %1894 = vmatprep.mubr.bf16.mxu0 0
          %1895 = vmatmul.mubr.bf16.gmra.mxu0 %v1331
          %v1896 = vpop.f32.mrf.mxu0
          %v1897 = vadd.f32 %v1688, %v1896
          %v1898 = vpop.f32.mrf.mxu0
          %v1899 = vpop.f32.mrf.mxu0
          %v1900 = vadd.f32 %v1691, %v1899
          %v1901 = vpop.f32.mrf.mxu0
          %1902 = vmatprep.mubr.bf16.mxu0 0
          %1903 = vmatmul.mubr.bf16.gmra.mxu0 %v1332
          %v1904 = vpop.f32.mrf.mxu0
          %v1905 = vadd.f32 %v1696, %v1904
          %v1906 = vpop.f32.mrf.mxu0
          %v1907 = vpop.f32.mrf.mxu0
          %v1908 = vadd.f32 %v1699, %v1907
          %v1909 = vpop.f32.mrf.mxu0
          %1910 = vdwg.mxu0
          %v1911 = vld [vmem:[%s8] sm:$0x1]
          %v1913 = vlaneseq
          %v1914 = vshrl.u32 %v1913, 7
          %v1915 = vsub.s32 0, %v1914
          %v1916 = vrot.slane %v1911, %v1915
          %v1918 = vadd.f32 %v1785, %v1916
          %v1919 = vadd.f32 %v1788, %v1916
          %v1920 = vadd.f32 %v1793, %v1916
          %v1921 = vadd.f32 %v1796, %v1916
          %v1922 = vadd.f32 %v1801, %v1916
          %v1923 = vadd.f32 %v1804, %v1916
          %v1924 = vadd.f32 %v1809, %v1916
          %v1925 = vadd.f32 %v1812, %v1916
          %v1926 = vadd.f32 %v1817, %v1916
          %v1927 = vadd.f32 %v1820, %v1916
          %v1928 = vadd.f32 %v1825, %v1916
          %v1929 = vadd.f32 %v1828, %v1916
          %v1930 = vadd.f32 %v1833, %v1916
          %v1931 = vadd.f32 %v1836, %v1916
          %v1932 = vadd.f32 %v1841, %v1916
          %v1933 = vadd.f32 %v1844, %v1916
          %v1934 = vadd.f32 %v1849, %v1916
          %v1935 = vadd.f32 %v1852, %v1916
          %v1936 = vadd.f32 %v1857, %v1916
          %v1937 = vadd.f32 %v1860, %v1916
          %v1938 = vadd.f32 %v1865, %v1916
          %v1939 = vadd.f32 %v1868, %v1916
          %v1940 = vadd.f32 %v1873, %v1916
          %v1941 = vadd.f32 %v1876, %v1916
          %v1942 = vadd.f32 %v1881, %v1916
          %v1943 = vadd.f32 %v1884, %v1916
          %v1944 = vadd.f32 %v1889, %v1916
          %v1945 = vadd.f32 %v1892, %v1916
          %v1946 = vadd.f32 %v1897, %v1916
          %v1947 = vadd.f32 %v1900, %v1916
          %v1948 = vadd.f32 %v1905, %v1916
          %v1949 = vadd.f32 %v1908, %v1916
          %1950 = vmax.xlane.f32.xlu0 %v1918
          %v1951 = vpop.xlane.xlu0 %1950
          %1952 = vmax.xlane.f32.xlu0 %v1919
          %v1953 = vpop.xlane.xlu0 %1952
          %1954 = vmax.xlane.f32.xlu0 %v1920
          %v1955 = vpop.xlane.xlu0 %1954
          %1956 = vmax.xlane.f32.xlu0 %v1921
          %v1957 = vpop.xlane.xlu0 %1956
          %1958 = vmax.xlane.f32.xlu0 %v1922
          %v1959 = vpop.xlane.xlu0 %1958
          %1960 = vmax.xlane.f32.xlu0 %v1923
          %v1961 = vpop.xlane.xlu0 %1960
          %1962 = vmax.xlane.f32.xlu0 %v1924
          %v1963 = vpop.xlane.xlu0 %1962
          %1964 = vmax.xlane.f32.xlu0 %v1925
          %v1965 = vpop.xlane.xlu0 %1964
          %1966 = vmax.xlane.f32.xlu0 %v1926
          %v1967 = vpop.xlane.xlu0 %1966
          %1968 = vmax.xlane.f32.xlu0 %v1927
          %v1969 = vpop.xlane.xlu0 %1968
          %1970 = vmax.xlane.f32.xlu0 %v1928
          %v1971 = vpop.xlane.xlu0 %1970
          %1972 = vmax.xlane.f32.xlu0 %v1929
          %v1973 = vpop.xlane.xlu0 %1972
          %1974 = vmax.xlane.f32.xlu0 %v1930
          %v1975 = vpop.xlane.xlu0 %1974
          %1976 = vmax.xlane.f32.xlu0 %v1931
          %v1977 = vpop.xlane.xlu0 %1976
          %1978 = vmax.xlane.f32.xlu0 %v1932
          %v1979 = vpop.xlane.xlu0 %1978
          %1980 = vmax.xlane.f32.xlu0 %v1933
          %v1981 = vpop.xlane.xlu0 %1980
          %1982 = vmax.xlane.f32.xlu0 %v1934
          %v1983 = vpop.xlane.xlu0 %1982
          %1984 = vmax.xlane.f32.xlu0 %v1935
          %v1985 = vpop.xlane.xlu0 %1984
          %1986 = vmax.xlane.f32.xlu0 %v1936
          %v1987 = vpop.xlane.xlu0 %1986
          %1988 = vmax.xlane.f32.xlu0 %v1937
          %v1989 = vpop.xlane.xlu0 %1988
          %1990 = vmax.xlane.f32.xlu0 %v1938
          %v1991 = vpop.xlane.xlu0 %1990
          %1992 = vmax.xlane.f32.xlu0 %v1939
          %v1993 = vpop.xlane.xlu0 %1992
          %1994 = vmax.xlane.f32.xlu0 %v1940
          %v1995 = vpop.xlane.xlu0 %1994
          %1996 = vmax.xlane.f32.xlu0 %v1941
          %v1997 = vpop.xlane.xlu0 %1996
          %1998 = vmax.xlane.f32.xlu0 %v1942
          %v1999 = vpop.xlane.xlu0 %1998
          %2000 = vmax.xlane.f32.xlu0 %v1943
          %v2001 = vpop.xlane.xlu0 %2000
          %2002 = vmax.xlane.f32.xlu0 %v1944
          %v2003 = vpop.xlane.xlu0 %2002
          %2004 = vmax.xlane.f32.xlu0 %v1945
          %v2005 = vpop.xlane.xlu0 %2004
          %2006 = vmax.xlane.f32.xlu0 %v1946
          %v2007 = vpop.xlane.xlu0 %2006
          %2008 = vmax.xlane.f32.xlu0 %v1947
          %v2009 = vpop.xlane.xlu0 %2008
          %2010 = vmax.xlane.f32.xlu0 %v1948
          %v2011 = vpop.xlane.xlu0 %2010
          %2012 = vmax.xlane.f32.xlu0 %v1949
          %v2013 = vpop.xlane.xlu0 %2012
          %v2014 = vsub.f32 %v1918, %v1951
          %v2015 = vsub.f32 %v1919, %v1953
          %v2016 = vsub.f32 %v1920, %v1955
          %v2017 = vsub.f32 %v1921, %v1957
          %v2018 = vsub.f32 %v1922, %v1959
          %v2019 = vsub.f32 %v1923, %v1961
          %v2020 = vsub.f32 %v1924, %v1963
          %v2021 = vsub.f32 %v1925, %v1965
          %v2022 = vsub.f32 %v1926, %v1967
          %v2023 = vsub.f32 %v1927, %v1969
          %v2024 = vsub.f32 %v1928, %v1971
          %v2025 = vsub.f32 %v1929, %v1973
          %v2026 = vsub.f32 %v1930, %v1975
          %v2027 = vsub.f32 %v1931, %v1977
          %v2028 = vsub.f32 %v1932, %v1979
          %v2029 = vsub.f32 %v1933, %v1981
          %v2030 = vsub.f32 %v1934, %v1983
          %v2031 = vsub.f32 %v1935, %v1985
          %v2032 = vsub.f32 %v1936, %v1987
          %v2033 = vsub.f32 %v1937, %v1989
          %v2034 = vsub.f32 %v1938, %v1991
          %v2035 = vsub.f32 %v1939, %v1993
          %v2036 = vsub.f32 %v1940, %v1995
          %v2037 = vsub.f32 %v1941, %v1997
          %v2038 = vsub.f32 %v1942, %v1999
          %v2039 = vsub.f32 %v1943, %v2001
          %v2040 = vsub.f32 %v1944, %v2003
          %v2041 = vsub.f32 %v1945, %v2005
          %v2042 = vsub.f32 %v1946, %v2007
          %v2043 = vsub.f32 %v1947, %v2009
          %v2044 = vsub.f32 %v1948, %v2011
          %v2045 = vsub.f32 %v1949, %v2013
          %v2046 = vmul.f32 %v2014, 1.442695
          %v2047 = vpow.pop %v2046
          %v2048 = vmul.f32 %v2015, 1.442695
          %v2049 = vpow.pop %v2048
          %v2050 = vmul.f32 %v2016, 1.442695
          %v2051 = vpow.pop %v2050
          %v2052 = vmul.f32 %v2017, 1.442695
          %v2053 = vpow.pop %v2052
          %v2054 = vmul.f32 %v2018, 1.442695
          %v2055 = vpow.pop %v2054
          %v2056 = vmul.f32 %v2019, 1.442695
          %v2057 = vpow.pop %v2056
          %v2058 = vmul.f32 %v2020, 1.442695
          %v2059 = vpow.pop %v2058
          %v2060 = vmul.f32 %v2021, 1.442695
          %v2061 = vpow.pop %v2060
          %v2062 = vmul.f32 %v2022, 1.442695
          %v2063 = vpow.pop %v2062
          %v2064 = vmul.f32 %v2023, 1.442695
          %v2065 = vpow.pop %v2064
          %v2066 = vmul.f32 %v2024, 1.442695
          %v2067 = vpow.pop %v2066
          %v2068 = vmul.f32 %v2025, 1.442695
          %v2069 = vpow.pop %v2068
          %v2070 = vmul.f32 %v2026, 1.442695
          %v2071 = vpow.pop %v2070
          %v2072 = vmul.f32 %v2027, 1.442695
          %v2073 = vpow.pop %v2072
          %v2074 = vmul.f32 %v2028, 1.442695
          %v2075 = vpow.pop %v2074
          %v2076 = vmul.f32 %v2029, 1.442695
          %v2077 = vpow.pop %v2076
          %v2078 = vmul.f32 %v2030, 1.442695
          %v2079 = vpow.pop %v2078
          %v2080 = vmul.f32 %v2031, 1.442695
          %v2081 = vpow.pop %v2080
          %v2082 = vmul.f32 %v2032, 1.442695
          %v2083 = vpow.pop %v2082
          %v2084 = vmul.f32 %v2033, 1.442695
          %v2085 = vpow.pop %v2084
          %v2086 = vmul.f32 %v2034, 1.442695
          %v2087 = vpow.pop %v2086
          %v2088 = vmul.f32 %v2035, 1.442695
          %v2089 = vpow.pop %v2088
          %v2090 = vmul.f32 %v2036, 1.442695
          %v2091 = vpow.pop %v2090
          %v2092 = vmul.f32 %v2037, 1.442695
          %v2093 = vpow.pop %v2092
          %v2094 = vmul.f32 %v2038, 1.442695
          %v2095 = vpow.pop %v2094
          %v2096 = vmul.f32 %v2039, 1.442695
          %v2097 = vpow.pop %v2096
          %v2098 = vmul.f32 %v2040, 1.442695
          %v2099 = vpow.pop %v2098
          %v2100 = vmul.f32 %v2041, 1.442695
          %v2101 = vpow.pop %v2100
          %v2102 = vmul.f32 %v2042, 1.442695
          %v2103 = vpow.pop %v2102
          %v2104 = vmul.f32 %v2043, 1.442695
          %v2105 = vpow.pop %v2104
          %v2106 = vmul.f32 %v2044, 1.442695
          %v2107 = vpow.pop %v2106
          %v2108 = vmul.f32 %v2045, 1.442695
          %v2109 = vpow.pop %v2108
          %2110 = vadd.xlane.f32.xlu0 %v2047
          %v2111 = vpop.xlane.xlu0 %2110
          %2112 = vadd.xlane.f32.xlu0 %v2049
          %v2113 = vpop.xlane.xlu0 %2112
          %2114 = vadd.xlane.f32.xlu0 %v2051
          %v2115 = vpop.xlane.xlu0 %2114
          %2116 = vadd.xlane.f32.xlu0 %v2053
          %v2117 = vpop.xlane.xlu0 %2116
          %2118 = vadd.xlane.f32.xlu0 %v2055
          %v2119 = vpop.xlane.xlu0 %2118
          %2120 = vadd.xlane.f32.xlu0 %v2057
          %v2121 = vpop.xlane.xlu0 %2120
          %2122 = vadd.xlane.f32.xlu0 %v2059
          %v2123 = vpop.xlane.xlu0 %2122
          %2124 = vadd.xlane.f32.xlu0 %v2061
          %v2125 = vpop.xlane.xlu0 %2124
          %2126 = vadd.xlane.f32.xlu0 %v2063
          %v2127 = vpop.xlane.xlu0 %2126
          %2128 = vadd.xlane.f32.xlu0 %v2065
          %v2129 = vpop.xlane.xlu0 %2128
          %2130 = vadd.xlane.f32.xlu0 %v2067
          %v2131 = vpop.xlane.xlu0 %2130
          %2132 = vadd.xlane.f32.xlu0 %v2069
          %v2133 = vpop.xlane.xlu0 %2132
          %2134 = vadd.xlane.f32.xlu0 %v2071
          %v2135 = vpop.xlane.xlu0 %2134
          %2136 = vadd.xlane.f32.xlu0 %v2073
          %v2137 = vpop.xlane.xlu0 %2136
          %2138 = vadd.xlane.f32.xlu0 %v2075
          %v2139 = vpop.xlane.xlu0 %2138
          %2140 = vadd.xlane.f32.xlu0 %v2077
          %v2141 = vpop.xlane.xlu0 %2140
          %2142 = vadd.xlane.f32.xlu0 %v2079
          %v2143 = vpop.xlane.xlu0 %2142
          %2144 = vadd.xlane.f32.xlu0 %v2081
          %v2145 = vpop.xlane.xlu0 %2144
          %2146 = vadd.xlane.f32.xlu0 %v2083
          %v2147 = vpop.xlane.xlu0 %2146
          %2148 = vadd.xlane.f32.xlu0 %v2085
          %v2149 = vpop.xlane.xlu0 %2148
          %2150 = vadd.xlane.f32.xlu0 %v2087
          %v2151 = vpop.xlane.xlu0 %2150
          %2152 = vadd.xlane.f32.xlu0 %v2089
          %v2153 = vpop.xlane.xlu0 %2152
          %2154 = vadd.xlane.f32.xlu0 %v2091
          %v2155 = vpop.xlane.xlu0 %2154
          %2156 = vadd.xlane.f32.xlu0 %v2093
          %v2157 = vpop.xlane.xlu0 %2156
          %2158 = vadd.xlane.f32.xlu0 %v2095
          %v2159 = vpop.xlane.xlu0 %2158
          %2160 = vadd.xlane.f32.xlu0 %v2097
          %v2161 = vpop.xlane.xlu0 %2160
          %2162 = vadd.xlane.f32.xlu0 %v2099
          %v2163 = vpop.xlane.xlu0 %2162
          %2164 = vadd.xlane.f32.xlu0 %v2101
          %v2165 = vpop.xlane.xlu0 %2164
          %2166 = vadd.xlane.f32.xlu0 %v2103
          %v2167 = vpop.xlane.xlu0 %2166
          %2168 = vadd.xlane.f32.xlu0 %v2105
          %v2169 = vpop.xlane.xlu0 %2168
          %2170 = vadd.xlane.f32.xlu0 %v2107
          %v2171 = vpop.xlane.xlu0 %2170
          %2172 = vadd.xlane.f32.xlu0 %v2109
          %v2173 = vpop.xlane.xlu0 %2172
          %v2174 = vlog2.pop %v2111
          %v2175 = vmul.f32 %v2174, 0.6931472
          %v2176 = vlog2.pop %v2113
          %v2177 = vmul.f32 %v2176, 0.6931472
          %v2178 = vlog2.pop %v2115
          %v2179 = vmul.f32 %v2178, 0.6931472
          %v2180 = vlog2.pop %v2117
          %v2181 = vmul.f32 %v2180, 0.6931472
          %v2182 = vlog2.pop %v2119
          %v2183 = vmul.f32 %v2182, 0.6931472
          %v2184 = vlog2.pop %v2121
          %v2185 = vmul.f32 %v2184, 0.6931472
          %v2186 = vlog2.pop %v2123
          %v2187 = vmul.f32 %v2186, 0.6931472
          %v2188 = vlog2.pop %v2125
          %v2189 = vmul.f32 %v2188, 0.6931472
          %v2190 = vlog2.pop %v2127
          %v2191 = vmul.f32 %v2190, 0.6931472
          %v2192 = vlog2.pop %v2129
          %v2193 = vmul.f32 %v2192, 0.6931472
          %v2194 = vlog2.pop %v2131
          %v2195 = vmul.f32 %v2194, 0.6931472
          %v2196 = vlog2.pop %v2133
          %v2197 = vmul.f32 %v2196, 0.6931472
          %v2198 = vlog2.pop %v2135
          %v2199 = vmul.f32 %v2198, 0.6931472
          %v2200 = vlog2.pop %v2137
          %v2201 = vmul.f32 %v2200, 0.6931472
          %v2202 = vlog2.pop %v2139
          %v2203 = vmul.f32 %v2202, 0.6931472
          %v2204 = vlog2.pop %v2141
          %v2205 = vmul.f32 %v2204, 0.6931472
          %v2206 = vlog2.pop %v2143
          %v2207 = vmul.f32 %v2206, 0.6931472
          %v2208 = vlog2.pop %v2145
          %v2209 = vmul.f32 %v2208, 0.6931472
          %v2210 = vlog2.pop %v2147
          %v2211 = vmul.f32 %v2210, 0.6931472
          %v2212 = vlog2.pop %v2149
          %v2213 = vmul.f32 %v2212, 0.6931472
          %v2214 = vlog2.pop %v2151
          %v2215 = vmul.f32 %v2214, 0.6931472
          %v2216 = vlog2.pop %v2153
          %v2217 = vmul.f32 %v2216, 0.6931472
          %v2218 = vlog2.pop %v2155
          %v2219 = vmul.f32 %v2218, 0.6931472
          %v2220 = vlog2.pop %v2157
          %v2221 = vmul.f32 %v2220, 0.6931472
          %v2222 = vlog2.pop %v2159
          %v2223 = vmul.f32 %v2222, 0.6931472
          %v2224 = vlog2.pop %v2161
          %v2225 = vmul.f32 %v2224, 0.6931472
          %v2226 = vlog2.pop %v2163
          %v2227 = vmul.f32 %v2226, 0.6931472
          %v2228 = vlog2.pop %v2165
          %v2229 = vmul.f32 %v2228, 0.6931472
          %v2230 = vlog2.pop %v2167
          %v2231 = vmul.f32 %v2230, 0.6931472
          %v2232 = vlog2.pop %v2169
          %v2233 = vmul.f32 %v2232, 0.6931472
          %v2234 = vlog2.pop %v2171
          %v2235 = vmul.f32 %v2234, 0.6931472
          %v2236 = vlog2.pop %v2173
          %v2237 = vmul.f32 %v2236, 0.6931472
          %v2238 = vsub.f32 %v2014, %v2175
          %v2239 = vsub.f32 %v2015, %v2177
          %v2240 = vsub.f32 %v2016, %v2179
          %v2241 = vsub.f32 %v2017, %v2181
          %v2242 = vsub.f32 %v2018, %v2183
          %v2243 = vsub.f32 %v2019, %v2185
          %v2244 = vsub.f32 %v2020, %v2187
          %v2245 = vsub.f32 %v2021, %v2189
          %v2246 = vsub.f32 %v2022, %v2191
          %v2247 = vsub.f32 %v2023, %v2193
          %v2248 = vsub.f32 %v2024, %v2195
          %v2249 = vsub.f32 %v2025, %v2197
          %v2250 = vsub.f32 %v2026, %v2199
          %v2251 = vsub.f32 %v2027, %v2201
          %v2252 = vsub.f32 %v2028, %v2203
          %v2253 = vsub.f32 %v2029, %v2205
          %v2254 = vsub.f32 %v2030, %v2207
          %v2255 = vsub.f32 %v2031, %v2209
          %v2256 = vsub.f32 %v2032, %v2211
          %v2257 = vsub.f32 %v2033, %v2213
          %v2258 = vsub.f32 %v2034, %v2215
          %v2259 = vsub.f32 %v2035, %v2217
          %v2260 = vsub.f32 %v2036, %v2219
          %v2261 = vsub.f32 %v2037, %v2221
          %v2262 = vsub.f32 %v2038, %v2223
          %v2263 = vsub.f32 %v2039, %v2225
          %v2264 = vsub.f32 %v2040, %v2227
          %v2265 = vsub.f32 %v2041, %v2229
          %v2266 = vsub.f32 %v2042, %v2231
          %v2267 = vsub.f32 %v2043, %v2233
          %v2268 = vsub.f32 %v2044, %v2235
          %v2269 = vsub.f32 %v2045, %v2237
          %2270 = vst [vmem:[%s393] sm:$0xff] %v2238
          %2271 = vst [vmem:[%s393 + $0x8] sm:$0xff] %v2239
          %2272 = vst [vmem:[%s393 + $0x10] sm:$0xff] %v2240
          %2273 = vst [vmem:[%s393 + $0x18] sm:$0xff] %v2241
          %2274 = vst [vmem:[%s393 + $0x20] sm:$0xff] %v2242
          %2275 = vst [vmem:[%s393 + $0x28] sm:$0xff] %v2243
          %2276 = vst [vmem:[%s393 + $0x30] sm:$0xff] %v2244
          %2277 = vst [vmem:[%s393 + $0x38] sm:$0xff] %v2245
          %2278 = vst [vmem:[%s393 + $0x40] sm:$0xff] %v2246
          %2279 = vst [vmem:[%s393 + $0x48] sm:$0xff] %v2247
          %2280 = vst [vmem:[%s393 + $0x50] sm:$0xff] %v2248
          %2281 = vst [vmem:[%s393 + $0x58] sm:$0xff] %v2249
          %2282 = vst [vmem:[%s393 + $0x60] sm:$0xff] %v2250
          %2283 = vst [vmem:[%s393 + $0x68] sm:$0xff] %v2251
          %2284 = vst [vmem:[%s393 + $0x70] sm:$0xff] %v2252
          %2285 = vst [vmem:[%s393 + $0x78] sm:$0xff] %v2253
          %2286 = vst [vmem:[%s393 + $0x80] sm:$0xff] %v2254
          %2287 = vst [vmem:[%s393 + $0x88] sm:$0xff] %v2255
          %2288 = vst [vmem:[%s393 + $0x90] sm:$0xff] %v2256
          %2289 = vst [vmem:[%s393 + $0x98] sm:$0xff] %v2257
          %2290 = vst [vmem:[%s393 + $0xa0] sm:$0xff] %v2258
          %2291 = vst [vmem:[%s393 + $0xa8] sm:$0xff] %v2259
          %2292 = vst [vmem:[%s393 + $0xb0] sm:$0xff] %v2260
          %2293 = vst [vmem:[%s393 + $0xb8] sm:$0xff] %v2261
          %2294 = vst [vmem:[%s393 + $0xc0] sm:$0xff] %v2262
          %2295 = vst [vmem:[%s393 + $0xc8] sm:$0xff] %v2263
          %2296 = vst [vmem:[%s393 + $0xd0] sm:$0xff] %v2264
          %2297 = vst [vmem:[%s393 + $0xd8] sm:$0xff] %v2265
          %2298 = vst [vmem:[%s393 + $0xe0] sm:$0xff] %v2266
          %2299 = vst [vmem:[%s393 + $0xe8] sm:$0xff] %v2267
          %2300 = vst [vmem:[%s393 + $0xf0] sm:$0xff] %v2268
          %2301 = vst [vmem:[%s393 + $0xf8] sm:$0xff] %v2269
        $region60: #{graphsage_forward.3} parent=47 // pred_fallthru
          _
        %s2302 = sand.u32 %s238, 1
        %s2303 = scalar_lea.sflag [#allocation7], %s2302
        %s2304 = sand.u32 %s238, 1
        %s2305 = smul.addr %s2304, 256
        %s2306 = scalar_lea.vmem [#allocation6], %s2305
        // Predicated region
        $region61: #{graphsage_forward.3} parent=47 // pred_check
          %p2307 = pneg %p248
        $region62: #{graphsage_forward.3} parent=47 // pred_check_branch
          %2309 = sbr.rel (%p2307) target = $region64
        $region63: #{graphsage_forward.3} parent=47 // pred_region
          %s2310 = smul.u32 32, %s37
          %s2312 = ssub.s32 4096, 4096
          %2313 = vsyncadd %s2303, %s2312
          %s2314 = smul.addr %s2310, 128
          %s2315 = scalar_lea.hbm %s9, %s2314
          %s2316 = sshll.u32 %s2306, 4
          %s2317 = int_to_ptr.vmem [resolvable:$true] %s2316
          %2322 = dma.vmem_to_hbm [thread:$0]  %s2317, 4096, %s2315, %s2303, 128, 128, 8
        $region64: #{graphsage_forward.3} parent=47 // pred_fallthru
          _
      $region48: #{graphsage_forward.3} parent=5 // pred_fallthru
        _
      %p2323 = scmp.le.s32.totalorder 2, %s28
      // Predicated region
      $region65: #{graphsage_forward.3} parent=5 // pred_check
        %p2324 = pneg %p2323
      $region66: #{graphsage_forward.3} parent=5 // pred_check_branch
        %2326 = sbr.rel (%p2324) target = $region68
      $region67: #{graphsage_forward.3} parent=5 // pred_region
        %s2327 = ssub.s32 %s28, 2
        // Predicated region
        $region69: #{graphsage_forward.3} parent=67 // pred_check
          %p2328 = pneg %p254
        $region70: #{graphsage_forward.3} parent=67 // pred_check_branch
          %2330 = sbr.rel (%p2328) target = $region72
        $region71: #{graphsage_forward.3} parent=67 // pred_region
          %s2331 = sand.u32 %s239, 1
          %s2332 = scalar_lea.sflag [#allocation7], %s2331
          %s2333 = sand.u32 %s239, 1
          %s2334 = smul.addr %s2333, 256
          %s2335 = scalar_lea.vmem [#allocation6], %s2334
          %2336 = dma.done %s2332, 4096
        $region72: #{graphsage_forward.3} parent=67 // pred_fallthru
          _
      $region68: #{graphsage_forward.3} parent=5 // pred_fallthru
        _
    $region6: #{graphsage_forward.3} parent=1 // loop_footer
      %s32 = sadd.s32 1, %s28
    $region7: #{graphsage_forward.3} parent=1 // loop_footer_branch
      %27 = sbr.rel target = $region3
    $region8: #{graphsage_forward.3} parent=1 // loop_exit
      _
    %2337 = vsyncpa [#allocation7], 1
    %s2338 = scalar_lea.sflag [#allocation7], 1
    %2339 = vsyncpa %s2338, 1

</llo_original>
